<compile_context>
chip_gen: v7x
topology: tpu7x:2x2x1
jax: 0.10.0
libtpu: 0.0.40
codegen_flags: <defaults>
</compile_context>

<pallas_src>
import functools

import numpy as np
import jax
import jax.numpy as jnp
from jax.experimental import pallas as pl
from jax.experimental.pallas import tpu as pltpu

S_CH = 4  # two_orders_block S (module default): 2*S branch channels, 4*S head input


# ---------------------------------------------------------------------------
# reorder / order_back (pure layout shuffles on the tiny input -> JAX glue)
# ---------------------------------------------------------------------------
def _reorder_nhwc(x, nr, k):
    B, H, W, C = x.shape  # H == W == k * nr
    xr = x.reshape(B, k, nr, k, nr, C)
    xr = jnp.transpose(xr, (0, 2, 1, 4, 3, 5))
    return xr.reshape(B, k * nr, k * nr, C)


def _order_back_nhwc(x, nr, k):
    return _reorder_nhwc(x, k, nr)


# ---------------------------------------------------------------------------
# Host-side weight packing: every cross-channel contraction is re-expressed as
# a lane-dense row matmul (rows = image rows, lanes = width*channels) against a
# banded weight matrix, so the kernel body is pure MXU matmuls + a handful of
# full-slab VPU ops.  The order_back permutations of the y branch are folded
# into the head slabs / row-selection matrices (exact 0/1 entries).
# ---------------------------------------------------------------------------
def _placement(rows, cols, fn):
    p = np.zeros((rows, cols), np.float32)
    for j in range(cols):
        p[fn(j), j] = 1.0
    return p


def _conv_band(w, n, cin, s):
    """w: (S, cin, 2, 2) Conv2d -> [kh0, kh1] banded mats ((n+2)*cin, (n+1)*S)."""
    w = w.astype(jnp.float32)
    mats = []
    for kh in range(2):
        m = jnp.zeros(((n + 2) * cin, (n + 1) * s), jnp.float32)
        for kw in range(2):
            place = _placement(n + 2, n + 1, lambda j, kw=kw: j + kw)
            blk = jnp.transpose(w[:, :, kh, kw])                # (cin, S)
            m = m + jnp.kron(place, blk)
        mats.append(m)
    return mats


def _deconv_band(w, n, s):
    """w: (2S, 2S, 2, 2) ConvTranspose2d (in,out,kh,kw) -> banded mats
    [kh0_pos, kh0_neg, kh1_pos, kh1_neg], each ((n+1)*S, n*2S), for the
    zero-pad + flipped-kernel correlation, split over the AntiRectifier halves."""
    w = w.astype(jnp.float32)
    mats = []
    for kh in range(2):
        for sign in range(2):
            m = jnp.zeros(((n + 1) * s, n * 2 * s), jnp.float32)
            for kw in range(2):
                place = _placement(n + 1, n, lambda j, kw=kw: j + kw)
                blk = w[sign * s:(sign + 1) * s, :, 1 - kh, 1 - kw]   # (S, 2S)
                m = m + jnp.kron(place, blk)
            mats.append(m)
    return mats


def _head_band(w1, n, s, bases, colmap):
    """w1: (16, 32, 2, 2) Conv2d(32->16, k=2, s=2) -> banded mats
    [kh0_pos, kh0_neg, kh1_pos, kh1_neg], each (n*2S, (n/2)*16).  `bases` picks
    the input-channel block (x vs y branch, relu(+)/relu(-)); `colmap` folds the
    order_back column permutation for the y branch (identity for x)."""
    w1 = w1.astype(jnp.float32)
    half = n // 2
    mats = []
    for kh in range(2):
        for base in bases:
            m = jnp.zeros((n * 2 * s, half * 16), jnp.float32)
            for kw in range(2):
                place = _placement(n, half, lambda q, kw=kw: colmap(2 * q + kw))
                blk = jnp.transpose(w1[:, base:base + 2 * s, kh, kw])  # (8, 16)
                m = m + jnp.kron(place, blk)
            mats.append(m)
    return mats


def _pack(params, n, nr, k, cin):
    s = S_CH
    half = n // 2
    back = lambda i: (i % nr) * k + i // nr      # order_back row/column map

    wc = jnp.stack(_conv_band(params["xconv_w"], n, cin, s)
                   + _conv_band(params["yconv_w"], n, cin, s))
    bc = jnp.stack([
        jnp.tile(params["xconv_b"].astype(jnp.float32).reshape(1, s), (1, n + 1)),
        jnp.tile(params["yconv_b"].astype(jnp.float32).reshape(1, s), (1, n + 1))])
    dm = jnp.stack(_deconv_band(params["xdeconv_w"], n, s)
                   + _deconv_band(params["ydeconv_w"], n, s))
    bt = jnp.stack([
        jnp.tile(params["xdeconv_b"].astype(jnp.float32).reshape(1, 2 * s), (1, n)),
        jnp.tile(params["ydeconv_b"].astype(jnp.float32).reshape(1, 2 * s), (1, n))])
    hm = jnp.stack(_head_band(params["conv1_w"], n, s, (0, 16), lambda j: j)
                   + _head_band(params["conv1_w"], n, s, (8, 24), back))
    b1 = jnp.tile(params["conv1_b"].astype(jnp.float32).reshape(1, 16), (1, half))

    def rowsel(fn):
        p = np.zeros((half, n), np.float32)
        for r in range(half):
            p[r, fn(r)] = 1.0
        return p

    ps = jnp.asarray(np.stack([rowsel(lambda r: 2 * r),
                               rowsel(lambda r: 2 * r + 1),
                               rowsel(lambda r: back(2 * r)),
                               rowsel(lambda r: back(2 * r + 1))]))

    rm = ((np.arange(n + 1) >= 1) & (np.arange(n + 1) <= n - 1)).astype(np.float32)
    mask = jnp.asarray(rm[:, None] * np.repeat(rm, s)[None, :])   # (n+1, (n+1)*S)
    return wc, bc, dm, bt, hm, ps, b1, mask


# ---------------------------------------------------------------------------
# Fused kernel: whole Encoder_6k forward for one batch element, all in VMEM.
# ---------------------------------------------------------------------------
def _encoder_kernel(xpx_ref, xpy_ref, mask_ref, wc_ref, bc_ref, dm_ref, bt_ref,
                    hm_ref, ps_ref, b1_ref, xout_ref, skip_ref, *, n):
    half = n // 2
    mask = mask_ref[...]

    def branch(img_ref, wi, bi, di):
        xp = img_ref[0]                                   # (n+2, (n+2)*cin) lane-dense
        # 2x2 / stride-1 conv, evaluated on the zero-extended (n+1, n+1) grid;
        # the masked border ring IS the zero padding the transposed conv needs.
        v = jnp.dot(xp[0:n + 1, :], wc_ref[wi], preferred_element_type=jnp.float32)
        v = v + jnp.dot(xp[1:n + 2, :], wc_ref[wi + 1],
                        preferred_element_type=jnp.float32)
        v = (v + bc_ref[bi]) * mask
        up = jnp.maximum(v, 0.0)                          # AntiRectifier, two slabs
        un = jnp.maximum(-v, 0.0)
        # ConvTranspose2d(k=2, s=1) == correlate the padded grid with the
        # flipped kernel: one banded MXU matmul per (kh, relu-half).
        o = jnp.dot(up[0:n, :], dm_ref[di + 0], preferred_element_type=jnp.float32)
        o = o + jnp.dot(un[0:n, :], dm_ref[di + 1], preferred_element_type=jnp.float32)
        o = o + jnp.dot(up[1:n + 1, :], dm_ref[di + 2], preferred_element_type=jnp.float32)
        o = o + jnp.dot(un[1:n + 1, :], dm_ref[di + 3], preferred_element_type=jnp.float32)
        return o + bt_ref[bi]                             # (n, n*8) lane-dense

    xb = branch(xpx_ref, 0, 0, 0)                         # x branch (original frame)
    yb = branch(xpy_ref, 2, 1, 4)                         # y branch (reorder frame)

    # Head: AntiRectifier -> Conv2d(32,16,k=2,s=2) -> AntiRectifier.
    # Even/odd row picks (and the order_back row permutation for y) are exact
    # 0/1 selection matmuls; order_back's column permutation is folded into hm.
    def head_part(sel_i, hm_i, slab):
        rows = jnp.dot(ps_ref[sel_i], slab, preferred_element_type=jnp.float32)
        out = jnp.dot(jnp.maximum(rows, 0.0), hm_ref[hm_i],
                      preferred_element_type=jnp.float32)
        out = out + jnp.dot(jnp.maximum(-rows, 0.0), hm_ref[hm_i + 1],
                            preferred_element_type=jnp.float32)
        return out

    acc = (b1_ref[...]
           + head_part(0, 0, xb) + head_part(1, 2, xb)    # x branch, kh = 0 / 1
           + head_part(2, 4, yb) + head_part(3, 6, yb))   # y branch, kh = 0 / 1

    skip_ref[0] = acc                                     # conv1 output (pre-AntiRect)
    w = half * 16
    xout_ref[0, :, 0:w] = jnp.maximum(acc, 0.0)           # final AntiRectifier as two
    xout_ref[0, :, w:2 * w] = jnp.maximum(-acc, 0.0)      # lane-dense slab stores


# ---------------------------------------------------------------------------
# Encoder_6k forward
# ---------------------------------------------------------------------------
def encoder_6k_forward(x_complex, params, nr, k):
    # preprocessing(): complex -> [real, imag] channels, float32; NCHW -> NHWC.
    if x_complex.ndim == 3:
        x_complex = x_complex[:, None, :, :]
    x = jnp.concatenate([jnp.real(x_complex), jnp.imag(x_complex)], axis=1)
    x = jnp.transpose(x.astype(jnp.float32), (0, 2, 3, 1))
    B, n, _, cin = x.shape
    half = n // 2

    wc, bc, dm, bt, hm, ps, b1, mask = _pack(params, n, nr, k, cin)

    pad = ((0, 0), (1, 1), (1, 1), (0, 0))
    xpx = jnp.pad(x, pad).reshape(B, n + 2, (n + 2) * cin)              # lane-dense rows
    xpy = jnp.pad(_reorder_nhwc(x, nr, k), pad).reshape(B, n + 2, (n + 2) * cin)

    def const_spec(a):
        nd = a.ndim
        return pl.BlockSpec(a.shape, lambda b, _nd=nd: (0,) * _nd)

    img_spec = pl.BlockSpec((1, n + 2, (n + 2) * cin), lambda b: (b, 0, 0))

    # TODO(synk): grid is batch-only; per-image row-band splitting (finer v7x
    # megacore granularity) is blocked by the order_back coupling of the branches.
    x_raw, skip_raw = pl.pallas_call(
        functools.partial(_encoder_kernel, n=n),
        grid=(B,),
        in_specs=[img_spec, img_spec, const_spec(mask), const_spec(wc),
                  const_spec(bc), const_spec(dm), const_spec(bt),
                  const_spec(hm), const_spec(ps), const_spec(b1)],
        out_specs=[pl.BlockSpec((1, half, n * 16), lambda b: (b, 0, 0)),
                   pl.BlockSpec((1, half, half * 16), lambda b: (b, 0, 0))],
        out_shape=[jax.ShapeDtypeStruct((B, half, n * 16), jnp.float32),
                   jax.ShapeDtypeStruct((B, half, half * 16), jnp.float32)],
        compiler_params=pltpu.CompilerParams(
            dimension_semantics=("parallel",),
            vmem_limit_bytes=32 * 1024 * 1024),
    )(xpx, xpy, mask, wc, bc, dm, bt, hm, ps, b1)

    # TODO(synk): nn.Dropout(p=0.2) is identity in eval mode; training-mode
    # dropout masking is not implemented.
    skip = skip_raw.reshape(B, half, half, 16).transpose(0, 3, 1, 2)
    x_out = (x_raw.reshape(B, half, 2, half, 16)
             .transpose(0, 2, 4, 1, 3)
             .reshape(B, 32, half, half))
    return x_out, skip


# ---------------------------------------------------------------------------
# Pure-jnp f32 reference mirroring the PyTorch graph (for self-checking)
# ---------------------------------------------------------------------------
def _reference_forward(x_complex, params, nr, k):
    if x_complex.ndim == 3:
        x_complex = x_complex[:, None, :, :]
    x = jnp.concatenate([jnp.real(x_complex), jnp.imag(x_complex)], axis=1)
    x = jnp.transpose(x.astype(jnp.float32), (0, 2, 3, 1))

    def conv2x2_s1(z, w, b):
        B, H, W, Cin = z.shape
        Ho, Wo = H - 1, W - 1
        p = jnp.concatenate([z[:, :Ho, :Wo], z[:, :Ho, 1:],
                             z[:, 1:, :Wo], z[:, 1:, 1:]], axis=-1)
        wm = jnp.transpose(w, (2, 3, 1, 0)).reshape(4 * Cin, -1)
        return p @ wm + b

    def deconv2x2_s1(z, w, b):
        zp = jnp.pad(z, ((0, 0), (1, 1), (1, 1), (0, 0)))
        weq = jnp.transpose(jnp.flip(w, axis=(2, 3)), (1, 0, 2, 3))
        return conv2x2_s1(zp, weq, b)

    def antirect(z):
        return jnp.concatenate([jnp.maximum(z, 0.0), jnp.maximum(-z, 0.0)], axis=-1)

    def conv2x2_s2(z, w, b):
        B, H, W, Cin = z.shape
        zr = z.reshape(B, H // 2, 2, W // 2, 2, Cin)
        p = jnp.transpose(zr, (0, 1, 3, 2, 4, 5)).reshape(B, H // 2, W // 2, 4 * Cin)
        wm = jnp.transpose(w, (2, 3, 1, 0)).reshape(4 * Cin, -1)
        return p @ wm + b

    y = _reorder_nhwc(x, nr, k)
    y = deconv2x2_s1(antirect(conv2x2_s1(y, params["yconv_w"], params["yconv_b"])),
                     params["ydeconv_w"], params["ydeconv_b"])
    y = _order_back_nhwc(y, nr, k)
    xb = deconv2x2_s1(antirect(conv2x2_s1(x, params["xconv_w"], params["xconv_b"])),
                      params["xdeconv_w"], params["xdeconv_b"])
    z = antirect(jnp.concatenate([xb, y], axis=-1))
    skip = conv2x2_s2(z, params["conv1_w"], params["conv1_b"])
    out = antirect(skip)
    return (jnp.transpose(out, (0, 3, 1, 2)), jnp.transpose(skip, (0, 3, 1, 2)))


# ---------------------------------------------------------------------------
# Deterministic parameter initialization (shapes from the module __init__)
# ---------------------------------------------------------------------------
def init_params(key, tau, S=S_CH):
    cin = 2 * tau
    shapes = {
        "yconv_w": (S, cin, 2, 2), "yconv_b": (S,),
        "xconv_w": (S, cin, 2, 2), "xconv_b": (S,),
        "ydeconv_w": (2 * S, 2 * S, 2, 2), "ydeconv_b": (2 * S,),   # (Cin,Cout,2,2)
        "xdeconv_w": (2 * S, 2 * S, 2, 2), "xdeconv_b": (2 * S,),
        "conv1_w": (16, 32, 2, 2), "conv1_b": (16,),
    }
    params = {}
    for name, shp in shapes.items():
        key, sub = jax.random.split(key)
        params[name] = (0.1 * jax.random.normal(sub, shp)).astype(jnp.float32)
    return params


# ---------------------------------------------------------------------------
if __name__ == "__main__":
    # Small config consistent with the module: Nr=2, K=8 -> N = 16 (asymmetric
    # Nr/K exercises the order_back folding), tau=1 -> cin=2, batch=2.
    Nr, K, tau, B = 2, 8, 1, 2
    N = Nr * K

    key = jax.random.PRNGKey(0)
    k_re, k_im, k_par = jax.random.split(key, 3)
    x_complex = (jax.random.normal(k_re, (B, tau, N, N))
                 + 1j * jax.random.normal(k_im, (B, tau, N, N))).astype(jnp.complex64)
    params = init_params(k_par, tau)

    fwd = jax.jit(functools.partial(encoder_6k_forward, nr=Nr, k=K))
    x_out, x_skip = fwd(x_complex, params)
    x_out = jax.block_until_ready(x_out)
    x_skip = jax.block_until_ready(x_skip)

    assert x_out.shape == (B, 32, N // 2, N // 2), x_out.shape
    assert x_skip.shape == (B, 16, N // 2, N // 2), x_skip.shape
    assert x_out.dtype == jnp.float32 and x_skip.dtype == jnp.float32
    # AntiRectifier output is non-negative and its halves' difference equals x_skip
    assert bool(jnp.all(x_out >= 0))
    assert bool(jnp.allclose(x_out[:, :16] - x_out[:, 16:], x_skip, atol=1e-5))

    # Compare against the pure-jnp f32 reference of the PyTorch graph.
    ref_x, ref_skip = jax.jit(functools.partial(_reference_forward, nr=Nr, k=K))(
        x_complex, params)
    assert bool(jnp.allclose(x_out, ref_x, rtol=2e-2, atol=5e-3)), \
        float(jnp.max(jnp.abs(x_out - ref_x)))
    assert bool(jnp.allclose(x_skip, ref_skip, rtol=2e-2, atol=5e-3)), \
        float(jnp.max(jnp.abs(x_skip - ref_skip)))

    print("KERNEL_OK")
</pallas_src>

<mosaic_0001>
module attributes {stable_mosaic.version = 11 : i64} {
  func.func @_encoder_kernel(%arg0: i32, %arg1: memref<1x18x36xf32, #tpu.memory_space<vmem>>, %arg2: memref<1x18x36xf32, #tpu.memory_space<vmem>>, %arg3: memref<17x68xf32, #tpu.memory_space<vmem>>, %arg4: memref<4x36x68xf32, #tpu.memory_space<vmem>>, %arg5: memref<2x1x68xf32, #tpu.memory_space<vmem>>, %arg6: memref<8x68x128xf32, #tpu.memory_space<vmem>>, %arg7: memref<2x1x128xf32, #tpu.memory_space<vmem>>, %arg8: memref<8x128x128xf32, #tpu.memory_space<vmem>>, %arg9: memref<4x8x16xf32, #tpu.memory_space<vmem>>, %arg10: memref<1x128xf32, #tpu.memory_space<vmem>>, %arg11: memref<1x8x256xf32, #tpu.memory_space<vmem>>, %arg12: memref<1x8x128xf32, #tpu.memory_space<vmem>>) attributes {dimension_semantics = [#tpu.dimension_semantics<parallel>], iteration_bounds = array<i64: 2>, scalar_prefetch = 0 : i64, scratch_operands = 0 : i64, tpu.core_type = #tpu.core_type<tc>, window_params = [{transform_indices = @transform_0, window_bounds = array<i64: 1, 18, 36>}, {transform_indices = @transform_1, window_bounds = array<i64: 1, 18, 36>}, {pipeline_mode = #tpu.pipeline_mode<synchronous>, transform_indices = @transform_2, window_bounds = array<i64: 17, 68>}, {pipeline_mode = #tpu.pipeline_mode<synchronous>, transform_indices = @transform_3, window_bounds = array<i64: 4, 36, 68>}, {pipeline_mode = #tpu.pipeline_mode<synchronous>, transform_indices = @transform_4, window_bounds = array<i64: 2, 1, 68>}, {pipeline_mode = #tpu.pipeline_mode<synchronous>, transform_indices = @transform_5, window_bounds = array<i64: 8, 68, 128>}, {pipeline_mode = #tpu.pipeline_mode<synchronous>, transform_indices = @transform_6, window_bounds = array<i64: 2, 1, 128>}, {pipeline_mode = #tpu.pipeline_mode<synchronous>, transform_indices = @transform_7, window_bounds = array<i64: 8, 128, 128>}, {pipeline_mode = #tpu.pipeline_mode<synchronous>, transform_indices = @transform_8, window_bounds = array<i64: 4, 8, 16>}, {pipeline_mode = #tpu.pipeline_mode<synchronous>, transform_indices = @transform_9, window_bounds = array<i64: 1, 128>}, {transform_indices = @transform_10, window_bounds = array<i64: 1, 8, 256>}, {transform_indices = @transform_11, window_bounds = array<i64: 1, 8, 128>}]} {
    %c0 = arith.constant 0 : index
    %c0_0 = arith.constant 0 : index
    %0 = vector.load %arg3[%c0, %c0_0] : memref<17x68xf32, #tpu.memory_space<vmem>>, vector<17x68xf32>
    %c0_1 = arith.constant 0 : index
    %c0_2 = arith.constant 0 : index
    %c0_3 = arith.constant 0 : index
    %1 = vector.load %arg1[%c0_1, %c0_2, %c0_3] : memref<1x18x36xf32, #tpu.memory_space<vmem>>, vector<1x18x36xf32>
    %2 = vector.shape_cast %1 : vector<1x18x36xf32> to vector<18x36xf32>
    %3 = vector.extract_strided_slice %2 {offsets = [0, 0], sizes = [17, 36], strides = [1, 1]} : vector<18x36xf32> to vector<17x36xf32>
    %c0_4 = arith.constant 0 : index
    %c0_5 = arith.constant 0 : index
    %c0_6 = arith.constant 0 : index
    %4 = vector.load %arg4[%c0_4, %c0_5, %c0_6] : memref<4x36x68xf32, #tpu.memory_space<vmem>>, vector<1x36x68xf32>
    %5 = vector.shape_cast %4 : vector<1x36x68xf32> to vector<36x68xf32>
    %cst = arith.constant dense<0.000000e+00> : vector<17x68xf32>
    %6 = tpu.matmul %3, %5, %cst {dimension_numbers = #tpu.dot_dimension_numbers<[1], [0], [0], [1], [0, 0, 1, 1], [], []>} : vector<17x36xf32>, vector<36x68xf32>, vector<17x68xf32> -> vector<17x68xf32>
    %7 = vector.extract_strided_slice %2 {offsets = [1, 0], sizes = [17, 36], strides = [1, 1]} : vector<18x36xf32> to vector<17x36xf32>
    %c1 = arith.constant 1 : index
    %c0_7 = arith.constant 0 : index
    %c0_8 = arith.constant 0 : index
    %8 = vector.load %arg4[%c1, %c0_7, %c0_8] : memref<4x36x68xf32, #tpu.memory_space<vmem>>, vector<1x36x68xf32>
    %9 = vector.shape_cast %8 : vector<1x36x68xf32> to vector<36x68xf32>
    %cst_9 = arith.constant dense<0.000000e+00> : vector<17x68xf32>
    %10 = tpu.matmul %7, %9, %cst_9 {dimension_numbers = #tpu.dot_dimension_numbers<[1], [0], [0], [1], [0, 0, 1, 1], [], []>} : vector<17x36xf32>, vector<36x68xf32>, vector<17x68xf32> -> vector<17x68xf32>
    %11 = arith.addf %6, %10 : vector<17x68xf32>
    %c0_10 = arith.constant 0 : index
    %c0_11 = arith.constant 0 : index
    %c0_12 = arith.constant 0 : index
    %12 = vector.load %arg5[%c0_10, %c0_11, %c0_12] : memref<2x1x68xf32, #tpu.memory_space<vmem>>, vector<1x1x68xf32>
    %13 = vector.shape_cast %12 : vector<1x1x68xf32> to vector<1x68xf32>
    %14 = vector.broadcast %13 : vector<1x68xf32> to vector<17x68xf32>
    %15 = arith.addf %11, %14 : vector<17x68xf32>
    %16 = arith.mulf %15, %0 : vector<17x68xf32>
    %cst_13 = arith.constant 0.000000e+00 : f32
    %17 = vector.broadcast %cst_13 : f32 to vector<17x68xf32>
    %18 = arith.maximumf %16, %17 : vector<17x68xf32>
    %cst_14 = arith.constant 0.000000e+00 : f32
    %19 = vector.broadcast %cst_14 : f32 to vector<17x68xf32>
    %20 = arith.subf %19, %16 : vector<17x68xf32>
    %cst_15 = arith.constant 0.000000e+00 : f32
    %21 = vector.broadcast %cst_15 : f32 to vector<17x68xf32>
    %22 = arith.maximumf %20, %21 : vector<17x68xf32>
    %23 = vector.extract_strided_slice %18 {offsets = [0, 0], sizes = [16, 68], strides = [1, 1]} : vector<17x68xf32> to vector<16x68xf32>
    %c0_16 = arith.constant 0 : index
    %c0_17 = arith.constant 0 : index
    %c0_18 = arith.constant 0 : index
    %24 = vector.load %arg6[%c0_16, %c0_17, %c0_18] : memref<8x68x128xf32, #tpu.memory_space<vmem>>, vector<1x68x128xf32>
    %25 = vector.shape_cast %24 : vector<1x68x128xf32> to vector<68x128xf32>
    %cst_19 = arith.constant dense<0.000000e+00> : vector<16x128xf32>
    %26 = tpu.matmul %23, %25, %cst_19 {dimension_numbers = #tpu.dot_dimension_numbers<[1], [0], [0], [1], [0, 0, 1, 1], [], []>} : vector<16x68xf32>, vector<68x128xf32>, vector<16x128xf32> -> vector<16x128xf32>
    %27 = vector.extract_strided_slice %22 {offsets = [0, 0], sizes = [16, 68], strides = [1, 1]} : vector<17x68xf32> to vector<16x68xf32>
    %c1_20 = arith.constant 1 : index
    %c0_21 = arith.constant 0 : index
    %c0_22 = arith.constant 0 : index
    %28 = vector.load %arg6[%c1_20, %c0_21, %c0_22] : memref<8x68x128xf32, #tpu.memory_space<vmem>>, vector<1x68x128xf32>
    %29 = vector.shape_cast %28 : vector<1x68x128xf32> to vector<68x128xf32>
    %cst_23 = arith.constant dense<0.000000e+00> : vector<16x128xf32>
    %30 = tpu.matmul %27, %29, %cst_23 {dimension_numbers = #tpu.dot_dimension_numbers<[1], [0], [0], [1], [0, 0, 1, 1], [], []>} : vector<16x68xf32>, vector<68x128xf32>, vector<16x128xf32> -> vector<16x128xf32>
    %31 = arith.addf %26, %30 : vector<16x128xf32>
    %32 = vector.extract_strided_slice %18 {offsets = [1, 0], sizes = [16, 68], strides = [1, 1]} : vector<17x68xf32> to vector<16x68xf32>
    %c2 = arith.constant 2 : index
    %c0_24 = arith.constant 0 : index
    %c0_25 = arith.constant 0 : index
    %33 = vector.load %arg6[%c2, %c0_24, %c0_25] : memref<8x68x128xf32, #tpu.memory_space<vmem>>, vector<1x68x128xf32>
    %34 = vector.shape_cast %33 : vector<1x68x128xf32> to vector<68x128xf32>
    %cst_26 = arith.constant dense<0.000000e+00> : vector<16x128xf32>
    %35 = tpu.matmul %32, %34, %cst_26 {dimension_numbers = #tpu.dot_dimension_numbers<[1], [0], [0], [1], [0, 0, 1, 1], [], []>} : vector<16x68xf32>, vector<68x128xf32>, vector<16x128xf32> -> vector<16x128xf32>
    %36 = arith.addf %31, %35 : vector<16x128xf32>
    %37 = vector.extract_strided_slice %22 {offsets = [1, 0], sizes = [16, 68], strides = [1, 1]} : vector<17x68xf32> to vector<16x68xf32>
    %c3 = arith.constant 3 : index
    %c0_27 = arith.constant 0 : index
    %c0_28 = arith.constant 0 : index
    %38 = vector.load %arg6[%c3, %c0_27, %c0_28] : memref<8x68x128xf32, #tpu.memory_space<vmem>>, vector<1x68x128xf32>
    %39 = vector.shape_cast %38 : vector<1x68x128xf32> to vector<68x128xf32>
    %cst_29 = arith.constant dense<0.000000e+00> : vector<16x128xf32>
    %40 = tpu.matmul %37, %39, %cst_29 {dimension_numbers = #tpu.dot_dimension_numbers<[1], [0], [0], [1], [0, 0, 1, 1], [], []>} : vector<16x68xf32>, vector<68x128xf32>, vector<16x128xf32> -> vector<16x128xf32>
    %41 = arith.addf %36, %40 : vector<16x128xf32>
    %c0_30 = arith.constant 0 : index
    %c0_31 = arith.constant 0 : index
    %c0_32 = arith.constant 0 : index
    %42 = vector.load %arg7[%c0_30, %c0_31, %c0_32] : memref<2x1x128xf32, #tpu.memory_space<vmem>>, vector<1x1x128xf32>
    %43 = vector.shape_cast %42 : vector<1x1x128xf32> to vector<1x128xf32>
    %44 = vector.broadcast %43 : vector<1x128xf32> to vector<16x128xf32>
    %45 = arith.addf %41, %44 : vector<16x128xf32>
    %c0_33 = arith.constant 0 : index
    %c0_34 = arith.constant 0 : index
    %c0_35 = arith.constant 0 : index
    %46 = vector.load %arg2[%c0_33, %c0_34, %c0_35] : memref<1x18x36xf32, #tpu.memory_space<vmem>>, vector<1x18x36xf32>
    %47 = vector.shape_cast %46 : vector<1x18x36xf32> to vector<18x36xf32>
    %48 = vector.extract_strided_slice %47 {offsets = [0, 0], sizes = [17, 36], strides = [1, 1]} : vector<18x36xf32> to vector<17x36xf32>
    %c2_36 = arith.constant 2 : index
    %c0_37 = arith.constant 0 : index
    %c0_38 = arith.constant 0 : index
    %49 = vector.load %arg4[%c2_36, %c0_37, %c0_38] : memref<4x36x68xf32, #tpu.memory_space<vmem>>, vector<1x36x68xf32>
    %50 = vector.shape_cast %49 : vector<1x36x68xf32> to vector<36x68xf32>
    %cst_39 = arith.constant dense<0.000000e+00> : vector<17x68xf32>
    %51 = tpu.matmul %48, %50, %cst_39 {dimension_numbers = #tpu.dot_dimension_numbers<[1], [0], [0], [1], [0, 0, 1, 1], [], []>} : vector<17x36xf32>, vector<36x68xf32>, vector<17x68xf32> -> vector<17x68xf32>
    %52 = vector.extract_strided_slice %47 {offsets = [1, 0], sizes = [17, 36], strides = [1, 1]} : vector<18x36xf32> to vector<17x36xf32>
    %c3_40 = arith.constant 3 : index
    %c0_41 = arith.constant 0 : index
    %c0_42 = arith.constant 0 : index
    %53 = vector.load %arg4[%c3_40, %c0_41, %c0_42] : memref<4x36x68xf32, #tpu.memory_space<vmem>>, vector<1x36x68xf32>
    %54 = vector.shape_cast %53 : vector<1x36x68xf32> to vector<36x68xf32>
    %cst_43 = arith.constant dense<0.000000e+00> : vector<17x68xf32>
    %55 = tpu.matmul %52, %54, %cst_43 {dimension_numbers = #tpu.dot_dimension_numbers<[1], [0], [0], [1], [0, 0, 1, 1], [], []>} : vector<17x36xf32>, vector<36x68xf32>, vector<17x68xf32> -> vector<17x68xf32>
    %56 = arith.addf %51, %55 : vector<17x68xf32>
    %c1_44 = arith.constant 1 : index
    %c0_45 = arith.constant 0 : index
    %c0_46 = arith.constant 0 : index
    %57 = vector.load %arg5[%c1_44, %c0_45, %c0_46] : memref<2x1x68xf32, #tpu.memory_space<vmem>>, vector<1x1x68xf32>
    %58 = vector.shape_cast %57 : vector<1x1x68xf32> to vector<1x68xf32>
    %59 = vector.broadcast %58 : vector<1x68xf32> to vector<17x68xf32>
    %60 = arith.addf %56, %59 : vector<17x68xf32>
    %61 = arith.mulf %60, %0 : vector<17x68xf32>
    %cst_47 = arith.constant 0.000000e+00 : f32
    %62 = vector.broadcast %cst_47 : f32 to vector<17x68xf32>
    %63 = arith.maximumf %61, %62 : vector<17x68xf32>
    %cst_48 = arith.constant 0.000000e+00 : f32
    %64 = vector.broadcast %cst_48 : f32 to vector<17x68xf32>
    %65 = arith.subf %64, %61 : vector<17x68xf32>
    %cst_49 = arith.constant 0.000000e+00 : f32
    %66 = vector.broadcast %cst_49 : f32 to vector<17x68xf32>
    %67 = arith.maximumf %65, %66 : vector<17x68xf32>
    %68 = vector.extract_strided_slice %63 {offsets = [0, 0], sizes = [16, 68], strides = [1, 1]} : vector<17x68xf32> to vector<16x68xf32>
    %c4 = arith.constant 4 : index
    %c0_50 = arith.constant 0 : index
    %c0_51 = arith.constant 0 : index
    %69 = vector.load %arg6[%c4, %c0_50, %c0_51] : memref<8x68x128xf32, #tpu.memory_space<vmem>>, vector<1x68x128xf32>
    %70 = vector.shape_cast %69 : vector<1x68x128xf32> to vector<68x128xf32>
    %cst_52 = arith.constant dense<0.000000e+00> : vector<16x128xf32>
    %71 = tpu.matmul %68, %70, %cst_52 {dimension_numbers = #tpu.dot_dimension_numbers<[1], [0], [0], [1], [0, 0, 1, 1], [], []>} : vector<16x68xf32>, vector<68x128xf32>, vector<16x128xf32> -> vector<16x128xf32>
    %72 = vector.extract_strided_slice %67 {offsets = [0, 0], sizes = [16, 68], strides = [1, 1]} : vector<17x68xf32> to vector<16x68xf32>
    %c5 = arith.constant 5 : index
    %c0_53 = arith.constant 0 : index
    %c0_54 = arith.constant 0 : index
    %73 = vector.load %arg6[%c5, %c0_53, %c0_54] : memref<8x68x128xf32, #tpu.memory_space<vmem>>, vector<1x68x128xf32>
    %74 = vector.shape_cast %73 : vector<1x68x128xf32> to vector<68x128xf32>
    %cst_55 = arith.constant dense<0.000000e+00> : vector<16x128xf32>
    %75 = tpu.matmul %72, %74, %cst_55 {dimension_numbers = #tpu.dot_dimension_numbers<[1], [0], [0], [1], [0, 0, 1, 1], [], []>} : vector<16x68xf32>, vector<68x128xf32>, vector<16x128xf32> -> vector<16x128xf32>
    %76 = arith.addf %71, %75 : vector<16x128xf32>
    %77 = vector.extract_strided_slice %63 {offsets = [1, 0], sizes = [16, 68], strides = [1, 1]} : vector<17x68xf32> to vector<16x68xf32>
    %c6 = arith.constant 6 : index
    %c0_56 = arith.constant 0 : index
    %c0_57 = arith.constant 0 : index
    %78 = vector.load %arg6[%c6, %c0_56, %c0_57] : memref<8x68x128xf32, #tpu.memory_space<vmem>>, vector<1x68x128xf32>
    %79 = vector.shape_cast %78 : vector<1x68x128xf32> to vector<68x128xf32>
    %cst_58 = arith.constant dense<0.000000e+00> : vector<16x128xf32>
    %80 = tpu.matmul %77, %79, %cst_58 {dimension_numbers = #tpu.dot_dimension_numbers<[1], [0], [0], [1], [0, 0, 1, 1], [], []>} : vector<16x68xf32>, vector<68x128xf32>, vector<16x128xf32> -> vector<16x128xf32>
    %81 = arith.addf %76, %80 : vector<16x128xf32>
    %82 = vector.extract_strided_slice %67 {offsets = [1, 0], sizes = [16, 68], strides = [1, 1]} : vector<17x68xf32> to vector<16x68xf32>
    %c7 = arith.constant 7 : index
    %c0_59 = arith.constant 0 : index
    %c0_60 = arith.constant 0 : index
    %83 = vector.load %arg6[%c7, %c0_59, %c0_60] : memref<8x68x128xf32, #tpu.memory_space<vmem>>, vector<1x68x128xf32>
    %84 = vector.shape_cast %83 : vector<1x68x128xf32> to vector<68x128xf32>
    %cst_61 = arith.constant dense<0.000000e+00> : vector<16x128xf32>
    %85 = tpu.matmul %82, %84, %cst_61 {dimension_numbers = #tpu.dot_dimension_numbers<[1], [0], [0], [1], [0, 0, 1, 1], [], []>} : vector<16x68xf32>, vector<68x128xf32>, vector<16x128xf32> -> vector<16x128xf32>
    %86 = arith.addf %81, %85 : vector<16x128xf32>
    %c1_62 = arith.constant 1 : index
    %c0_63 = arith.constant 0 : index
    %c0_64 = arith.constant 0 : index
    %87 = vector.load %arg7[%c1_62, %c0_63, %c0_64] : memref<2x1x128xf32, #tpu.memory_space<vmem>>, vector<1x1x128xf32>
    %88 = vector.shape_cast %87 : vector<1x1x128xf32> to vector<1x128xf32>
    %89 = vector.broadcast %88 : vector<1x128xf32> to vector<16x128xf32>
    %90 = arith.addf %86, %89 : vector<16x128xf32>
    %c0_65 = arith.constant 0 : index
    %c0_66 = arith.constant 0 : index
    %91 = vector.load %arg10[%c0_65, %c0_66] : memref<1x128xf32, #tpu.memory_space<vmem>>, vector<1x128xf32>
    %c0_67 = arith.constant 0 : index
    %c0_68 = arith.constant 0 : index
    %c0_69 = arith.constant 0 : index
    %92 = vector.load %arg9[%c0_67, %c0_68, %c0_69] : memref<4x8x16xf32, #tpu.memory_space<vmem>>, vector<1x8x16xf32>
    %93 = vector.shape_cast %92 : vector<1x8x16xf32> to vector<8x16xf32>
    %cst_70 = arith.constant dense<0.000000e+00> : vector<8x128xf32>
    %94 = tpu.matmul %93, %45, %cst_70 {dimension_numbers = #tpu.dot_dimension_numbers<[1], [0], [0], [1], [0, 0, 1, 1], [], []>} : vector<8x16xf32>, vector<16x128xf32>, vector<8x128xf32> -> vector<8x128xf32>
    %cst_71 = arith.constant 0.000000e+00 : f32
    %95 = vector.broadcast %cst_71 : f32 to vector<8x128xf32>
    %96 = arith.maximumf %94, %95 : vector<8x128xf32>
    %c0_72 = arith.constant 0 : index
    %c0_73 = arith.constant 0 : index
    %c0_74 = arith.constant 0 : index
    %97 = vector.load %arg8[%c0_72, %c0_73, %c0_74] : memref<8x128x128xf32, #tpu.memory_space<vmem>>, vector<1x128x128xf32>
    %98 = vector.shape_cast %97 : vector<1x128x128xf32> to vector<128x128xf32>
    %cst_75 = arith.constant dense<0.000000e+00> : vector<8x128xf32>
    %99 = tpu.matmul %96, %98, %cst_75 {dimension_numbers = #tpu.dot_dimension_numbers<[1], [0], [0], [1], [0, 0, 1, 1], [], []>} : vector<8x128xf32>, vector<128x128xf32>, vector<8x128xf32> -> vector<8x128xf32>
    %cst_76 = arith.constant 0.000000e+00 : f32
    %100 = vector.broadcast %cst_76 : f32 to vector<8x128xf32>
    %101 = arith.subf %100, %94 : vector<8x128xf32>
    %cst_77 = arith.constant 0.000000e+00 : f32
    %102 = vector.broadcast %cst_77 : f32 to vector<8x128xf32>
    %103 = arith.maximumf %101, %102 : vector<8x128xf32>
    %c1_78 = arith.constant 1 : index
    %c0_79 = arith.constant 0 : index
    %c0_80 = arith.constant 0 : index
    %104 = vector.load %arg8[%c1_78, %c0_79, %c0_80] : memref<8x128x128xf32, #tpu.memory_space<vmem>>, vector<1x128x128xf32>
    %105 = vector.shape_cast %104 : vector<1x128x128xf32> to vector<128x128xf32>
    %cst_81 = arith.constant dense<0.000000e+00> : vector<8x128xf32>
    %106 = tpu.matmul %103, %105, %cst_81 {dimension_numbers = #tpu.dot_dimension_numbers<[1], [0], [0], [1], [0, 0, 1, 1], [], []>} : vector<8x128xf32>, vector<128x128xf32>, vector<8x128xf32> -> vector<8x128xf32>
    %107 = arith.addf %99, %106 : vector<8x128xf32>
    %108 = vector.broadcast %91 : vector<1x128xf32> to vector<8x128xf32>
    %109 = arith.addf %108, %107 : vector<8x128xf32>
    %c1_82 = arith.constant 1 : index
    %c0_83 = arith.constant 0 : index
    %c0_84 = arith.constant 0 : index
    %110 = vector.load %arg9[%c1_82, %c0_83, %c0_84] : memref<4x8x16xf32, #tpu.memory_space<vmem>>, vector<1x8x16xf32>
    %111 = vector.shape_cast %110 : vector<1x8x16xf32> to vector<8x16xf32>
    %cst_85 = arith.constant dense<0.000000e+00> : vector<8x128xf32>
    %112 = tpu.matmul %111, %45, %cst_85 {dimension_numbers = #tpu.dot_dimension_numbers<[1], [0], [0], [1], [0, 0, 1, 1], [], []>} : vector<8x16xf32>, vector<16x128xf32>, vector<8x128xf32> -> vector<8x128xf32>
    %cst_86 = arith.constant 0.000000e+00 : f32
    %113 = vector.broadcast %cst_86 : f32 to vector<8x128xf32>
    %114 = arith.maximumf %112, %113 : vector<8x128xf32>
    %c2_87 = arith.constant 2 : index
    %c0_88 = arith.constant 0 : index
    %c0_89 = arith.constant 0 : index
    %115 = vector.load %arg8[%c2_87, %c0_88, %c0_89] : memref<8x128x128xf32, #tpu.memory_space<vmem>>, vector<1x128x128xf32>
    %116 = vector.shape_cast %115 : vector<1x128x128xf32> to vector<128x128xf32>
    %cst_90 = arith.constant dense<0.000000e+00> : vector<8x128xf32>
    %117 = tpu.matmul %114, %116, %cst_90 {dimension_numbers = #tpu.dot_dimension_numbers<[1], [0], [0], [1], [0, 0, 1, 1], [], []>} : vector<8x128xf32>, vector<128x128xf32>, vector<8x128xf32> -> vector<8x128xf32>
    %cst_91 = arith.constant 0.000000e+00 : f32
    %118 = vector.broadcast %cst_91 : f32 to vector<8x128xf32>
    %119 = arith.subf %118, %112 : vector<8x128xf32>
    %cst_92 = arith.constant 0.000000e+00 : f32
    %120 = vector.broadcast %cst_92 : f32 to vector<8x128xf32>
    %121 = arith.maximumf %119, %120 : vector<8x128xf32>
    %c3_93 = arith.constant 3 : index
    %c0_94 = arith.constant 0 : index
    %c0_95 = arith.constant 0 : index
    %122 = vector.load %arg8[%c3_93, %c0_94, %c0_95] : memref<8x128x128xf32, #tpu.memory_space<vmem>>, vector<1x128x128xf32>
    %123 = vector.shape_cast %122 : vector<1x128x128xf32> to vector<128x128xf32>
    %cst_96 = arith.constant dense<0.000000e+00> : vector<8x128xf32>
    %124 = tpu.matmul %121, %123, %cst_96 {dimension_numbers = #tpu.dot_dimension_numbers<[1], [0], [0], [1], [0, 0, 1, 1], [], []>} : vector<8x128xf32>, vector<128x128xf32>, vector<8x128xf32> -> vector<8x128xf32>
    %125 = arith.addf %117, %124 : vector<8x128xf32>
    %126 = arith.addf %109, %125 : vector<8x128xf32>
    %c2_97 = arith.constant 2 : index
    %c0_98 = arith.constant 0 : index
    %c0_99 = arith.constant 0 : index
    %127 = vector.load %arg9[%c2_97, %c0_98, %c0_99] : memref<4x8x16xf32, #tpu.memory_space<vmem>>, vector<1x8x16xf32>
    %128 = vector.shape_cast %127 : vector<1x8x16xf32> to vector<8x16xf32>
    %cst_100 = arith.constant dense<0.000000e+00> : vector<8x128xf32>
    %129 = tpu.matmul %128, %90, %cst_100 {dimension_numbers = #tpu.dot_dimension_numbers<[1], [0], [0], [1], [0, 0, 1, 1], [], []>} : vector<8x16xf32>, vector<16x128xf32>, vector<8x128xf32> -> vector<8x128xf32>
    %cst_101 = arith.constant 0.000000e+00 : f32
    %130 = vector.broadcast %cst_101 : f32 to vector<8x128xf32>
    %131 = arith.maximumf %129, %130 : vector<8x128xf32>
    %c4_102 = arith.constant 4 : index
    %c0_103 = arith.constant 0 : index
    %c0_104 = arith.constant 0 : index
    %132 = vector.load %arg8[%c4_102, %c0_103, %c0_104] : memref<8x128x128xf32, #tpu.memory_space<vmem>>, vector<1x128x128xf32>
    %133 = vector.shape_cast %132 : vector<1x128x128xf32> to vector<128x128xf32>
    %cst_105 = arith.constant dense<0.000000e+00> : vector<8x128xf32>
    %134 = tpu.matmul %131, %133, %cst_105 {dimension_numbers = #tpu.dot_dimension_numbers<[1], [0], [0], [1], [0, 0, 1, 1], [], []>} : vector<8x128xf32>, vector<128x128xf32>, vector<8x128xf32> -> vector<8x128xf32>
    %cst_106 = arith.constant 0.000000e+00 : f32
    %135 = vector.broadcast %cst_106 : f32 to vector<8x128xf32>
    %136 = arith.subf %135, %129 : vector<8x128xf32>
    %cst_107 = arith.constant 0.000000e+00 : f32
    %137 = vector.broadcast %cst_107 : f32 to vector<8x128xf32>
    %138 = arith.maximumf %136, %137 : vector<8x128xf32>
    %c5_108 = arith.constant 5 : index
    %c0_109 = arith.constant 0 : index
    %c0_110 = arith.constant 0 : index
    %139 = vector.load %arg8[%c5_108, %c0_109, %c0_110] : memref<8x128x128xf32, #tpu.memory_space<vmem>>, vector<1x128x128xf32>
    %140 = vector.shape_cast %139 : vector<1x128x128xf32> to vector<128x128xf32>
    %cst_111 = arith.constant dense<0.000000e+00> : vector<8x128xf32>
    %141 = tpu.matmul %138, %140, %cst_111 {dimension_numbers = #tpu.dot_dimension_numbers<[1], [0], [0], [1], [0, 0, 1, 1], [], []>} : vector<8x128xf32>, vector<128x128xf32>, vector<8x128xf32> -> vector<8x128xf32>
    %142 = arith.addf %134, %141 : vector<8x128xf32>
    %143 = arith.addf %126, %142 : vector<8x128xf32>
    %c3_112 = arith.constant 3 : index
    %c0_113 = arith.constant 0 : index
    %c0_114 = arith.constant 0 : index
    %144 = vector.load %arg9[%c3_112, %c0_113, %c0_114] : memref<4x8x16xf32, #tpu.memory_space<vmem>>, vector<1x8x16xf32>
    %145 = vector.shape_cast %144 : vector<1x8x16xf32> to vector<8x16xf32>
    %cst_115 = arith.constant dense<0.000000e+00> : vector<8x128xf32>
    %146 = tpu.matmul %145, %90, %cst_115 {dimension_numbers = #tpu.dot_dimension_numbers<[1], [0], [0], [1], [0, 0, 1, 1], [], []>} : vector<8x16xf32>, vector<16x128xf32>, vector<8x128xf32> -> vector<8x128xf32>
    %cst_116 = arith.constant 0.000000e+00 : f32
    %147 = vector.broadcast %cst_116 : f32 to vector<8x128xf32>
    %148 = arith.maximumf %146, %147 : vector<8x128xf32>
    %c6_117 = arith.constant 6 : index
    %c0_118 = arith.constant 0 : index
    %c0_119 = arith.constant 0 : index
    %149 = vector.load %arg8[%c6_117, %c0_118, %c0_119] : memref<8x128x128xf32, #tpu.memory_space<vmem>>, vector<1x128x128xf32>
    %150 = vector.shape_cast %149 : vector<1x128x128xf32> to vector<128x128xf32>
    %cst_120 = arith.constant dense<0.000000e+00> : vector<8x128xf32>
    %151 = tpu.matmul %148, %150, %cst_120 {dimension_numbers = #tpu.dot_dimension_numbers<[1], [0], [0], [1], [0, 0, 1, 1], [], []>} : vector<8x128xf32>, vector<128x128xf32>, vector<8x128xf32> -> vector<8x128xf32>
    %cst_121 = arith.constant 0.000000e+00 : f32
    %152 = vector.broadcast %cst_121 : f32 to vector<8x128xf32>
    %153 = arith.subf %152, %146 : vector<8x128xf32>
    %cst_122 = arith.constant 0.000000e+00 : f32
    %154 = vector.broadcast %cst_122 : f32 to vector<8x128xf32>
    %155 = arith.maximumf %153, %154 : vector<8x128xf32>
    %c7_123 = arith.constant 7 : index
    %c0_124 = arith.constant 0 : index
    %c0_125 = arith.constant 0 : index
    %156 = vector.load %arg8[%c7_123, %c0_124, %c0_125] : memref<8x128x128xf32, #tpu.memory_space<vmem>>, vector<1x128x128xf32>
    %157 = vector.shape_cast %156 : vector<1x128x128xf32> to vector<128x128xf32>
    %cst_126 = arith.constant dense<0.000000e+00> : vector<8x128xf32>
    %158 = tpu.matmul %155, %157, %cst_126 {dimension_numbers = #tpu.dot_dimension_numbers<[1], [0], [0], [1], [0, 0, 1, 1], [], []>} : vector<8x128xf32>, vector<128x128xf32>, vector<8x128xf32> -> vector<8x128xf32>
    %159 = arith.addf %151, %158 : vector<8x128xf32>
    %160 = arith.addf %143, %159 : vector<8x128xf32>
    %c0_127 = arith.constant 0 : index
    %c0_128 = arith.constant 0 : index
    %c0_129 = arith.constant 0 : index
    %161 = vector.load %arg12[%c0_127, %c0_128, %c0_129] : memref<1x8x128xf32, #tpu.memory_space<vmem>>, vector<1x8x128xf32>
    %162 = vector.shape_cast %161 : vector<1x8x128xf32> to vector<8x128xf32>
    %163 = vector.shape_cast %160 : vector<8x128xf32> to vector<1x8x128xf32>
    tpu.vector_store %arg12[%c0_127, %c0_128, %c0_129], %163 {strides = array<i32>} : memref<1x8x128xf32, #tpu.memory_space<vmem>>, vector<1x8x128xf32>,
    %cst_130 = arith.constant 0.000000e+00 : f32
    %164 = vector.broadcast %cst_130 : f32 to vector<8x128xf32>
    %165 = arith.maximumf %160, %164 : vector<8x128xf32>
    %c0_131 = arith.constant 0 : index
    %c0_132 = arith.constant 0 : index
    %c0_133 = arith.constant 0 : index
    %166 = vector.load %arg11[%c0_131, %c0_132, %c0_133] : memref<1x8x256xf32, #tpu.memory_space<vmem>>, vector<1x8x128xf32>
    %167 = vector.shape_cast %166 : vector<1x8x128xf32> to vector<8x128xf32>
    %168 = vector.shape_cast %165 : vector<8x128xf32> to vector<1x8x128xf32>
    tpu.vector_store %arg11[%c0_131, %c0_132, %c0_133], %168 {strides = array<i32>} : memref<1x8x256xf32, #tpu.memory_space<vmem>>, vector<1x8x128xf32>,
    %cst_134 = arith.constant 0.000000e+00 : f32
    %169 = vector.broadcast %cst_134 : f32 to vector<8x128xf32>
    %170 = arith.subf %169, %160 : vector<8x128xf32>
    %cst_135 = arith.constant 0.000000e+00 : f32
    %171 = vector.broadcast %cst_135 : f32 to vector<8x128xf32>
    %172 = arith.maximumf %170, %171 : vector<8x128xf32>
    %c0_136 = arith.constant 0 : index
    %c0_137 = arith.constant 0 : index
    %c128 = arith.constant 128 : index
    %173 = vector.load %arg11[%c0_136, %c0_137, %c128] : memref<1x8x256xf32, #tpu.memory_space<vmem>>, vector<1x8x128xf32>
    %174 = vector.shape_cast %173 : vector<1x8x128xf32> to vector<8x128xf32>
    %175 = vector.shape_cast %172 : vector<8x128xf32> to vector<1x8x128xf32>
    tpu.vector_store %arg11[%c0_136, %c0_137, %c128], %175 {strides = array<i32>} : memref<1x8x256xf32, #tpu.memory_space<vmem>>, vector<1x8x128xf32>,
    return
  }
  func.func @transform_0(%arg0: i32) -> (i32, i32, i32) {
    %c0_i32 = arith.constant 0 : i32
    %c0_i32_0 = arith.constant 0 : i32
    %c0_i32_1 = arith.constant 0 : i32
    return %arg0, %c0_i32, %c0_i32_0 : i32, i32, i32
  }
  func.func @transform_1(%arg0: i32) -> (i32, i32, i32) {
    %c0_i32 = arith.constant 0 : i32
    %c0_i32_0 = arith.constant 0 : i32
    %c0_i32_1 = arith.constant 0 : i32
    return %arg0, %c0_i32, %c0_i32_0 : i32, i32, i32
  }
  func.func @transform_2(%arg0: i32) -> (i32, i32) {
    %c0_i32 = arith.constant 0 : i32
    %c0_i32_0 = arith.constant 0 : i32
    %c0_i32_1 = arith.constant 0 : i32
    return %c0_i32, %c0_i32_0 : i32, i32
  }
  func.func @transform_3(%arg0: i32) -> (i32, i32, i32) {
    %c0_i32 = arith.constant 0 : i32
    %c0_i32_0 = arith.constant 0 : i32
    %c0_i32_1 = arith.constant 0 : i32
    %c0_i32_2 = arith.constant 0 : i32
    return %c0_i32, %c0_i32_0, %c0_i32_1 : i32, i32, i32
  }
  func.func @transform_4(%arg0: i32) -> (i32, i32, i32) {
    %c0_i32 = arith.constant 0 : i32
    %c0_i32_0 = arith.constant 0 : i32
    %c0_i32_1 = arith.constant 0 : i32
    %c0_i32_2 = arith.constant 0 : i32
    return %c0_i32, %c0_i32_0, %c0_i32_1 : i32, i32, i32
  }
  func.func @transform_5(%arg0: i32) -> (i32, i32, i32) {
    %c0_i32 = arith.constant 0 : i32
    %c0_i32_0 = arith.constant 0 : i32
    %c0_i32_1 = arith.constant 0 : i32
    %c0_i32_2 = arith.constant 0 : i32
    return %c0_i32, %c0_i32_0, %c0_i32_1 : i32, i32, i32
  }
  func.func @transform_6(%arg0: i32) -> (i32, i32, i32) {
    %c0_i32 = arith.constant 0 : i32
    %c0_i32_0 = arith.constant 0 : i32
    %c0_i32_1 = arith.constant 0 : i32
    %c0_i32_2 = arith.constant 0 : i32
    return %c0_i32, %c0_i32_0, %c0_i32_1 : i32, i32, i32
  }
  func.func @transform_7(%arg0: i32) -> (i32, i32, i32) {
    %c0_i32 = arith.constant 0 : i32
    %c0_i32_0 = arith.constant 0 : i32
    %c0_i32_1 = arith.constant 0 : i32
    %c0_i32_2 = arith.constant 0 : i32
    return %c0_i32, %c0_i32_0, %c0_i32_1 : i32, i32, i32
  }
  func.func @transform_8(%arg0: i32) -> (i32, i32, i32) {
    %c0_i32 = arith.constant 0 : i32
    %c0_i32_0 = arith.constant 0 : i32
    %c0_i32_1 = arith.constant 0 : i32
    %c0_i32_2 = arith.constant 0 : i32
    return %c0_i32, %c0_i32_0, %c0_i32_1 : i32, i32, i32
  }
  func.func @transform_9(%arg0: i32) -> (i32, i32) {
    %c0_i32 = arith.constant 0 : i32
    %c0_i32_0 = arith.constant 0 : i32
    %c0_i32_1 = arith.constant 0 : i32
    return %c0_i32, %c0_i32_0 : i32, i32
  }
  func.func @transform_10(%arg0: i32) -> (i32, i32, i32) {
    %c0_i32 = arith.constant 0 : i32
    %c0_i32_0 = arith.constant 0 : i32
    %c0_i32_1 = arith.constant 0 : i32
    return %arg0, %c0_i32, %c0_i32_0 : i32, i32, i32
  }
  func.func @transform_11(%arg0: i32) -> (i32, i32, i32) {
    %c0_i32 = arith.constant 0 : i32
    %c0_i32_0 = arith.constant 0 : i32
    %c0_i32_1 = arith.constant 0 : i32
    return %arg0, %c0_i32, %c0_i32_0 : i32, i32, i32
  }
}

</mosaic_0001>

<llo_original>
// kernel: custom-call.1
$region0: #{custom-call.1}
  %s0 = inlined_call_operand.hbm [shape: c64[2,1,16,16], index: 0, kind: input, shape index: {}]
  %s1 = inlined_call_operand.vmem [shape: f32[2,1,16,16], index: 1, kind: output, shape index: {}]
  %s2 = scalar_lea.hbm %s0, 512
  $region1: #{custom-call.1} parent=0
    #allocation0 [shape = 's32[1]{0}', space=sflag, size = 0x4, scoped, tag = 'scoped memory for custom-call.1']
    %3 = vsyncpa [#allocation0], 0
    %s4 = sshll.u32 %s1, 4
    %s5 = int_to_ptr.vmem [resolvable:$true] %s4
    %7 = dma.hbm_to_vmem [thread:$0]  %s2, 512, %s5, [#allocation0]
    %8 = dma.done [#allocation0], 512
    %9 = vsyncpa [#allocation0], 1

// kernel: custom-call
$region0: #{custom-call}
  %s0 = inlined_call_operand.hbm [shape: c64[2,1,16,16], index: 0, kind: input, shape index: {}]
  %s1 = inlined_call_operand.vmem [shape: f32[2,1,16,16], index: 1, kind: output, shape index: {}]
  $region1: #{custom-call} parent=0
    #allocation0 [shape = 's32[1]{0}', space=sflag, size = 0x4, scoped, tag = 'scoped memory for custom-call']
    %2 = vsyncpa [#allocation0], 0
    %s3 = sshll.u32 %s1, 4
    %s4 = int_to_ptr.vmem [resolvable:$true] %s3
    %6 = dma.hbm_to_vmem [thread:$0]  %s0, 512, %s4, [#allocation0]
    %7 = dma.done [#allocation0], 512
    %8 = vsyncpa [#allocation0], 1

// kernel: encoder_6k_forward.1
$region0: #{encoder_6k_forward.1}
  #allocation0 [shape = 'u32[]', space=smem, size = 0x4, offset = 0x4, fixed_abs, tag = 'smem constant byte address 0x4 - core index']
  #allocation1 [shape = 'u32[144,128]{1,0:T(1,128)}', space=vmem, size = 0x12000, scoped, tag = 'internal scratch']
  %s0 = inlined_call_operand.vmem [shape: f32[2,18,36], index: 0, kind: input, shape index: {}]
  %s1 = inlined_call_operand.vmem [shape: f32[2,18,36], index: 1, kind: input, shape index: {}]
  %s2 = inlined_call_operand.vmem [shape: f32[17,68], index: 2, kind: input, shape index: {}]
  %s3 = inlined_call_operand.vmem [shape: f32[4,36,68], index: 3, kind: input, shape index: {}]
  %s4 = inlined_call_operand.vmem [shape: f32[2,1,68], index: 4, kind: input, shape index: {}]
  %s5 = inlined_call_operand.vmem [shape: f32[8,68,128], index: 5, kind: input, shape index: {}]
  %s6 = inlined_call_operand.vmem [shape: f32[2,1,128], index: 6, kind: input, shape index: {}]
  %s7 = inlined_call_operand.vmem [shape: f32[8,128,128], index: 7, kind: input, shape index: {}]
  %s8 = inlined_call_operand.vmem [shape: f32[4,8,16], index: 8, kind: input, shape index: {}]
  %s9 = inlined_call_operand.vmem [shape: f32[1,128], index: 9, kind: input, shape index: {}]
  %s10 = inlined_call_operand.vmem [shape: f32[2,8,256], index: 10, kind: output, shape index: {0}]
  %s11 = inlined_call_operand.vmem [shape: f32[2,8,128], index: 11, kind: output, shape index: {1}]
  %12 = xla_tuple %s10, %s11
  %s13 = sld [smem:[#allocation0]]
  $region81: #{encoder_6k_forward.1} parent=0
    _
  %s15 = ssub.s32 1, %s13
  %s16 = scalar_select 0, %s15, %s13
  loop: start=0, step=1, limit=4
  $region2: #{encoder_6k_forward.1} parent=0 // loop_pre_header
    _
  $region3: #{encoder_6k_forward.1} parent=0 // loop_header
    %s18 = sphi 0, %s22
    %p19 = scmp.ge.s32.totalorder %s18, 4
    %s28 = sphi 0, %s30
    %s31 = sphi 0, %s28
    %s32 = sphi 0, %s31
    %s48 = sphi 0, %s32
    %s54 = sphi 0, %s56
    %s57 = sphi 0, %s54
    %s58 = sphi 0, %s57
    %s74 = sphi 0, %s58
    %s78 = sphi 0, %s78
    %s80 = sphi 0, %s78
    %s81 = sphi 0, %s80
    %s95 = sphi 0, %s81
    %s99 = sphi 0, %s99
    %s101 = sphi 0, %s99
    %s102 = sphi 0, %s101
    %s116 = sphi 0, %s102
    %s120 = sphi 0, %s120
    %s122 = sphi 0, %s120
    %s123 = sphi 0, %s122
    %s137 = sphi 0, %s123
    %s141 = sphi 0, %s141
    %s143 = sphi 0, %s141
    %s144 = sphi 0, %s143
    %s158 = sphi 0, %s144
    %s162 = sphi 0, %s162
    %s164 = sphi 0, %s162
    %s165 = sphi 0, %s164
    %s179 = sphi 0, %s165
    %s183 = sphi 0, %s183
    %s185 = sphi 0, %s183
    %s186 = sphi 0, %s185
    %s200 = sphi 0, %s186
    %s204 = sphi 0, %s204
    %s206 = sphi 0, %s204
    %s207 = sphi 0, %s206
    %s221 = sphi 0, %s207
    %s225 = sphi 0, %s225
    %s227 = sphi 0, %s225
    %s228 = sphi 0, %s227
    %s242 = sphi 0, %s228
    %s248 = sphi 0, %s250
    %s251 = sphi 0, %s248
    %s252 = sphi 0, %s251
    %s268 = sphi 0, %s252
    %s274 = sphi 0, %s276
    %s277 = sphi 0, %s274
    %s278 = sphi 0, %s277
    %s294 = sphi 0, %s278
  $region4: #{encoder_6k_forward.1} parent=0 // loop_header_branch
    %21 = sbr.rel (%p19) target = $region8
  $region5: #{encoder_6k_forward.1} parent=0 // loop_body
    %s23 = ssub.s32 %s18, 1
    %s24 = ssub.s32 %s18, 2
    %s25 = sadd.s32 %s18, 1
    %s26 = ssub.s32 %s18, %s25
    %p27 = scmp.eq.s32.totalorder %s26, 0
    %s29 = sadd.s32 %s28, 1
    %s30 = scalar_select %p27, %s28, %s29
    %p33 = pneg %p27
    %p34 = scmp.eq.s32.totalorder %s18, 1
    %p35 = por %p33, %p34
    %p36 = scmp.ne.s32.totalorder %s28, %s31
    %p37 = scmp.eq.s32.totalorder %s18, 0
    %p38 = por %p36, %p37
    %p39 = scmp.ne.s32.totalorder %s28, %s31
    %p40 = scmp.eq.s32.totalorder %s23, 1
    %p41 = por %p39, %p40
    %p42 = scmp.ne.s32.totalorder %s31, %s32
    %p43 = scmp.eq.s32.totalorder %s23, 0
    %p44 = por %p42, %p43
    %p45 = scmp.ne.s32.totalorder %s31, %s32
    %p46 = scmp.eq.s32.totalorder %s24, 1
    %p47 = por %p45, %p46
    %p49 = scmp.ne.s32.totalorder %s32, %s48
    %p50 = scmp.eq.s32.totalorder %s24, 0
    %p51 = por %p49, %p50
    %s52 = ssub.s32 %s18, %s25
    %p53 = scmp.eq.s32.totalorder %s52, 0
    %s55 = sadd.s32 %s54, 1
    %s56 = scalar_select %p53, %s54, %s55
    %p59 = pneg %p53
    %p60 = scmp.eq.s32.totalorder %s18, 1
    %p61 = por %p59, %p60
    %p62 = scmp.ne.s32.totalorder %s54, %s57
    %p63 = scmp.eq.s32.totalorder %s18, 0
    %p64 = por %p62, %p63
    %p65 = scmp.ne.s32.totalorder %s54, %s57
    %p66 = scmp.eq.s32.totalorder %s23, 1
    %p67 = por %p65, %p66
    %p68 = scmp.ne.s32.totalorder %s57, %s58
    %p69 = scmp.eq.s32.totalorder %s23, 0
    %p70 = por %p68, %p69
    %p71 = scmp.ne.s32.totalorder %s57, %s58
    %p72 = scmp.eq.s32.totalorder %s24, 1
    %p73 = por %p71, %p72
    %p75 = scmp.ne.s32.totalorder %s58, %s74
    %p76 = scmp.eq.s32.totalorder %s24, 0
    %p77 = por %p75, %p76
    %s79 = sadd.s32 %s78, 1
    %p82 = scmp.eq.s32.totalorder %s18, 1
    %p83 = scmp.ne.s32.totalorder %s78, %s80
    %p84 = scmp.eq.s32.totalorder %s18, 0
    %p85 = por %p83, %p84
    %p86 = scmp.ne.s32.totalorder %s78, %s80
    %p87 = scmp.eq.s32.totalorder %s23, 1
    %p88 = por %p86, %p87
    %p89 = scmp.ne.s32.totalorder %s80, %s81
    %p90 = scmp.eq.s32.totalorder %s23, 0
    %p91 = por %p89, %p90
    %p92 = scmp.ne.s32.totalorder %s80, %s81
    %p93 = scmp.eq.s32.totalorder %s24, 1
    %p94 = por %p92, %p93
    %p96 = scmp.ne.s32.totalorder %s81, %s95
    %p97 = scmp.eq.s32.totalorder %s24, 0
    %p98 = por %p96, %p97
    %s100 = sadd.s32 %s99, 1
    %p103 = scmp.eq.s32.totalorder %s18, 1
    %p104 = scmp.ne.s32.totalorder %s99, %s101
    %p105 = scmp.eq.s32.totalorder %s18, 0
    %p106 = por %p104, %p105
    %p107 = scmp.ne.s32.totalorder %s99, %s101
    %p108 = scmp.eq.s32.totalorder %s23, 1
    %p109 = por %p107, %p108
    %p110 = scmp.ne.s32.totalorder %s101, %s102
    %p111 = scmp.eq.s32.totalorder %s23, 0
    %p112 = por %p110, %p111
    %p113 = scmp.ne.s32.totalorder %s101, %s102
    %p114 = scmp.eq.s32.totalorder %s24, 1
    %p115 = por %p113, %p114
    %p117 = scmp.ne.s32.totalorder %s102, %s116
    %p118 = scmp.eq.s32.totalorder %s24, 0
    %p119 = por %p117, %p118
    %s121 = sadd.s32 %s120, 1
    %p124 = scmp.eq.s32.totalorder %s18, 1
    %p125 = scmp.ne.s32.totalorder %s120, %s122
    %p126 = scmp.eq.s32.totalorder %s18, 0
    %p127 = por %p125, %p126
    %p128 = scmp.ne.s32.totalorder %s120, %s122
    %p129 = scmp.eq.s32.totalorder %s23, 1
    %p130 = por %p128, %p129
    %p131 = scmp.ne.s32.totalorder %s122, %s123
    %p132 = scmp.eq.s32.totalorder %s23, 0
    %p133 = por %p131, %p132
    %p134 = scmp.ne.s32.totalorder %s122, %s123
    %p135 = scmp.eq.s32.totalorder %s24, 1
    %p136 = por %p134, %p135
    %p138 = scmp.ne.s32.totalorder %s123, %s137
    %p139 = scmp.eq.s32.totalorder %s24, 0
    %p140 = por %p138, %p139
    %s142 = sadd.s32 %s141, 1
    %p145 = scmp.eq.s32.totalorder %s18, 1
    %p146 = scmp.ne.s32.totalorder %s141, %s143
    %p147 = scmp.eq.s32.totalorder %s18, 0
    %p148 = por %p146, %p147
    %p149 = scmp.ne.s32.totalorder %s141, %s143
    %p150 = scmp.eq.s32.totalorder %s23, 1
    %p151 = por %p149, %p150
    %p152 = scmp.ne.s32.totalorder %s143, %s144
    %p153 = scmp.eq.s32.totalorder %s23, 0
    %p154 = por %p152, %p153
    %p155 = scmp.ne.s32.totalorder %s143, %s144
    %p156 = scmp.eq.s32.totalorder %s24, 1
    %p157 = por %p155, %p156
    %p159 = scmp.ne.s32.totalorder %s144, %s158
    %p160 = scmp.eq.s32.totalorder %s24, 0
    %p161 = por %p159, %p160
    %s163 = sadd.s32 %s162, 1
    %p166 = scmp.eq.s32.totalorder %s18, 1
    %p167 = scmp.ne.s32.totalorder %s162, %s164
    %p168 = scmp.eq.s32.totalorder %s18, 0
    %p169 = por %p167, %p168
    %p170 = scmp.ne.s32.totalorder %s162, %s164
    %p171 = scmp.eq.s32.totalorder %s23, 1
    %p172 = por %p170, %p171
    %p173 = scmp.ne.s32.totalorder %s164, %s165
    %p174 = scmp.eq.s32.totalorder %s23, 0
    %p175 = por %p173, %p174
    %p176 = scmp.ne.s32.totalorder %s164, %s165
    %p177 = scmp.eq.s32.totalorder %s24, 1
    %p178 = por %p176, %p177
    %p180 = scmp.ne.s32.totalorder %s165, %s179
    %p181 = scmp.eq.s32.totalorder %s24, 0
    %p182 = por %p180, %p181
    %s184 = sadd.s32 %s183, 1
    %p187 = scmp.eq.s32.totalorder %s18, 1
    %p188 = scmp.ne.s32.totalorder %s183, %s185
    %p189 = scmp.eq.s32.totalorder %s18, 0
    %p190 = por %p188, %p189
    %p191 = scmp.ne.s32.totalorder %s183, %s185
    %p192 = scmp.eq.s32.totalorder %s23, 1
    %p193 = por %p191, %p192
    %p194 = scmp.ne.s32.totalorder %s185, %s186
    %p195 = scmp.eq.s32.totalorder %s23, 0
    %p196 = por %p194, %p195
    %p197 = scmp.ne.s32.totalorder %s185, %s186
    %p198 = scmp.eq.s32.totalorder %s24, 1
    %p199 = por %p197, %p198
    %p201 = scmp.ne.s32.totalorder %s186, %s200
    %p202 = scmp.eq.s32.totalorder %s24, 0
    %p203 = por %p201, %p202
    %s205 = sadd.s32 %s204, 1
    %p208 = scmp.eq.s32.totalorder %s18, 1
    %p209 = scmp.ne.s32.totalorder %s204, %s206
    %p210 = scmp.eq.s32.totalorder %s18, 0
    %p211 = por %p209, %p210
    %p212 = scmp.ne.s32.totalorder %s204, %s206
    %p213 = scmp.eq.s32.totalorder %s23, 1
    %p214 = por %p212, %p213
    %p215 = scmp.ne.s32.totalorder %s206, %s207
    %p216 = scmp.eq.s32.totalorder %s23, 0
    %p217 = por %p215, %p216
    %p218 = scmp.ne.s32.totalorder %s206, %s207
    %p219 = scmp.eq.s32.totalorder %s24, 1
    %p220 = por %p218, %p219
    %p222 = scmp.ne.s32.totalorder %s207, %s221
    %p223 = scmp.eq.s32.totalorder %s24, 0
    %p224 = por %p222, %p223
    %s226 = sadd.s32 %s225, 1
    %p229 = scmp.eq.s32.totalorder %s18, 1
    %p230 = scmp.ne.s32.totalorder %s225, %s227
    %p231 = scmp.eq.s32.totalorder %s18, 0
    %p232 = por %p230, %p231
    %p233 = scmp.ne.s32.totalorder %s225, %s227
    %p234 = scmp.eq.s32.totalorder %s23, 1
    %p235 = por %p233, %p234
    %p236 = scmp.ne.s32.totalorder %s227, %s228
    %p237 = scmp.eq.s32.totalorder %s23, 0
    %p238 = por %p236, %p237
    %p239 = scmp.ne.s32.totalorder %s227, %s228
    %p240 = scmp.eq.s32.totalorder %s24, 1
    %p241 = por %p239, %p240
    %p243 = scmp.ne.s32.totalorder %s228, %s242
    %p244 = scmp.eq.s32.totalorder %s24, 0
    %p245 = por %p243, %p244
    %s246 = ssub.s32 %s18, %s25
    %p247 = scmp.eq.s32.totalorder %s246, 0
    %s249 = sadd.s32 %s248, 1
    %s250 = scalar_select %p247, %s248, %s249
    %p253 = pneg %p247
    %p254 = scmp.eq.s32.totalorder %s18, 1
    %p255 = por %p253, %p254
    %p256 = scmp.ne.s32.totalorder %s248, %s251
    %p257 = scmp.eq.s32.totalorder %s18, 0
    %p258 = por %p256, %p257
    %p259 = scmp.ne.s32.totalorder %s248, %s251
    %p260 = scmp.eq.s32.totalorder %s23, 1
    %p261 = por %p259, %p260
    %p262 = scmp.ne.s32.totalorder %s251, %s252
    %p263 = scmp.eq.s32.totalorder %s23, 0
    %p264 = por %p262, %p263
    %p265 = scmp.ne.s32.totalorder %s251, %s252
    %p266 = scmp.eq.s32.totalorder %s24, 1
    %p267 = por %p265, %p266
    %p269 = scmp.ne.s32.totalorder %s252, %s268
    %p270 = scmp.eq.s32.totalorder %s24, 0
    %p271 = por %p269, %p270
    %s272 = ssub.s32 %s18, %s25
    %p273 = scmp.eq.s32.totalorder %s272, 0
    %s275 = sadd.s32 %s274, 1
    %s276 = scalar_select %p273, %s274, %s275
    %p279 = pneg %p273
    %p280 = scmp.eq.s32.totalorder %s18, 1
    %p281 = por %p279, %p280
    %p282 = scmp.ne.s32.totalorder %s274, %s277
    %p283 = scmp.eq.s32.totalorder %s18, 0
    %p284 = por %p282, %p283
    %p285 = scmp.ne.s32.totalorder %s274, %s277
    %p286 = scmp.eq.s32.totalorder %s23, 1
    %p287 = por %p285, %p286
    %p288 = scmp.ne.s32.totalorder %s277, %s278
    %p289 = scmp.eq.s32.totalorder %s23, 0
    %p290 = por %p288, %p289
    %p291 = scmp.ne.s32.totalorder %s277, %s278
    %p292 = scmp.eq.s32.totalorder %s24, 1
    %p293 = por %p291, %p292
    %p295 = scmp.ne.s32.totalorder %s278, %s294
    %p296 = scmp.eq.s32.totalorder %s24, 0
    %p297 = por %p295, %p296
    %p298 = scmp.le.s32.totalorder 1, %s18
    %p299 = scmp.lt.s32.totalorder %s18, 3
    %p300 = pnand %p298, %p299
    %p301 = pneg %p300
    // Predicated region
    $region9: #{encoder_6k_forward.1} parent=5 // pred_check
      _
    $region10: #{encoder_6k_forward.1} parent=5 // pred_check_branch
      %303 = sbr.rel (%p300) target = $region12
    $region11: #{encoder_6k_forward.1} parent=5 // pred_region
      %s304 = ssub.s32 %s18, 1
      // Predicated region
      $region13: #{encoder_6k_forward.1} parent=11 // pred_check
        %p305 = pneg %p91
      $region14: #{encoder_6k_forward.1} parent=11 // pred_check_branch
        %307 = sbr.rel (%p305) target = $region16
      $region15: #{encoder_6k_forward.1} parent=11 // pred_region
        _
      $region16: #{encoder_6k_forward.1} parent=11 // pred_fallthru
        _
      // Predicated region
      $region17: #{encoder_6k_forward.1} parent=11 // pred_check
        %p308 = pneg %p112
      $region18: #{encoder_6k_forward.1} parent=11 // pred_check_branch
        %310 = sbr.rel (%p308) target = $region20
      $region19: #{encoder_6k_forward.1} parent=11 // pred_region
        _
      $region20: #{encoder_6k_forward.1} parent=11 // pred_fallthru
        _
      // Predicated region
      $region21: #{encoder_6k_forward.1} parent=11 // pred_check
        %p311 = pneg %p133
      $region22: #{encoder_6k_forward.1} parent=11 // pred_check_branch
        %313 = sbr.rel (%p311) target = $region24
      $region23: #{encoder_6k_forward.1} parent=11 // pred_region
        _
      $region24: #{encoder_6k_forward.1} parent=11 // pred_fallthru
        _
      // Predicated region
      $region25: #{encoder_6k_forward.1} parent=11 // pred_check
        %p314 = pneg %p154
      $region26: #{encoder_6k_forward.1} parent=11 // pred_check_branch
        %316 = sbr.rel (%p314) target = $region28
      $region27: #{encoder_6k_forward.1} parent=11 // pred_region
        _
      $region28: #{encoder_6k_forward.1} parent=11 // pred_fallthru
        _
      // Predicated region
      $region29: #{encoder_6k_forward.1} parent=11 // pred_check
        %p317 = pneg %p175
      $region30: #{encoder_6k_forward.1} parent=11 // pred_check_branch
        %319 = sbr.rel (%p317) target = $region32
      $region31: #{encoder_6k_forward.1} parent=11 // pred_region
        _
      $region32: #{encoder_6k_forward.1} parent=11 // pred_fallthru
        _
      // Predicated region
      $region33: #{encoder_6k_forward.1} parent=11 // pred_check
        %p320 = pneg %p196
      $region34: #{encoder_6k_forward.1} parent=11 // pred_check_branch
        %322 = sbr.rel (%p320) target = $region36
      $region35: #{encoder_6k_forward.1} parent=11 // pred_region
        _
      $region36: #{encoder_6k_forward.1} parent=11 // pred_fallthru
        _
      // Predicated region
      $region37: #{encoder_6k_forward.1} parent=11 // pred_check
        %p323 = pneg %p217
      $region38: #{encoder_6k_forward.1} parent=11 // pred_check_branch
        %325 = sbr.rel (%p323) target = $region40
      $region39: #{encoder_6k_forward.1} parent=11 // pred_region
        _
      $region40: #{encoder_6k_forward.1} parent=11 // pred_fallthru
        _
      // Predicated region
      $region41: #{encoder_6k_forward.1} parent=11 // pred_check
        %p326 = pneg %p238
      $region42: #{encoder_6k_forward.1} parent=11 // pred_check_branch
        %328 = sbr.rel (%p326) target = $region44
      $region43: #{encoder_6k_forward.1} parent=11 // pred_region
        _
      $region44: #{encoder_6k_forward.1} parent=11 // pred_fallthru
        _
    $region12: #{encoder_6k_forward.1} parent=5 // pred_fallthru
      _
    %p329 = scmp.lt.s32.totalorder %s18, 2
    // Predicated region
    $region45: #{encoder_6k_forward.1} parent=5 // pred_check
      %p330 = pneg %p329
    $region46: #{encoder_6k_forward.1} parent=5 // pred_check_branch
      %332 = sbr.rel (%p330) target = $region48
    $region47: #{encoder_6k_forward.1} parent=5 // pred_region
      // Predicated region
      $region49: #{encoder_6k_forward.1} parent=47 // pred_check
        %p333 = pneg %p38
      $region50: #{encoder_6k_forward.1} parent=47 // pred_check_branch
        %335 = sbr.rel (%p333) target = $region52
      $region51: #{encoder_6k_forward.1} parent=47 // pred_region
        %p336 = scmp.lt.s32.totalorder %s18, 1
        %s337 = scalar_select %p336, %s18, 1
        %s338 = smul.addr %s337, 3
        %s339 = smul.addr %s338, 8
        %s340 = scalar_lea.vmem %s0, %s339
      $region52: #{encoder_6k_forward.1} parent=47 // pred_fallthru
        _
      // Predicated region
      $region53: #{encoder_6k_forward.1} parent=47 // pred_check
        %p341 = pneg %p64
      $region54: #{encoder_6k_forward.1} parent=47 // pred_check_branch
        %343 = sbr.rel (%p341) target = $region56
      $region55: #{encoder_6k_forward.1} parent=47 // pred_region
        %p344 = scmp.lt.s32.totalorder %s18, 1
        %s345 = scalar_select %p344, %s18, 1
        %s346 = smul.addr %s345, 3
        %s347 = smul.addr %s346, 8
        %s348 = scalar_lea.vmem %s1, %s347
      $region56: #{encoder_6k_forward.1} parent=47 // pred_fallthru
        _
    $region48: #{encoder_6k_forward.1} parent=5 // pred_fallthru
      _
    %p349 = scmp.le.s32.totalorder 1, %s18
    %p350 = scmp.lt.s32.totalorder %s18, 3
    %p351 = pnand %p349, %p350
    %p352 = pneg %p351
    // Predicated region
    $region57: #{encoder_6k_forward.1} parent=5 // pred_check
      _
    $region58: #{encoder_6k_forward.1} parent=5 // pred_check_branch
      %354 = sbr.rel (%p351) target = $region60
    $region59: #{encoder_6k_forward.1} parent=5 // pred_region
      %s355 = ssub.s32 %s18, 1
      %p356 = scmp.lt.s32.totalorder %s23, 1
      %s357 = scalar_select %p356, %s23, 1
      %s358 = smul.addr %s357, 3
      %s359 = smul.addr %s358, 8
      %s360 = scalar_lea.vmem %s0, %s359
      %p361 = pneg %p44
      %p362 = pneg %p41
      %p363 = scmp.lt.s32.totalorder %s23, 1
      %s364 = scalar_select %p363, %s23, 1
      %s365 = smul.addr %s364, 3
      %s366 = smul.addr %s365, 8
      %s367 = scalar_lea.vmem %s1, %s366
      %p368 = pneg %p70
      %p369 = pneg %p67
      %p370 = pneg %p91
      %p371 = pneg %p88
      %p372 = pneg %p112
      %p373 = pneg %p109
      %p374 = pneg %p133
      %p375 = pneg %p130
      %p376 = pneg %p154
      %p377 = pneg %p151
      %p378 = pneg %p175
      %p379 = pneg %p172
      %p380 = pneg %p196
      %p381 = pneg %p193
      %p382 = pneg %p217
      %p383 = pneg %p214
      %p384 = pneg %p238
      %p385 = pneg %p235
      %p386 = pneg %p264
      %p387 = pneg %p261
      %p388 = scmp.lt.s32.totalorder %s23, 1
      %s389 = scalar_select %p388, %s23, 1
      %s390 = smul.addr %s389, 2
      %s391 = smul.addr %s390, 8
      %s392 = scalar_lea.vmem %s10, %s391
      %p393 = pneg %p290
      %p394 = pneg %p287
      %p395 = scmp.lt.s32.totalorder %s23, 1
      %s396 = scalar_select %p395, %s23, 1
      %s397 = smul.addr %s396, 8
      %s398 = scalar_lea.vmem %s11, %s397
      %p399 = scmp.lt.s32.totalorder %s23, 1
      %s400 = scalar_select %p399, %s23, 1
      %s401 = smul.addr %s400, 3
      %s402 = smul.addr %s401, 8
      %s403 = scalar_lea.vmem %s0, %s402
      %p404 = scmp.lt.s32.totalorder %s23, 1
      %s405 = scalar_select %p404, %s23, 1
      %s406 = smul.addr %s405, 3
      %s407 = smul.addr %s406, 8
      %s408 = scalar_lea.vmem %s1, %s407
      %p409 = scmp.lt.s32.totalorder %s23, 1
      %s410 = scalar_select %p409, %s23, 1
      %s411 = smul.addr %s410, 2
      %s412 = smul.addr %s411, 8
      %s413 = scalar_lea.vmem %s10, %s412
      %p414 = scmp.lt.s32.totalorder %s23, 1
      %s415 = scalar_select %p414, %s23, 1
      %s416 = smul.addr %s415, 8
      %s417 = scalar_lea.vmem %s11, %s416
      %v418 = vld [vmem:[%s2] sm:$0xff]
      %v419 = vld [vmem:[%s2 + $0x8] sm:$0xff]
      %v420 = vld [vmem:[%s2 + $0x10] sm:$0x1]
      %v421 = vld [vmem:[%s403] sm:$0xff]
      %v422 = vld [vmem:[%s403 + $0x8] sm:$0xff]
      %v423 = vld [vmem:[%s403 + $0x10] sm:$0x3]
      %v424 = vld [vmem:[%s3] sm:$0xff]
      %v425 = vld [vmem:[%s3 + $0x8] sm:$0xff]
      %v426 = vld [vmem:[%s3 + $0x10] sm:$0xff]
      %v427 = vld [vmem:[%s3 + $0x18] sm:$0xff]
      %v428 = vld [vmem:[%s3 + $0x20] sm:$0xf]
      %s429 = scalar_lea.vmem %s3, 40
      %v430 = vld [vmem:[%s429] sm:$0xff]
      %v431 = vld [vmem:[%s429 + $0x8] sm:$0xff]
      %v432 = vld [vmem:[%s429 + $0x10] sm:$0xff]
      %v433 = vld [vmem:[%s429 + $0x18] sm:$0xff]
      %v434 = vld [vmem:[%s429 + $0x20] sm:$0xf]
      %vm438 = vcmask 1046528
      %v439 = vrot.slane %v421, 1
      %v440 = vrot.slane %v422, 1
      %v441 = vsel %vm438, %v439, %v440
      %v442 = vrot.slane %v423, 1
      %v443 = vsel %vm438, %v440, %v442
      %vm444 = vcmask 293888
      %v445 = vsel %vm444, %v441, 0
      %v447 = vsel %vm444, %v443, 0
      %v449 = vsel %vm444, %v442, 0
      %vm451 = vcmask 1043456
      %v453 = vsel %vm451, %v434, 0
      %455 = vmatprep.subr.mxu0 0.0
      %456 = vmatpush1.msra.mxu0 %v430
      %457 = vmatprep.subr.mxu0 0.0
      %458 = vmatpush1.msra.mxu0 %v431
      %459 = vmatprep.subr.mxu0 0.0
      %460 = vmatpush1.msra.mxu0 %v432
      %461 = vmatprep.subr.mxu0 0.0
      %462 = vmatpush1.msra.mxu0 %v433
      %463 = vmatprep.subr.mxu0 0.0
      %464 = vmatpush1.msra.mxu0 %v453
      %465 = vmatprep.subr.mxu0 0.0
      %466 = vmatpush1.msra.mxu0 0.0
      %467 = vmatprep.subr.mxu0 0.0
      %468 = vmatpush1.msra.mxu0 0.0
      %469 = vmatprep.subr.mxu0 0.0
      %470 = vmatpush1.msra.mxu0 0.0
      %471 = vmatprep.subr.mxu0 0.0
      %472 = vmatpush1.msra.mxu0 0.0
      %473 = vmatprep.subr.mxu0 0.0
      %474 = vmatpush1.msra.mxu0 0.0
      %475 = vmatprep.subr.mxu0 0.0
      %476 = vmatpush1.msra.mxu0 0.0
      %477 = vmatprep.subr.mxu0 0.0
      %478 = vmatpush1.msra.mxu0 0.0
      %479 = vmatprep.subr.mxu0 0.0
      %480 = vmatpush1.msra.mxu0 0.0
      %481 = vmatprep.subr.mxu0 0.0
      %482 = vmatpush1.msra.mxu0 0.0
      %483 = vmatprep.subr.mxu0 0.0
      %484 = vmatpush1.msra.mxu0 0.0
      %485 = vmatprep.subr.mxu0 0.0
      %486 = vmatpush1.msra.mxu0 0.0
      %487 = vmatprep.subr.mxu0 0.0
      %488 = vmatpush1.msra.mxu0 0.0
      %489 = vmatprep.subr.mxu0 0.0
      %490 = vmatpush1.msra.mxu0 0.0
      %491 = vmatprep.subr.mxu0 0.0
      %492 = vmatpush1.msra.mxu0 0.0
      %493 = vmatprep.subr.mxu0 0.0
      %494 = vmatpush1.msra.mxu0 0.0
      %495 = vmatprep.subr.mxu0 0.0
      %496 = vmatpush1.msra.mxu0 0.0
      %497 = vmatprep.subr.mxu0 0.0
      %498 = vmatpush1.msra.mxu0 0.0
      %499 = vmatprep.subr.mxu0 0.0
      %500 = vmatpush1.msra.mxu0 0.0
      %501 = vmatprep.subr.mxu0 0.0
      %502 = vmatpush1.msra.mxu0 0.0
      %503 = vmatprep.subr.mxu0 0.0
      %504 = vmatpush1.msra.mxu0 0.0
      %505 = vmatprep.subr.mxu0 0.0
      %506 = vmatpush1.msra.mxu0 0.0
      %507 = vmatprep.subr.mxu0 0.0
      %508 = vmatpush1.msra.mxu0 0.0
      %509 = vmatprep.subr.mxu0 0.0
      %510 = vmatpush1.msra.mxu0 0.0
      %511 = vmatprep.subr.mxu0 0.0
      %512 = vmatpush1.msra.mxu0 0.0
      %513 = vmatprep.subr.mxu0 0.0
      %514 = vmatpush1.msra.mxu0 0.0
      %515 = vmatprep.subr.mxu0 0.0
      %516 = vmatpush1.msra.mxu0 0.0
      %517 = vmatprep.subr.mxu0 0.0
      %518 = vmatpush1.msra.mxu0 0.0
      %519 = vmatprep.mubr.f32.mxu0 0.0
      %520 = vmatmul.mubr.f32.gmra.mrb[0].mxu0 %v445
      %v521 = vpop.f32.mrb[0].mxu0
      %v522 = vadd.f32 0.0, %v521
      %v523 = vpop.f32.mrb[0].mxu0
      %524 = vmatprep.mubr.f32.mxu0 0.0
      %525 = vmatmul.mubr.f32.gmra.mrb[0].mxu0 %v447
      %v526 = vpop.f32.mrb[0].mxu0
      %v527 = vadd.f32 0.0, %v526
      %v528 = vpop.f32.mrb[0].mxu0
      %529 = vmatprep.mubr.f32.mxu0 0.0
      %530 = vmatmul.mubr.f32.gmra.mrb[0].mxu0 %v449
      %v531 = vpop.f32.mrb[0].mxu0
      %v532 = vadd.f32 0.0, %v531
      %v533 = vpop.f32.mrb[0].mxu0
      %534 = vdwg.mxu0
      %v535 = vsel %vm444, %v421, 0
      %v537 = vsel %vm444, %v422, 0
      %v539 = vsel %vm444, %v423, 0
      %v542 = vsel %vm451, %v428, 0
      %544 = vmatprep.subr.mxu0 0.0
      %545 = vmatpush1.msra.mxu0 %v424
      %546 = vmatprep.subr.mxu0 0.0
      %547 = vmatpush1.msra.mxu0 %v425
      %548 = vmatprep.subr.mxu0 0.0
      %549 = vmatpush1.msra.mxu0 %v426
      %550 = vmatprep.subr.mxu0 0.0
      %551 = vmatpush1.msra.mxu0 %v427
      %552 = vmatprep.subr.mxu0 0.0
      %553 = vmatpush1.msra.mxu0 %v542
      %554 = vmatprep.subr.mxu0 0.0
      %555 = vmatpush1.msra.mxu0 0.0
      %556 = vmatprep.subr.mxu0 0.0
      %557 = vmatpush1.msra.mxu0 0.0
      %558 = vmatprep.subr.mxu0 0.0
      %559 = vmatpush1.msra.mxu0 0.0
      %560 = vmatprep.subr.mxu0 0.0
      %561 = vmatpush1.msra.mxu0 0.0
      %562 = vmatprep.subr.mxu0 0.0
      %563 = vmatpush1.msra.mxu0 0.0
      %564 = vmatprep.subr.mxu0 0.0
      %565 = vmatpush1.msra.mxu0 0.0
      %566 = vmatprep.subr.mxu0 0.0
      %567 = vmatpush1.msra.mxu0 0.0
      %568 = vmatprep.subr.mxu0 0.0
      %569 = vmatpush1.msra.mxu0 0.0
      %570 = vmatprep.subr.mxu0 0.0
      %571 = vmatpush1.msra.mxu0 0.0
      %572 = vmatprep.subr.mxu0 0.0
      %573 = vmatpush1.msra.mxu0 0.0
      %574 = vmatprep.subr.mxu0 0.0
      %575 = vmatpush1.msra.mxu0 0.0
      %576 = vmatprep.subr.mxu0 0.0
      %577 = vmatpush1.msra.mxu0 0.0
      %578 = vmatprep.subr.mxu0 0.0
      %579 = vmatpush1.msra.mxu0 0.0
      %580 = vmatprep.subr.mxu0 0.0
      %581 = vmatpush1.msra.mxu0 0.0
      %582 = vmatprep.subr.mxu0 0.0
      %583 = vmatpush1.msra.mxu0 0.0
      %584 = vmatprep.subr.mxu0 0.0
      %585 = vmatpush1.msra.mxu0 0.0
      %586 = vmatprep.subr.mxu0 0.0
      %587 = vmatpush1.msra.mxu0 0.0
      %588 = vmatprep.subr.mxu0 0.0
      %589 = vmatpush1.msra.mxu0 0.0
      %590 = vmatprep.subr.mxu0 0.0
      %591 = vmatpush1.msra.mxu0 0.0
      %592 = vmatprep.subr.mxu0 0.0
      %593 = vmatpush1.msra.mxu0 0.0
      %594 = vmatprep.subr.mxu0 0.0
      %595 = vmatpush1.msra.mxu0 0.0
      %596 = vmatprep.subr.mxu0 0.0
      %597 = vmatpush1.msra.mxu0 0.0
      %598 = vmatprep.subr.mxu0 0.0
      %599 = vmatpush1.msra.mxu0 0.0
      %600 = vmatprep.subr.mxu0 0.0
      %601 = vmatpush1.msra.mxu0 0.0
      %602 = vmatprep.subr.mxu0 0.0
      %603 = vmatpush1.msra.mxu0 0.0
      %604 = vmatprep.subr.mxu0 0.0
      %605 = vmatpush1.msra.mxu0 0.0
      %606 = vmatprep.subr.mxu0 0.0
      %607 = vmatpush1.msra.mxu0 0.0
      %608 = vmatprep.mubr.f32.mxu0 0.0
      %609 = vmatmul.mubr.f32.gmra.mrb[0].mxu0 %v535
      %v610 = vpop.f32.mrb[0].mxu0
      %v611 = vadd.f32 %v522, %v610
      %v612 = vpop.f32.mrb[0].mxu0
      %613 = vmatprep.mubr.f32.mxu0 0.0
      %614 = vmatmul.mubr.f32.gmra.mrb[0].mxu0 %v537
      %v615 = vpop.f32.mrb[0].mxu0
      %v616 = vadd.f32 %v527, %v615
      %v617 = vpop.f32.mrb[0].mxu0
      %618 = vmatprep.mubr.f32.mxu0 0.0
      %619 = vmatmul.mubr.f32.gmra.mrb[0].mxu0 %v539
      %v620 = vpop.f32.mrb[0].mxu0
      %v621 = vadd.f32 %v532, %v620
      %v622 = vpop.f32.mrb[0].mxu0
      %623 = vdwg.mxu0
      %v624 = vld [vmem:[%s4] sm:$0x1]
      %v626 = vlaneseq
      %v627 = vshrl.u32 %v626, 7
      %v628 = vsub.s32 0, %v627
      %v629 = vrot.slane %v624, %v628
      %v631 = vadd.f32 %v611, %v629
      %v632 = vadd.f32 %v616, %v629
      %v633 = vadd.f32 %v621, %v629
      %v634 = vmul.f32 %v631, %v418
      %v635 = vmul.f32 %v632, %v419
      %v636 = vmul.f32 %v633, %v420
      %v637 = vmax.f32 %v634, 0.0
      %v638 = vmax.f32 %v635, 0.0
      %v639 = vmax.f32 %v636, 0.0
      %v640 = vsub.f32 0.0, %v634
      %v641 = vsub.f32 0.0, %v635
      %v642 = vsub.f32 0.0, %v636
      %v643 = vmax.f32 %v640, 0.0
      %v644 = vmax.f32 %v641, 0.0
      %v645 = vmax.f32 %v642, 0.0
      %v646 = vld [vmem:[%s5] sm:$0xff]
      %v647 = vld [vmem:[%s5 + $0x8] sm:$0xff]
      %v648 = vld [vmem:[%s5 + $0x10] sm:$0xff]
      %v649 = vld [vmem:[%s5 + $0x18] sm:$0xff]
      %v650 = vld [vmem:[%s5 + $0x20] sm:$0xff]
      %v651 = vld [vmem:[%s5 + $0x28] sm:$0xff]
      %v652 = vld [vmem:[%s5 + $0x30] sm:$0xff]
      %v653 = vld [vmem:[%s5 + $0x38] sm:$0xff]
      %v654 = vld [vmem:[%s5 + $0x40] sm:$0xf]
      %s655 = scalar_lea.vmem %s5, 72
      %v656 = vld [vmem:[%s655] sm:$0xff]
      %v657 = vld [vmem:[%s655 + $0x8] sm:$0xff]
      %v658 = vld [vmem:[%s655 + $0x10] sm:$0xff]
      %v659 = vld [vmem:[%s655 + $0x18] sm:$0xff]
      %v660 = vld [vmem:[%s655 + $0x20] sm:$0xff]
      %v661 = vld [vmem:[%s655 + $0x28] sm:$0xff]
      %v662 = vld [vmem:[%s655 + $0x30] sm:$0xff]
      %v663 = vld [vmem:[%s655 + $0x38] sm:$0xff]
      %v664 = vld [vmem:[%s655 + $0x40] sm:$0xf]
      %vm665 = vcmask 556032
      %v667 = vsel %vm665, %v643, 0
      %v670 = vsel %vm665, %v644, 0
      %v673 = vsel %vm451, %v664, 0
      %675 = vmatprep.subr.mxu0 0.0
      %676 = vmatpush1.msra.mxu0 %v656
      %677 = vmatprep.subr.mxu0 0.0
      %678 = vmatpush1.msra.mxu0 %v657
      %679 = vmatprep.subr.mxu0 0.0
      %680 = vmatpush1.msra.mxu0 %v658
      %681 = vmatprep.subr.mxu0 0.0
      %682 = vmatpush1.msra.mxu0 %v659
      %683 = vmatprep.subr.mxu0 0.0
      %684 = vmatpush1.msra.mxu0 %v660
      %685 = vmatprep.subr.mxu0 0.0
      %686 = vmatpush1.msra.mxu0 %v661
      %687 = vmatprep.subr.mxu0 0.0
      %688 = vmatpush1.msra.mxu0 %v662
      %689 = vmatprep.subr.mxu0 0.0
      %690 = vmatpush1.msra.mxu0 %v663
      %691 = vmatprep.subr.mxu0 0.0
      %692 = vmatpush1.msra.mxu0 %v673
      %693 = vmatprep.subr.mxu0 0.0
      %694 = vmatpush1.msra.mxu0 0.0
      %695 = vmatprep.subr.mxu0 0.0
      %696 = vmatpush1.msra.mxu0 0.0
      %697 = vmatprep.subr.mxu0 0.0
      %698 = vmatpush1.msra.mxu0 0.0
      %699 = vmatprep.subr.mxu0 0.0
      %700 = vmatpush1.msra.mxu0 0.0
      %701 = vmatprep.subr.mxu0 0.0
      %702 = vmatpush1.msra.mxu0 0.0
      %703 = vmatprep.subr.mxu0 0.0
      %704 = vmatpush1.msra.mxu0 0.0
      %705 = vmatprep.subr.mxu0 0.0
      %706 = vmatpush1.msra.mxu0 0.0
      %707 = vmatprep.subr.mxu0 0.0
      %708 = vmatpush1.msra.mxu0 0.0
      %709 = vmatprep.subr.mxu0 0.0
      %710 = vmatpush1.msra.mxu0 0.0
      %711 = vmatprep.subr.mxu0 0.0
      %712 = vmatpush1.msra.mxu0 0.0
      %713 = vmatprep.subr.mxu0 0.0
      %714 = vmatpush1.msra.mxu0 0.0
      %715 = vmatprep.subr.mxu0 0.0
      %716 = vmatpush1.msra.mxu0 0.0
      %717 = vmatprep.subr.mxu0 0.0
      %718 = vmatpush1.msra.mxu0 0.0
      %719 = vmatprep.subr.mxu0 0.0
      %720 = vmatpush1.msra.mxu0 0.0
      %721 = vmatprep.subr.mxu0 0.0
      %722 = vmatpush1.msra.mxu0 0.0
      %723 = vmatprep.subr.mxu0 0.0
      %724 = vmatpush1.msra.mxu0 0.0
      %725 = vmatprep.subr.mxu0 0.0
      %726 = vmatpush1.msra.mxu0 0.0
      %727 = vmatprep.subr.mxu0 0.0
      %728 = vmatpush1.msra.mxu0 0.0
      %729 = vmatprep.subr.mxu0 0.0
      %730 = vmatpush1.msra.mxu0 0.0
      %731 = vmatprep.subr.mxu0 0.0
      %732 = vmatpush1.msra.mxu0 0.0
      %733 = vmatprep.subr.mxu0 0.0
      %734 = vmatpush1.msra.mxu0 0.0
      %735 = vmatprep.subr.mxu0 0.0
      %736 = vmatpush1.msra.mxu0 0.0
      %737 = vmatprep.subr.mxu0 0.0
      %738 = vmatpush1.msra.mxu0 0.0
      %739 = vmatprep.mubr.f32.mxu0 0.0
      %740 = vmatmul.mubr.f32.gmra.mrb[0].mxu0 %v667
      %v741 = vpop.f32.mrb[0].mxu0
      %v742 = vadd.f32 0.0, %v741
      %v743 = vpop.f32.mrb[0].mxu0
      %744 = vmatprep.mubr.f32.mxu0 0.0
      %745 = vmatmul.mubr.f32.gmra.mrb[0].mxu0 %v670
      %v746 = vpop.f32.mrb[0].mxu0
      %v747 = vadd.f32 0.0, %v746
      %v748 = vpop.f32.mrb[0].mxu0
      %749 = vdwg.mxu0
      %v751 = vsel %vm665, %v637, 0
      %v754 = vsel %vm665, %v638, 0
      %v757 = vsel %vm451, %v654, 0
      %759 = vmatprep.subr.mxu0 0.0
      %760 = vmatpush1.msra.mxu0 %v646
      %761 = vmatprep.subr.mxu0 0.0
      %762 = vmatpush1.msra.mxu0 %v647
      %763 = vmatprep.subr.mxu0 0.0
      %764 = vmatpush1.msra.mxu0 %v648
      %765 = vmatprep.subr.mxu0 0.0
      %766 = vmatpush1.msra.mxu0 %v649
      %767 = vmatprep.subr.mxu0 0.0
      %768 = vmatpush1.msra.mxu0 %v650
      %769 = vmatprep.subr.mxu0 0.0
      %770 = vmatpush1.msra.mxu0 %v651
      %771 = vmatprep.subr.mxu0 0.0
      %772 = vmatpush1.msra.mxu0 %v652
      %773 = vmatprep.subr.mxu0 0.0
      %774 = vmatpush1.msra.mxu0 %v653
      %775 = vmatprep.subr.mxu0 0.0
      %776 = vmatpush1.msra.mxu0 %v757
      %777 = vmatprep.subr.mxu0 0.0
      %778 = vmatpush1.msra.mxu0 0.0
      %779 = vmatprep.subr.mxu0 0.0
      %780 = vmatpush1.msra.mxu0 0.0
      %781 = vmatprep.subr.mxu0 0.0
      %782 = vmatpush1.msra.mxu0 0.0
      %783 = vmatprep.subr.mxu0 0.0
      %784 = vmatpush1.msra.mxu0 0.0
      %785 = vmatprep.subr.mxu0 0.0
      %786 = vmatpush1.msra.mxu0 0.0
      %787 = vmatprep.subr.mxu0 0.0
      %788 = vmatpush1.msra.mxu0 0.0
      %789 = vmatprep.subr.mxu0 0.0
      %790 = vmatpush1.msra.mxu0 0.0
      %791 = vmatprep.subr.mxu0 0.0
      %792 = vmatpush1.msra.mxu0 0.0
      %793 = vmatprep.subr.mxu0 0.0
      %794 = vmatpush1.msra.mxu0 0.0
      %795 = vmatprep.subr.mxu0 0.0
      %796 = vmatpush1.msra.mxu0 0.0
      %797 = vmatprep.subr.mxu0 0.0
      %798 = vmatpush1.msra.mxu0 0.0
      %799 = vmatprep.subr.mxu0 0.0
      %800 = vmatpush1.msra.mxu0 0.0
      %801 = vmatprep.subr.mxu0 0.0
      %802 = vmatpush1.msra.mxu0 0.0
      %803 = vmatprep.subr.mxu0 0.0
      %804 = vmatpush1.msra.mxu0 0.0
      %805 = vmatprep.subr.mxu0 0.0
      %806 = vmatpush1.msra.mxu0 0.0
      %807 = vmatprep.subr.mxu0 0.0
      %808 = vmatpush1.msra.mxu0 0.0
      %809 = vmatprep.subr.mxu0 0.0
      %810 = vmatpush1.msra.mxu0 0.0
      %811 = vmatprep.subr.mxu0 0.0
      %812 = vmatpush1.msra.mxu0 0.0
      %813 = vmatprep.subr.mxu0 0.0
      %814 = vmatpush1.msra.mxu0 0.0
      %815 = vmatprep.subr.mxu0 0.0
      %816 = vmatpush1.msra.mxu0 0.0
      %817 = vmatprep.subr.mxu0 0.0
      %818 = vmatpush1.msra.mxu0 0.0
      %819 = vmatprep.subr.mxu0 0.0
      %820 = vmatpush1.msra.mxu0 0.0
      %821 = vmatprep.subr.mxu0 0.0
      %822 = vmatpush1.msra.mxu0 0.0
      %823 = vmatprep.mubr.f32.mxu0 0.0
      %824 = vmatmul.mubr.f32.gmra.mrb[0].mxu0 %v751
      %v825 = vpop.f32.mrb[0].mxu0
      %v826 = vadd.f32 %v742, %v825
      %v827 = vpop.f32.mrb[0].mxu0
      %828 = vmatprep.mubr.f32.mxu0 0.0
      %829 = vmatmul.mubr.f32.gmra.mrb[0].mxu0 %v754
      %v830 = vpop.f32.mrb[0].mxu0
      %v831 = vadd.f32 %v747, %v830
      %v832 = vpop.f32.mrb[0].mxu0
      %833 = vdwg.mxu0
      %s834 = scalar_lea.vmem %s5, 144
      %v835 = vld [vmem:[%s834] sm:$0xff]
      %v836 = vld [vmem:[%s834 + $0x8] sm:$0xff]
      %v837 = vld [vmem:[%s834 + $0x10] sm:$0xff]
      %v838 = vld [vmem:[%s834 + $0x18] sm:$0xff]
      %v839 = vld [vmem:[%s834 + $0x20] sm:$0xff]
      %v840 = vld [vmem:[%s834 + $0x28] sm:$0xff]
      %v841 = vld [vmem:[%s834 + $0x30] sm:$0xff]
      %v842 = vld [vmem:[%s834 + $0x38] sm:$0xff]
      %v843 = vld [vmem:[%s834 + $0x40] sm:$0xf]
      %v845 = vrot.slane %v637, 1
      %v846 = vrot.slane %v638, 1
      %v847 = vsel %vm438, %v845, %v846
      %v848 = vrot.slane %v639, 1
      %v849 = vsel %vm438, %v846, %v848
      %v850 = vsel %vm665, %v847, 0
      %v852 = vsel %vm665, %v849, 0
      %v855 = vsel %vm451, %v843, 0
      %857 = vmatprep.subr.mxu0 0.0
      %858 = vmatpush1.msra.mxu0 %v835
      %859 = vmatprep.subr.mxu0 0.0
      %860 = vmatpush1.msra.mxu0 %v836
      %861 = vmatprep.subr.mxu0 0.0
      %862 = vmatpush1.msra.mxu0 %v837
      %863 = vmatprep.subr.mxu0 0.0
      %864 = vmatpush1.msra.mxu0 %v838
      %865 = vmatprep.subr.mxu0 0.0
      %866 = vmatpush1.msra.mxu0 %v839
      %867 = vmatprep.subr.mxu0 0.0
      %868 = vmatpush1.msra.mxu0 %v840
      %869 = vmatprep.subr.mxu0 0.0
      %870 = vmatpush1.msra.mxu0 %v841
      %871 = vmatprep.subr.mxu0 0.0
      %872 = vmatpush1.msra.mxu0 %v842
      %873 = vmatprep.subr.mxu0 0.0
      %874 = vmatpush1.msra.mxu0 %v855
      %875 = vmatprep.subr.mxu0 0.0
      %876 = vmatpush1.msra.mxu0 0.0
      %877 = vmatprep.subr.mxu0 0.0
      %878 = vmatpush1.msra.mxu0 0.0
      %879 = vmatprep.subr.mxu0 0.0
      %880 = vmatpush1.msra.mxu0 0.0
      %881 = vmatprep.subr.mxu0 0.0
      %882 = vmatpush1.msra.mxu0 0.0
      %883 = vmatprep.subr.mxu0 0.0
      %884 = vmatpush1.msra.mxu0 0.0
      %885 = vmatprep.subr.mxu0 0.0
      %886 = vmatpush1.msra.mxu0 0.0
      %887 = vmatprep.subr.mxu0 0.0
      %888 = vmatpush1.msra.mxu0 0.0
      %889 = vmatprep.subr.mxu0 0.0
      %890 = vmatpush1.msra.mxu0 0.0
      %891 = vmatprep.subr.mxu0 0.0
      %892 = vmatpush1.msra.mxu0 0.0
      %893 = vmatprep.subr.mxu0 0.0
      %894 = vmatpush1.msra.mxu0 0.0
      %895 = vmatprep.subr.mxu0 0.0
      %896 = vmatpush1.msra.mxu0 0.0
      %897 = vmatprep.subr.mxu0 0.0
      %898 = vmatpush1.msra.mxu0 0.0
      %899 = vmatprep.subr.mxu0 0.0
      %900 = vmatpush1.msra.mxu0 0.0
      %901 = vmatprep.subr.mxu0 0.0
      %902 = vmatpush1.msra.mxu0 0.0
      %903 = vmatprep.subr.mxu0 0.0
      %904 = vmatpush1.msra.mxu0 0.0
      %905 = vmatprep.subr.mxu0 0.0
      %906 = vmatpush1.msra.mxu0 0.0
      %907 = vmatprep.subr.mxu0 0.0
      %908 = vmatpush1.msra.mxu0 0.0
      %909 = vmatprep.subr.mxu0 0.0
      %910 = vmatpush1.msra.mxu0 0.0
      %911 = vmatprep.subr.mxu0 0.0
      %912 = vmatpush1.msra.mxu0 0.0
      %913 = vmatprep.subr.mxu0 0.0
      %914 = vmatpush1.msra.mxu0 0.0
      %915 = vmatprep.subr.mxu0 0.0
      %916 = vmatpush1.msra.mxu0 0.0
      %917 = vmatprep.subr.mxu0 0.0
      %918 = vmatpush1.msra.mxu0 0.0
      %919 = vmatprep.subr.mxu0 0.0
      %920 = vmatpush1.msra.mxu0 0.0
      %921 = vmatprep.mubr.f32.mxu0 0.0
      %922 = vmatmul.mubr.f32.gmra.mrb[0].mxu0 %v850
      %v923 = vpop.f32.mrb[0].mxu0
      %v924 = vadd.f32 0.0, %v923
      %v925 = vpop.f32.mrb[0].mxu0
      %926 = vmatprep.mubr.f32.mxu0 0.0
      %927 = vmatmul.mubr.f32.gmra.mrb[0].mxu0 %v852
      %v928 = vpop.f32.mrb[0].mxu0
      %v929 = vadd.f32 0.0, %v928
      %v930 = vpop.f32.mrb[0].mxu0
      %931 = vdwg.mxu0
      %v932 = vadd.f32 %v826, %v924
      %v933 = vadd.f32 %v831, %v929
      %s934 = scalar_lea.vmem %s5, 216
      %v935 = vld [vmem:[%s934] sm:$0xff]
      %v936 = vld [vmem:[%s934 + $0x8] sm:$0xff]
      %v937 = vld [vmem:[%s934 + $0x10] sm:$0xff]
      %v938 = vld [vmem:[%s934 + $0x18] sm:$0xff]
      %v939 = vld [vmem:[%s934 + $0x20] sm:$0xff]
      %v940 = vld [vmem:[%s934 + $0x28] sm:$0xff]
      %v941 = vld [vmem:[%s934 + $0x30] sm:$0xff]
      %v942 = vld [vmem:[%s934 + $0x38] sm:$0xff]
      %v943 = vld [vmem:[%s934 + $0x40] sm:$0xf]
      %v945 = vrot.slane %v643, 1
      %v946 = vrot.slane %v644, 1
      %v947 = vsel %vm438, %v945, %v946
      %v948 = vrot.slane %v645, 1
      %v949 = vsel %vm438, %v946, %v948
      %v950 = vsel %vm665, %v947, 0
      %v952 = vsel %vm665, %v949, 0
      %v955 = vsel %vm451, %v943, 0
      %957 = vmatprep.subr.mxu0 0.0
      %958 = vmatpush1.msra.mxu0 %v935
      %959 = vmatprep.subr.mxu0 0.0
      %960 = vmatpush1.msra.mxu0 %v936
      %961 = vmatprep.subr.mxu0 0.0
      %962 = vmatpush1.msra.mxu0 %v937
      %963 = vmatprep.subr.mxu0 0.0
      %964 = vmatpush1.msra.mxu0 %v938
      %965 = vmatprep.subr.mxu0 0.0
      %966 = vmatpush1.msra.mxu0 %v939
      %967 = vmatprep.subr.mxu0 0.0
      %968 = vmatpush1.msra.mxu0 %v940
      %969 = vmatprep.subr.mxu0 0.0
      %970 = vmatpush1.msra.mxu0 %v941
      %971 = vmatprep.subr.mxu0 0.0
      %972 = vmatpush1.msra.mxu0 %v942
      %973 = vmatprep.subr.mxu0 0.0
      %974 = vmatpush1.msra.mxu0 %v955
      %975 = vmatprep.subr.mxu0 0.0
      %976 = vmatpush1.msra.mxu0 0.0
      %977 = vmatprep.subr.mxu0 0.0
      %978 = vmatpush1.msra.mxu0 0.0
      %979 = vmatprep.subr.mxu0 0.0
      %980 = vmatpush1.msra.mxu0 0.0
      %981 = vmatprep.subr.mxu0 0.0
      %982 = vmatpush1.msra.mxu0 0.0
      %983 = vmatprep.subr.mxu0 0.0
      %984 = vmatpush1.msra.mxu0 0.0
      %985 = vmatprep.subr.mxu0 0.0
      %986 = vmatpush1.msra.mxu0 0.0
      %987 = vmatprep.subr.mxu0 0.0
      %988 = vmatpush1.msra.mxu0 0.0
      %989 = vmatprep.subr.mxu0 0.0
      %990 = vmatpush1.msra.mxu0 0.0
      %991 = vmatprep.subr.mxu0 0.0
      %992 = vmatpush1.msra.mxu0 0.0
      %993 = vmatprep.subr.mxu0 0.0
      %994 = vmatpush1.msra.mxu0 0.0
      %995 = vmatprep.subr.mxu0 0.0
      %996 = vmatpush1.msra.mxu0 0.0
      %997 = vmatprep.subr.mxu0 0.0
      %998 = vmatpush1.msra.mxu0 0.0
      %999 = vmatprep.subr.mxu0 0.0
      %1000 = vmatpush1.msra.mxu0 0.0
      %1001 = vmatprep.subr.mxu0 0.0
      %1002 = vmatpush1.msra.mxu0 0.0
      %1003 = vmatprep.subr.mxu0 0.0
      %1004 = vmatpush1.msra.mxu0 0.0
      %1005 = vmatprep.subr.mxu0 0.0
      %1006 = vmatpush1.msra.mxu0 0.0
      %1007 = vmatprep.subr.mxu0 0.0
      %1008 = vmatpush1.msra.mxu0 0.0
      %1009 = vmatprep.subr.mxu0 0.0
      %1010 = vmatpush1.msra.mxu0 0.0
      %1011 = vmatprep.subr.mxu0 0.0
      %1012 = vmatpush1.msra.mxu0 0.0
      %1013 = vmatprep.subr.mxu0 0.0
      %1014 = vmatpush1.msra.mxu0 0.0
      %1015 = vmatprep.subr.mxu0 0.0
      %1016 = vmatpush1.msra.mxu0 0.0
      %1017 = vmatprep.subr.mxu0 0.0
      %1018 = vmatpush1.msra.mxu0 0.0
      %1019 = vmatprep.subr.mxu0 0.0
      %1020 = vmatpush1.msra.mxu0 0.0
      %1021 = vmatprep.mubr.f32.mxu0 0.0
      %1022 = vmatmul.mubr.f32.gmra.mrb[0].mxu0 %v950
      %v1023 = vpop.f32.mrb[0].mxu0
      %v1024 = vadd.f32 0.0, %v1023
      %v1025 = vpop.f32.mrb[0].mxu0
      %1026 = vmatprep.mubr.f32.mxu0 0.0
      %1027 = vmatmul.mubr.f32.gmra.mrb[0].mxu0 %v952
      %v1028 = vpop.f32.mrb[0].mxu0
      %v1029 = vadd.f32 0.0, %v1028
      %v1030 = vpop.f32.mrb[0].mxu0
      %1031 = vdwg.mxu0
      %v1032 = vadd.f32 %v932, %v1024
      %v1033 = vadd.f32 %v933, %v1029
      %v1034 = vld [vmem:[%s6] sm:$0x1]
      %v1036 = vlaneseq
      %v1037 = vshrl.u32 %v1036, 7
      %v1038 = vsub.s32 0, %v1037
      %v1039 = vrot.slane %v1034, %v1038
      %v1041 = vadd.f32 %v1032, %v1039
      %v1042 = vadd.f32 %v1033, %v1039
      %v1043 = vld [vmem:[%s408] sm:$0xff]
      %v1044 = vld [vmem:[%s408 + $0x8] sm:$0xff]
      %v1045 = vld [vmem:[%s408 + $0x10] sm:$0x3]
      %s1046 = scalar_lea.vmem %s3, 80
      %v1047 = vld [vmem:[%s1046] sm:$0xff]
      %v1048 = vld [vmem:[%s1046 + $0x8] sm:$0xff]
      %v1049 = vld [vmem:[%s1046 + $0x10] sm:$0xff]
      %v1050 = vld [vmem:[%s1046 + $0x18] sm:$0xff]
      %v1051 = vld [vmem:[%s1046 + $0x20] sm:$0xf]
      %s1052 = scalar_lea.vmem %s3, 120
      %v1053 = vld [vmem:[%s1052] sm:$0xff]
      %v1054 = vld [vmem:[%s1052 + $0x8] sm:$0xff]
      %v1055 = vld [vmem:[%s1052 + $0x10] sm:$0xff]
      %v1056 = vld [vmem:[%s1052 + $0x18] sm:$0xff]
      %v1057 = vld [vmem:[%s1052 + $0x20] sm:$0xf]
      %v1061 = vrot.slane %v1043, 1
      %v1062 = vrot.slane %v1044, 1
      %v1063 = vsel %vm438, %v1061, %v1062
      %v1064 = vrot.slane %v1045, 1
      %v1065 = vsel %vm438, %v1062, %v1064
      %v1066 = vsel %vm444, %v1063, 0
      %v1068 = vsel %vm444, %v1065, 0
      %v1070 = vsel %vm444, %v1064, 0
      %v1073 = vsel %vm451, %v1057, 0
      %1075 = vmatprep.subr.mxu0 0.0
      %1076 = vmatpush1.msra.mxu0 %v1053
      %1077 = vmatprep.subr.mxu0 0.0
      %1078 = vmatpush1.msra.mxu0 %v1054
      %1079 = vmatprep.subr.mxu0 0.0
      %1080 = vmatpush1.msra.mxu0 %v1055
      %1081 = vmatprep.subr.mxu0 0.0
      %1082 = vmatpush1.msra.mxu0 %v1056
      %1083 = vmatprep.subr.mxu0 0.0
      %1084 = vmatpush1.msra.mxu0 %v1073
      %1085 = vmatprep.subr.mxu0 0.0
      %1086 = vmatpush1.msra.mxu0 0.0
      %1087 = vmatprep.subr.mxu0 0.0
      %1088 = vmatpush1.msra.mxu0 0.0
      %1089 = vmatprep.subr.mxu0 0.0
      %1090 = vmatpush1.msra.mxu0 0.0
      %1091 = vmatprep.subr.mxu0 0.0
      %1092 = vmatpush1.msra.mxu0 0.0
      %1093 = vmatprep.subr.mxu0 0.0
      %1094 = vmatpush1.msra.mxu0 0.0
      %1095 = vmatprep.subr.mxu0 0.0
      %1096 = vmatpush1.msra.mxu0 0.0
      %1097 = vmatprep.subr.mxu0 0.0
      %1098 = vmatpush1.msra.mxu0 0.0
      %1099 = vmatprep.subr.mxu0 0.0
      %1100 = vmatpush1.msra.mxu0 0.0
      %1101 = vmatprep.subr.mxu0 0.0
      %1102 = vmatpush1.msra.mxu0 0.0
      %1103 = vmatprep.subr.mxu0 0.0
      %1104 = vmatpush1.msra.mxu0 0.0
      %1105 = vmatprep.subr.mxu0 0.0
      %1106 = vmatpush1.msra.mxu0 0.0
      %1107 = vmatprep.subr.mxu0 0.0
      %1108 = vmatpush1.msra.mxu0 0.0
      %1109 = vmatprep.subr.mxu0 0.0
      %1110 = vmatpush1.msra.mxu0 0.0
      %1111 = vmatprep.subr.mxu0 0.0
      %1112 = vmatpush1.msra.mxu0 0.0
      %1113 = vmatprep.subr.mxu0 0.0
      %1114 = vmatpush1.msra.mxu0 0.0
      %1115 = vmatprep.subr.mxu0 0.0
      %1116 = vmatpush1.msra.mxu0 0.0
      %1117 = vmatprep.subr.mxu0 0.0
      %1118 = vmatpush1.msra.mxu0 0.0
      %1119 = vmatprep.subr.mxu0 0.0
      %1120 = vmatpush1.msra.mxu0 0.0
      %1121 = vmatprep.subr.mxu0 0.0
      %1122 = vmatpush1.msra.mxu0 0.0
      %1123 = vmatprep.subr.mxu0 0.0
      %1124 = vmatpush1.msra.mxu0 0.0
      %1125 = vmatprep.subr.mxu0 0.0
      %1126 = vmatpush1.msra.mxu0 0.0
      %1127 = vmatprep.subr.mxu0 0.0
      %1128 = vmatpush1.msra.mxu0 0.0
      %1129 = vmatprep.subr.mxu0 0.0
      %1130 = vmatpush1.msra.mxu0 0.0
      %1131 = vmatprep.subr.mxu0 0.0
      %1132 = vmatpush1.msra.mxu0 0.0
      %1133 = vmatprep.subr.mxu0 0.0
      %1134 = vmatpush1.msra.mxu0 0.0
      %1135 = vmatprep.subr.mxu0 0.0
      %1136 = vmatpush1.msra.mxu0 0.0
      %1137 = vmatprep.subr.mxu0 0.0
      %1138 = vmatpush1.msra.mxu0 0.0
      %1139 = vmatprep.mubr.f32.mxu0 0.0
      %1140 = vmatmul.mubr.f32.gmra.mrb[0].mxu0 %v1066
      %v1141 = vpop.f32.mrb[0].mxu0
      %v1142 = vadd.f32 0.0, %v1141
      %v1143 = vpop.f32.mrb[0].mxu0
      %1144 = vmatprep.mubr.f32.mxu0 0.0
      %1145 = vmatmul.mubr.f32.gmra.mrb[0].mxu0 %v1068
      %v1146 = vpop.f32.mrb[0].mxu0
      %v1147 = vadd.f32 0.0, %v1146
      %v1148 = vpop.f32.mrb[0].mxu0
      %1149 = vmatprep.mubr.f32.mxu0 0.0
      %1150 = vmatmul.mubr.f32.gmra.mrb[0].mxu0 %v1070
      %v1151 = vpop.f32.mrb[0].mxu0
      %v1152 = vadd.f32 0.0, %v1151
      %v1153 = vpop.f32.mrb[0].mxu0
      %1154 = vdwg.mxu0
      %v1155 = vsel %vm444, %v1043, 0
      %v1157 = vsel %vm444, %v1044, 0
      %v1159 = vsel %vm444, %v1045, 0
      %v1162 = vsel %vm451, %v1051, 0
      %1164 = vmatprep.subr.mxu0 0.0
      %1165 = vmatpush1.msra.mxu0 %v1047
      %1166 = vmatprep.subr.mxu0 0.0
      %1167 = vmatpush1.msra.mxu0 %v1048
      %1168 = vmatprep.subr.mxu0 0.0
      %1169 = vmatpush1.msra.mxu0 %v1049
      %1170 = vmatprep.subr.mxu0 0.0
      %1171 = vmatpush1.msra.mxu0 %v1050
      %1172 = vmatprep.subr.mxu0 0.0
      %1173 = vmatpush1.msra.mxu0 %v1162
      %1174 = vmatprep.subr.mxu0 0.0
      %1175 = vmatpush1.msra.mxu0 0.0
      %1176 = vmatprep.subr.mxu0 0.0
      %1177 = vmatpush1.msra.mxu0 0.0
      %1178 = vmatprep.subr.mxu0 0.0
      %1179 = vmatpush1.msra.mxu0 0.0
      %1180 = vmatprep.subr.mxu0 0.0
      %1181 = vmatpush1.msra.mxu0 0.0
      %1182 = vmatprep.subr.mxu0 0.0
      %1183 = vmatpush1.msra.mxu0 0.0
      %1184 = vmatprep.subr.mxu0 0.0
      %1185 = vmatpush1.msra.mxu0 0.0
      %1186 = vmatprep.subr.mxu0 0.0
      %1187 = vmatpush1.msra.mxu0 0.0
      %1188 = vmatprep.subr.mxu0 0.0
      %1189 = vmatpush1.msra.mxu0 0.0
      %1190 = vmatprep.subr.mxu0 0.0
      %1191 = vmatpush1.msra.mxu0 0.0
      %1192 = vmatprep.subr.mxu0 0.0
      %1193 = vmatpush1.msra.mxu0 0.0
      %1194 = vmatprep.subr.mxu0 0.0
      %1195 = vmatpush1.msra.mxu0 0.0
      %1196 = vmatprep.subr.mxu0 0.0
      %1197 = vmatpush1.msra.mxu0 0.0
      %1198 = vmatprep.subr.mxu0 0.0
      %1199 = vmatpush1.msra.mxu0 0.0
      %1200 = vmatprep.subr.mxu0 0.0
      %1201 = vmatpush1.msra.mxu0 0.0
      %1202 = vmatprep.subr.mxu0 0.0
      %1203 = vmatpush1.msra.mxu0 0.0
      %1204 = vmatprep.subr.mxu0 0.0
      %1205 = vmatpush1.msra.mxu0 0.0
      %1206 = vmatprep.subr.mxu0 0.0
      %1207 = vmatpush1.msra.mxu0 0.0
      %1208 = vmatprep.subr.mxu0 0.0
      %1209 = vmatpush1.msra.mxu0 0.0
      %1210 = vmatprep.subr.mxu0 0.0
      %1211 = vmatpush1.msra.mxu0 0.0
      %1212 = vmatprep.subr.mxu0 0.0
      %1213 = vmatpush1.msra.mxu0 0.0
      %1214 = vmatprep.subr.mxu0 0.0
      %1215 = vmatpush1.msra.mxu0 0.0
      %1216 = vmatprep.subr.mxu0 0.0
      %1217 = vmatpush1.msra.mxu0 0.0
      %1218 = vmatprep.subr.mxu0 0.0
      %1219 = vmatpush1.msra.mxu0 0.0
      %1220 = vmatprep.subr.mxu0 0.0
      %1221 = vmatpush1.msra.mxu0 0.0
      %1222 = vmatprep.subr.mxu0 0.0
      %1223 = vmatpush1.msra.mxu0 0.0
      %1224 = vmatprep.subr.mxu0 0.0
      %1225 = vmatpush1.msra.mxu0 0.0
      %1226 = vmatprep.subr.mxu0 0.0
      %1227 = vmatpush1.msra.mxu0 0.0
      %1228 = vmatprep.mubr.f32.mxu0 0.0
      %1229 = vmatmul.mubr.f32.gmra.mrb[0].mxu0 %v1155
      %v1230 = vpop.f32.mrb[0].mxu0
      %v1231 = vadd.f32 %v1142, %v1230
      %v1232 = vpop.f32.mrb[0].mxu0
      %1233 = vmatprep.mubr.f32.mxu0 0.0
      %1234 = vmatmul.mubr.f32.gmra.mrb[0].mxu0 %v1157
      %v1235 = vpop.f32.mrb[0].mxu0
      %v1236 = vadd.f32 %v1147, %v1235
      %v1237 = vpop.f32.mrb[0].mxu0
      %1238 = vmatprep.mubr.f32.mxu0 0.0
      %1239 = vmatmul.mubr.f32.gmra.mrb[0].mxu0 %v1159
      %v1240 = vpop.f32.mrb[0].mxu0
      %v1241 = vadd.f32 %v1152, %v1240
      %v1242 = vpop.f32.mrb[0].mxu0
      %1243 = vdwg.mxu0
      %s1244 = scalar_lea.vmem %s4, 1
      %v1245 = vld [vmem:[%s1244] sm:$0x1]
      %v1247 = vlaneseq
      %v1248 = vshrl.u32 %v1247, 7
      %v1249 = vsub.s32 0, %v1248
      %v1250 = vrot.slane %v1245, %v1249
      %v1252 = vadd.f32 %v1231, %v1250
      %v1253 = vadd.f32 %v1236, %v1250
      %v1254 = vadd.f32 %v1241, %v1250
      %v1255 = vmul.f32 %v1252, %v418
      %v1256 = vmul.f32 %v1253, %v419
      %v1257 = vmul.f32 %v1254, %v420
      %v1258 = vmax.f32 %v1255, 0.0
      %v1259 = vmax.f32 %v1256, 0.0
      %v1260 = vmax.f32 %v1257, 0.0
      %v1261 = vsub.f32 0.0, %v1255
      %v1262 = vsub.f32 0.0, %v1256
      %v1263 = vsub.f32 0.0, %v1257
      %v1264 = vmax.f32 %v1261, 0.0
      %v1265 = vmax.f32 %v1262, 0.0
      %v1266 = vmax.f32 %v1263, 0.0
      %s1267 = scalar_lea.vmem %s5, 288
      %v1268 = vld [vmem:[%s1267] sm:$0xff]
      %v1269 = vld [vmem:[%s1267 + $0x8] sm:$0xff]
      %v1270 = vld [vmem:[%s1267 + $0x10] sm:$0xff]
      %v1271 = vld [vmem:[%s1267 + $0x18] sm:$0xff]
      %v1272 = vld [vmem:[%s1267 + $0x20] sm:$0xff]
      %v1273 = vld [vmem:[%s1267 + $0x28] sm:$0xff]
      %v1274 = vld [vmem:[%s1267 + $0x30] sm:$0xff]
      %v1275 = vld [vmem:[%s1267 + $0x38] sm:$0xff]
      %v1276 = vld [vmem:[%s1267 + $0x40] sm:$0xf]
      %s1277 = scalar_lea.vmem %s5, 360
      %v1278 = vld [vmem:[%s1277] sm:$0xff]
      %v1279 = vld [vmem:[%s1277 + $0x8] sm:$0xff]
      %v1280 = vld [vmem:[%s1277 + $0x10] sm:$0xff]
      %v1281 = vld [vmem:[%s1277 + $0x18] sm:$0xff]
      %v1282 = vld [vmem:[%s1277 + $0x20] sm:$0xff]
      %v1283 = vld [vmem:[%s1277 + $0x28] sm:$0xff]
      %v1284 = vld [vmem:[%s1277 + $0x30] sm:$0xff]
      %v1285 = vld [vmem:[%s1277 + $0x38] sm:$0xff]
      %v1286 = vld [vmem:[%s1277 + $0x40] sm:$0xf]
      %v1288 = vsel %vm665, %v1264, 0
      %v1291 = vsel %vm665, %v1265, 0
      %v1294 = vsel %vm451, %v1286, 0
      %1296 = vmatprep.subr.mxu0 0.0
      %1297 = vmatpush1.msra.mxu0 %v1278
      %1298 = vmatprep.subr.mxu0 0.0
      %1299 = vmatpush1.msra.mxu0 %v1279
      %1300 = vmatprep.subr.mxu0 0.0
      %1301 = vmatpush1.msra.mxu0 %v1280
      %1302 = vmatprep.subr.mxu0 0.0
      %1303 = vmatpush1.msra.mxu0 %v1281
      %1304 = vmatprep.subr.mxu0 0.0
      %1305 = vmatpush1.msra.mxu0 %v1282
      %1306 = vmatprep.subr.mxu0 0.0
      %1307 = vmatpush1.msra.mxu0 %v1283
      %1308 = vmatprep.subr.mxu0 0.0
      %1309 = vmatpush1.msra.mxu0 %v1284
      %1310 = vmatprep.subr.mxu0 0.0
      %1311 = vmatpush1.msra.mxu0 %v1285
      %1312 = vmatprep.subr.mxu0 0.0
      %1313 = vmatpush1.msra.mxu0 %v1294
      %1314 = vmatprep.subr.mxu0 0.0
      %1315 = vmatpush1.msra.mxu0 0.0
      %1316 = vmatprep.subr.mxu0 0.0
      %1317 = vmatpush1.msra.mxu0 0.0
      %1318 = vmatprep.subr.mxu0 0.0
      %1319 = vmatpush1.msra.mxu0 0.0
      %1320 = vmatprep.subr.mxu0 0.0
      %1321 = vmatpush1.msra.mxu0 0.0
      %1322 = vmatprep.subr.mxu0 0.0
      %1323 = vmatpush1.msra.mxu0 0.0
      %1324 = vmatprep.subr.mxu0 0.0
      %1325 = vmatpush1.msra.mxu0 0.0
      %1326 = vmatprep.subr.mxu0 0.0
      %1327 = vmatpush1.msra.mxu0 0.0
      %1328 = vmatprep.subr.mxu0 0.0
      %1329 = vmatpush1.msra.mxu0 0.0
      %1330 = vmatprep.subr.mxu0 0.0
      %1331 = vmatpush1.msra.mxu0 0.0
      %1332 = vmatprep.subr.mxu0 0.0
      %1333 = vmatpush1.msra.mxu0 0.0
      %1334 = vmatprep.subr.mxu0 0.0
      %1335 = vmatpush1.msra.mxu0 0.0
      %1336 = vmatprep.subr.mxu0 0.0
      %1337 = vmatpush1.msra.mxu0 0.0
      %1338 = vmatprep.subr.mxu0 0.0
      %1339 = vmatpush1.msra.mxu0 0.0
      %1340 = vmatprep.subr.mxu0 0.0
      %1341 = vmatpush1.msra.mxu0 0.0
      %1342 = vmatprep.subr.mxu0 0.0
      %1343 = vmatpush1.msra.mxu0 0.0
      %1344 = vmatprep.subr.mxu0 0.0
      %1345 = vmatpush1.msra.mxu0 0.0
      %1346 = vmatprep.subr.mxu0 0.0
      %1347 = vmatpush1.msra.mxu0 0.0
      %1348 = vmatprep.subr.mxu0 0.0
      %1349 = vmatpush1.msra.mxu0 0.0
      %1350 = vmatprep.subr.mxu0 0.0
      %1351 = vmatpush1.msra.mxu0 0.0
      %1352 = vmatprep.subr.mxu0 0.0
      %1353 = vmatpush1.msra.mxu0 0.0
      %1354 = vmatprep.subr.mxu0 0.0
      %1355 = vmatpush1.msra.mxu0 0.0
      %1356 = vmatprep.subr.mxu0 0.0
      %1357 = vmatpush1.msra.mxu0 0.0
      %1358 = vmatprep.subr.mxu0 0.0
      %1359 = vmatpush1.msra.mxu0 0.0
      %1360 = vmatprep.mubr.f32.mxu0 0.0
      %1361 = vmatmul.mubr.f32.gmra.mrb[0].mxu0 %v1288
      %v1362 = vpop.f32.mrb[0].mxu0
      %v1363 = vadd.f32 0.0, %v1362
      %v1364 = vpop.f32.mrb[0].mxu0
      %1365 = vmatprep.mubr.f32.mxu0 0.0
      %1366 = vmatmul.mubr.f32.gmra.mrb[0].mxu0 %v1291
      %v1367 = vpop.f32.mrb[0].mxu0
      %v1368 = vadd.f32 0.0, %v1367
      %v1369 = vpop.f32.mrb[0].mxu0
      %1370 = vdwg.mxu0
      %v1372 = vsel %vm665, %v1258, 0
      %v1375 = vsel %vm665, %v1259, 0
      %v1378 = vsel %vm451, %v1276, 0
      %1380 = vmatprep.subr.mxu0 0.0
      %1381 = vmatpush1.msra.mxu0 %v1268
      %1382 = vmatprep.subr.mxu0 0.0
      %1383 = vmatpush1.msra.mxu0 %v1269
      %1384 = vmatprep.subr.mxu0 0.0
      %1385 = vmatpush1.msra.mxu0 %v1270
      %1386 = vmatprep.subr.mxu0 0.0
      %1387 = vmatpush1.msra.mxu0 %v1271
      %1388 = vmatprep.subr.mxu0 0.0
      %1389 = vmatpush1.msra.mxu0 %v1272
      %1390 = vmatprep.subr.mxu0 0.0
      %1391 = vmatpush1.msra.mxu0 %v1273
      %1392 = vmatprep.subr.mxu0 0.0
      %1393 = vmatpush1.msra.mxu0 %v1274
      %1394 = vmatprep.subr.mxu0 0.0
      %1395 = vmatpush1.msra.mxu0 %v1275
      %1396 = vmatprep.subr.mxu0 0.0
      %1397 = vmatpush1.msra.mxu0 %v1378
      %1398 = vmatprep.subr.mxu0 0.0
      %1399 = vmatpush1.msra.mxu0 0.0
      %1400 = vmatprep.subr.mxu0 0.0
      %1401 = vmatpush1.msra.mxu0 0.0
      %1402 = vmatprep.subr.mxu0 0.0
      %1403 = vmatpush1.msra.mxu0 0.0
      %1404 = vmatprep.subr.mxu0 0.0
      %1405 = vmatpush1.msra.mxu0 0.0
      %1406 = vmatprep.subr.mxu0 0.0
      %1407 = vmatpush1.msra.mxu0 0.0
      %1408 = vmatprep.subr.mxu0 0.0
      %1409 = vmatpush1.msra.mxu0 0.0
      %1410 = vmatprep.subr.mxu0 0.0
      %1411 = vmatpush1.msra.mxu0 0.0
      %1412 = vmatprep.subr.mxu0 0.0
      %1413 = vmatpush1.msra.mxu0 0.0
      %1414 = vmatprep.subr.mxu0 0.0
      %1415 = vmatpush1.msra.mxu0 0.0
      %1416 = vmatprep.subr.mxu0 0.0
      %1417 = vmatpush1.msra.mxu0 0.0
      %1418 = vmatprep.subr.mxu0 0.0
      %1419 = vmatpush1.msra.mxu0 0.0
      %1420 = vmatprep.subr.mxu0 0.0
      %1421 = vmatpush1.msra.mxu0 0.0
      %1422 = vmatprep.subr.mxu0 0.0
      %1423 = vmatpush1.msra.mxu0 0.0
      %1424 = vmatprep.subr.mxu0 0.0
      %1425 = vmatpush1.msra.mxu0 0.0
      %1426 = vmatprep.subr.mxu0 0.0
      %1427 = vmatpush1.msra.mxu0 0.0
      %1428 = vmatprep.subr.mxu0 0.0
      %1429 = vmatpush1.msra.mxu0 0.0
      %1430 = vmatprep.subr.mxu0 0.0
      %1431 = vmatpush1.msra.mxu0 0.0
      %1432 = vmatprep.subr.mxu0 0.0
      %1433 = vmatpush1.msra.mxu0 0.0
      %1434 = vmatprep.subr.mxu0 0.0
      %1435 = vmatpush1.msra.mxu0 0.0
      %1436 = vmatprep.subr.mxu0 0.0
      %1437 = vmatpush1.msra.mxu0 0.0
      %1438 = vmatprep.subr.mxu0 0.0
      %1439 = vmatpush1.msra.mxu0 0.0
      %1440 = vmatprep.subr.mxu0 0.0
      %1441 = vmatpush1.msra.mxu0 0.0
      %1442 = vmatprep.subr.mxu0 0.0
      %1443 = vmatpush1.msra.mxu0 0.0
      %1444 = vmatprep.mubr.f32.mxu0 0.0
      %1445 = vmatmul.mubr.f32.gmra.mrb[0].mxu0 %v1372
      %v1446 = vpop.f32.mrb[0].mxu0
      %v1447 = vadd.f32 %v1363, %v1446
      %v1448 = vpop.f32.mrb[0].mxu0
      %1449 = vmatprep.mubr.f32.mxu0 0.0
      %1450 = vmatmul.mubr.f32.gmra.mrb[0].mxu0 %v1375
      %v1451 = vpop.f32.mrb[0].mxu0
      %v1452 = vadd.f32 %v1368, %v1451
      %v1453 = vpop.f32.mrb[0].mxu0
      %1454 = vdwg.mxu0
      %s1455 = scalar_lea.vmem %s5, 432
      %v1456 = vld [vmem:[%s1455] sm:$0xff]
      %v1457 = vld [vmem:[%s1455 + $0x8] sm:$0xff]
      %v1458 = vld [vmem:[%s1455 + $0x10] sm:$0xff]
      %v1459 = vld [vmem:[%s1455 + $0x18] sm:$0xff]
      %v1460 = vld [vmem:[%s1455 + $0x20] sm:$0xff]
      %v1461 = vld [vmem:[%s1455 + $0x28] sm:$0xff]
      %v1462 = vld [vmem:[%s1455 + $0x30] sm:$0xff]
      %v1463 = vld [vmem:[%s1455 + $0x38] sm:$0xff]
      %v1464 = vld [vmem:[%s1455 + $0x40] sm:$0xf]
      %v1466 = vrot.slane %v1258, 1
      %v1467 = vrot.slane %v1259, 1
      %v1468 = vsel %vm438, %v1466, %v1467
      %v1469 = vrot.slane %v1260, 1
      %v1470 = vsel %vm438, %v1467, %v1469
      %v1471 = vsel %vm665, %v1468, 0
      %v1473 = vsel %vm665, %v1470, 0
      %v1476 = vsel %vm451, %v1464, 0
      %1478 = vmatprep.subr.mxu0 0.0
      %1479 = vmatpush1.msra.mxu0 %v1456
      %1480 = vmatprep.subr.mxu0 0.0
      %1481 = vmatpush1.msra.mxu0 %v1457
      %1482 = vmatprep.subr.mxu0 0.0
      %1483 = vmatpush1.msra.mxu0 %v1458
      %1484 = vmatprep.subr.mxu0 0.0
      %1485 = vmatpush1.msra.mxu0 %v1459
      %1486 = vmatprep.subr.mxu0 0.0
      %1487 = vmatpush1.msra.mxu0 %v1460
      %1488 = vmatprep.subr.mxu0 0.0
      %1489 = vmatpush1.msra.mxu0 %v1461
      %1490 = vmatprep.subr.mxu0 0.0
      %1491 = vmatpush1.msra.mxu0 %v1462
      %1492 = vmatprep.subr.mxu0 0.0
      %1493 = vmatpush1.msra.mxu0 %v1463
      %1494 = vmatprep.subr.mxu0 0.0
      %1495 = vmatpush1.msra.mxu0 %v1476
      %1496 = vmatprep.subr.mxu0 0.0
      %1497 = vmatpush1.msra.mxu0 0.0
      %1498 = vmatprep.subr.mxu0 0.0
      %1499 = vmatpush1.msra.mxu0 0.0
      %1500 = vmatprep.subr.mxu0 0.0
      %1501 = vmatpush1.msra.mxu0 0.0
      %1502 = vmatprep.subr.mxu0 0.0
      %1503 = vmatpush1.msra.mxu0 0.0
      %1504 = vmatprep.subr.mxu0 0.0
      %1505 = vmatpush1.msra.mxu0 0.0
      %1506 = vmatprep.subr.mxu0 0.0
      %1507 = vmatpush1.msra.mxu0 0.0
      %1508 = vmatprep.subr.mxu0 0.0
      %1509 = vmatpush1.msra.mxu0 0.0
      %1510 = vmatprep.subr.mxu0 0.0
      %1511 = vmatpush1.msra.mxu0 0.0
      %1512 = vmatprep.subr.mxu0 0.0
      %1513 = vmatpush1.msra.mxu0 0.0
      %1514 = vmatprep.subr.mxu0 0.0
      %1515 = vmatpush1.msra.mxu0 0.0
      %1516 = vmatprep.subr.mxu0 0.0
      %1517 = vmatpush1.msra.mxu0 0.0
      %1518 = vmatprep.subr.mxu0 0.0
      %1519 = vmatpush1.msra.mxu0 0.0
      %1520 = vmatprep.subr.mxu0 0.0
      %1521 = vmatpush1.msra.mxu0 0.0
      %1522 = vmatprep.subr.mxu0 0.0
      %1523 = vmatpush1.msra.mxu0 0.0
      %1524 = vmatprep.subr.mxu0 0.0
      %1525 = vmatpush1.msra.mxu0 0.0
      %1526 = vmatprep.subr.mxu0 0.0
      %1527 = vmatpush1.msra.mxu0 0.0
      %1528 = vmatprep.subr.mxu0 0.0
      %1529 = vmatpush1.msra.mxu0 0.0
      %1530 = vmatprep.subr.mxu0 0.0
      %1531 = vmatpush1.msra.mxu0 0.0
      %1532 = vmatprep.subr.mxu0 0.0
      %1533 = vmatpush1.msra.mxu0 0.0
      %1534 = vmatprep.subr.mxu0 0.0
      %1535 = vmatpush1.msra.mxu0 0.0
      %1536 = vmatprep.subr.mxu0 0.0
      %1537 = vmatpush1.msra.mxu0 0.0
      %1538 = vmatprep.subr.mxu0 0.0
      %1539 = vmatpush1.msra.mxu0 0.0
      %1540 = vmatprep.subr.mxu0 0.0
      %1541 = vmatpush1.msra.mxu0 0.0
      %1542 = vmatprep.mubr.f32.mxu0 0.0
      %1543 = vmatmul.mubr.f32.gmra.mrb[0].mxu0 %v1471
      %v1544 = vpop.f32.mrb[0].mxu0
      %v1545 = vadd.f32 0.0, %v1544
      %v1546 = vpop.f32.mrb[0].mxu0
      %1547 = vmatprep.mubr.f32.mxu0 0.0
      %1548 = vmatmul.mubr.f32.gmra.mrb[0].mxu0 %v1473
      %v1549 = vpop.f32.mrb[0].mxu0
      %v1550 = vadd.f32 0.0, %v1549
      %v1551 = vpop.f32.mrb[0].mxu0
      %1552 = vdwg.mxu0
      %v1553 = vadd.f32 %v1447, %v1545
      %v1554 = vadd.f32 %v1452, %v1550
      %s1555 = scalar_lea.vmem %s5, 504
      %v1556 = vld [vmem:[%s1555] sm:$0xff]
      %v1557 = vld [vmem:[%s1555 + $0x8] sm:$0xff]
      %v1558 = vld [vmem:[%s1555 + $0x10] sm:$0xff]
      %v1559 = vld [vmem:[%s1555 + $0x18] sm:$0xff]
      %v1560 = vld [vmem:[%s1555 + $0x20] sm:$0xff]
      %v1561 = vld [vmem:[%s1555 + $0x28] sm:$0xff]
      %v1562 = vld [vmem:[%s1555 + $0x30] sm:$0xff]
      %v1563 = vld [vmem:[%s1555 + $0x38] sm:$0xff]
      %v1564 = vld [vmem:[%s1555 + $0x40] sm:$0xf]
      %v1566 = vrot.slane %v1264, 1
      %v1567 = vrot.slane %v1265, 1
      %v1568 = vsel %vm438, %v1566, %v1567
      %v1569 = vrot.slane %v1266, 1
      %v1570 = vsel %vm438, %v1567, %v1569
      %v1571 = vsel %vm665, %v1568, 0
      %v1573 = vsel %vm665, %v1570, 0
      %v1576 = vsel %vm451, %v1564, 0
      %1578 = vmatprep.subr.mxu0 0.0
      %1579 = vmatpush1.msra.mxu0 %v1556
      %1580 = vmatprep.subr.mxu0 0.0
      %1581 = vmatpush1.msra.mxu0 %v1557
      %1582 = vmatprep.subr.mxu0 0.0
      %1583 = vmatpush1.msra.mxu0 %v1558
      %1584 = vmatprep.subr.mxu0 0.0
      %1585 = vmatpush1.msra.mxu0 %v1559
      %1586 = vmatprep.subr.mxu0 0.0
      %1587 = vmatpush1.msra.mxu0 %v1560
      %1588 = vmatprep.subr.mxu0 0.0
      %1589 = vmatpush1.msra.mxu0 %v1561
      %1590 = vmatprep.subr.mxu0 0.0
      %1591 = vmatpush1.msra.mxu0 %v1562
      %1592 = vmatprep.subr.mxu0 0.0
      %1593 = vmatpush1.msra.mxu0 %v1563
      %1594 = vmatprep.subr.mxu0 0.0
      %1595 = vmatpush1.msra.mxu0 %v1576
      %1596 = vmatprep.subr.mxu0 0.0
      %1597 = vmatpush1.msra.mxu0 0.0
      %1598 = vmatprep.subr.mxu0 0.0
      %1599 = vmatpush1.msra.mxu0 0.0
      %1600 = vmatprep.subr.mxu0 0.0
      %1601 = vmatpush1.msra.mxu0 0.0
      %1602 = vmatprep.subr.mxu0 0.0
      %1603 = vmatpush1.msra.mxu0 0.0
      %1604 = vmatprep.subr.mxu0 0.0
      %1605 = vmatpush1.msra.mxu0 0.0
      %1606 = vmatprep.subr.mxu0 0.0
      %1607 = vmatpush1.msra.mxu0 0.0
      %1608 = vmatprep.subr.mxu0 0.0
      %1609 = vmatpush1.msra.mxu0 0.0
      %1610 = vmatprep.subr.mxu0 0.0
      %1611 = vmatpush1.msra.mxu0 0.0
      %1612 = vmatprep.subr.mxu0 0.0
      %1613 = vmatpush1.msra.mxu0 0.0
      %1614 = vmatprep.subr.mxu0 0.0
      %1615 = vmatpush1.msra.mxu0 0.0
      %1616 = vmatprep.subr.mxu0 0.0
      %1617 = vmatpush1.msra.mxu0 0.0
      %1618 = vmatprep.subr.mxu0 0.0
      %1619 = vmatpush1.msra.mxu0 0.0
      %1620 = vmatprep.subr.mxu0 0.0
      %1621 = vmatpush1.msra.mxu0 0.0
      %1622 = vmatprep.subr.mxu0 0.0
      %1623 = vmatpush1.msra.mxu0 0.0
      %1624 = vmatprep.subr.mxu0 0.0
      %1625 = vmatpush1.msra.mxu0 0.0
      %1626 = vmatprep.subr.mxu0 0.0
      %1627 = vmatpush1.msra.mxu0 0.0
      %1628 = vmatprep.subr.mxu0 0.0
      %1629 = vmatpush1.msra.mxu0 0.0
      %1630 = vmatprep.subr.mxu0 0.0
      %1631 = vmatpush1.msra.mxu0 0.0
      %1632 = vmatprep.subr.mxu0 0.0
      %1633 = vmatpush1.msra.mxu0 0.0
      %1634 = vmatprep.subr.mxu0 0.0
      %1635 = vmatpush1.msra.mxu0 0.0
      %1636 = vmatprep.subr.mxu0 0.0
      %1637 = vmatpush1.msra.mxu0 0.0
      %1638 = vmatprep.subr.mxu0 0.0
      %1639 = vmatpush1.msra.mxu0 0.0
      %1640 = vmatprep.subr.mxu0 0.0
      %1641 = vmatpush1.msra.mxu0 0.0
      %1642 = vmatprep.mubr.f32.mxu0 0.0
      %1643 = vmatmul.mubr.f32.gmra.mrb[0].mxu0 %v1571
      %v1644 = vpop.f32.mrb[0].mxu0
      %v1645 = vadd.f32 0.0, %v1644
      %v1646 = vpop.f32.mrb[0].mxu0
      %1647 = vmatprep.mubr.f32.mxu0 0.0
      %1648 = vmatmul.mubr.f32.gmra.mrb[0].mxu0 %v1573
      %v1649 = vpop.f32.mrb[0].mxu0
      %v1650 = vadd.f32 0.0, %v1649
      %v1651 = vpop.f32.mrb[0].mxu0
      %1652 = vdwg.mxu0
      %v1653 = vadd.f32 %v1553, %v1645
      %v1654 = vadd.f32 %v1554, %v1650
      %s1655 = scalar_lea.vmem %s6, 1
      %v1656 = vld [vmem:[%s1655] sm:$0x1]
      %v1658 = vlaneseq
      %v1659 = vshrl.u32 %v1658, 7
      %v1660 = vsub.s32 0, %v1659
      %v1661 = vrot.slane %v1656, %v1660
      %v1663 = vadd.f32 %v1653, %v1661
      %v1664 = vadd.f32 %v1654, %v1661
      %v1665 = vld [vmem:[%s9] sm:$0x1]
      %v1666 = vld [vmem:[%s8] sm:$0xff]
      %vm1667 = vcmask 130048
      %v1669 = vsel %vm1667, %v1666, 0
      %1671 = vmatprep.subr.mxu0 0.0
      %1672 = vmatpush1.msra.mxu0 %v1041
      %1673 = vmatprep.subr.mxu0 0.0
      %1674 = vmatpush1.msra.mxu0 %v1042
      %1675 = vmatprep.subr.mxu0 0.0
      %1676 = vmatpush1.msra.mxu0 0.0
      %1677 = vmatprep.subr.mxu0 0.0
      %1678 = vmatpush1.msra.mxu0 0.0
      %1679 = vmatprep.subr.mxu0 0.0
      %1680 = vmatpush1.msra.mxu0 0.0
      %1681 = vmatprep.subr.mxu0 0.0
      %1682 = vmatpush1.msra.mxu0 0.0
      %1683 = vmatprep.subr.mxu0 0.0
      %1684 = vmatpush1.msra.mxu0 0.0
      %1685 = vmatprep.subr.mxu0 0.0
      %1686 = vmatpush1.msra.mxu0 0.0
      %1687 = vmatprep.subr.mxu0 0.0
      %1688 = vmatpush1.msra.mxu0 0.0
      %1689 = vmatprep.subr.mxu0 0.0
      %1690 = vmatpush1.msra.mxu0 0.0
      %1691 = vmatprep.subr.mxu0 0.0
      %1692 = vmatpush1.msra.mxu0 0.0
      %1693 = vmatprep.subr.mxu0 0.0
      %1694 = vmatpush1.msra.mxu0 0.0
      %1695 = vmatprep.subr.mxu0 0.0
      %1696 = vmatpush1.msra.mxu0 0.0
      %1697 = vmatprep.subr.mxu0 0.0
      %1698 = vmatpush1.msra.mxu0 0.0
      %1699 = vmatprep.subr.mxu0 0.0
      %1700 = vmatpush1.msra.mxu0 0.0
      %1701 = vmatprep.subr.mxu0 0.0
      %1702 = vmatpush1.msra.mxu0 0.0
      %1703 = vmatprep.subr.mxu0 0.0
      %1704 = vmatpush1.msra.mxu0 0.0
      %1705 = vmatprep.subr.mxu0 0.0
      %1706 = vmatpush1.msra.mxu0 0.0
      %1707 = vmatprep.subr.mxu0 0.0
      %1708 = vmatpush1.msra.mxu0 0.0
      %1709 = vmatprep.subr.mxu0 0.0
      %1710 = vmatpush1.msra.mxu0 0.0
      %1711 = vmatprep.subr.mxu0 0.0
      %1712 = vmatpush1.msra.mxu0 0.0
      %1713 = vmatprep.subr.mxu0 0.0
      %1714 = vmatpush1.msra.mxu0 0.0
      %1715 = vmatprep.subr.mxu0 0.0
      %1716 = vmatpush1.msra.mxu0 0.0
      %1717 = vmatprep.subr.mxu0 0.0
      %1718 = vmatpush1.msra.mxu0 0.0
      %1719 = vmatprep.subr.mxu0 0.0
      %1720 = vmatpush1.msra.mxu0 0.0
      %1721 = vmatprep.subr.mxu0 0.0
      %1722 = vmatpush1.msra.mxu0 0.0
      %1723 = vmatprep.subr.mxu0 0.0
      %1724 = vmatpush1.msra.mxu0 0.0
      %1725 = vmatprep.subr.mxu0 0.0
      %1726 = vmatpush1.msra.mxu0 0.0
      %1727 = vmatprep.subr.mxu0 0.0
      %1728 = vmatpush1.msra.mxu0 0.0
      %1729 = vmatprep.subr.mxu0 0.0
      %1730 = vmatpush1.msra.mxu0 0.0
      %1731 = vmatprep.subr.mxu0 0.0
      %1732 = vmatpush1.msra.mxu0 0.0
      %1733 = vmatprep.subr.mxu0 0.0
      %1734 = vmatpush1.msra.mxu0 0.0
      %1735 = vmatprep.mubr.f32.mxu0 0.0
      %1736 = vmatmul.mubr.f32.gmra.mrb[0].mxu0 %v1669
      %v1737 = vpop.f32.mrb[0].mxu0
      %v1738 = vadd.f32 0.0, %v1737
      %v1739 = vpop.f32.mrb[0].mxu0
      %1740 = vdwg.mxu0
      %v1741 = vmax.f32 %v1738, 0.0
      %v1742 = vld [vmem:[%s7] sm:$0xff]
      %v1743 = vld [vmem:[%s7 + $0x8] sm:$0xff]
      %v1744 = vld [vmem:[%s7 + $0x10] sm:$0xff]
      %v1745 = vld [vmem:[%s7 + $0x18] sm:$0xff]
      %v1746 = vld [vmem:[%s7 + $0x20] sm:$0xff]
      %v1747 = vld [vmem:[%s7 + $0x28] sm:$0xff]
      %v1748 = vld [vmem:[%s7 + $0x30] sm:$0xff]
      %v1749 = vld [vmem:[%s7 + $0x38] sm:$0xff]
      %v1750 = vld [vmem:[%s7 + $0x40] sm:$0xff]
      %v1751 = vld [vmem:[%s7 + $0x48] sm:$0xff]
      %v1752 = vld [vmem:[%s7 + $0x50] sm:$0xff]
      %v1753 = vld [vmem:[%s7 + $0x58] sm:$0xff]
      %v1754 = vld [vmem:[%s7 + $0x60] sm:$0xff]
      %v1755 = vld [vmem:[%s7 + $0x68] sm:$0xff]
      %v1756 = vld [vmem:[%s7 + $0x70] sm:$0xff]
      %v1757 = vld [vmem:[%s7 + $0x78] sm:$0xff]
      %v1758 = vsub.f32 0.0, %v1738
      %v1759 = vmax.f32 %v1758, 0.0
      %s1760 = scalar_lea.vmem %s7, 128
      %v1761 = vld [vmem:[%s1760] sm:$0xff]
      %v1762 = vld [vmem:[%s1760 + $0x8] sm:$0xff]
      %v1763 = vld [vmem:[%s1760 + $0x10] sm:$0xff]
      %v1764 = vld [vmem:[%s1760 + $0x18] sm:$0xff]
      %v1765 = vld [vmem:[%s1760 + $0x20] sm:$0xff]
      %v1766 = vld [vmem:[%s1760 + $0x28] sm:$0xff]
      %v1767 = vld [vmem:[%s1760 + $0x30] sm:$0xff]
      %v1768 = vld [vmem:[%s1760 + $0x38] sm:$0xff]
      %v1769 = vld [vmem:[%s1760 + $0x40] sm:$0xff]
      %v1770 = vld [vmem:[%s1760 + $0x48] sm:$0xff]
      %v1771 = vld [vmem:[%s1760 + $0x50] sm:$0xff]
      %v1772 = vld [vmem:[%s1760 + $0x58] sm:$0xff]
      %v1773 = vld [vmem:[%s1760 + $0x60] sm:$0xff]
      %v1774 = vld [vmem:[%s1760 + $0x68] sm:$0xff]
      %v1775 = vld [vmem:[%s1760 + $0x70] sm:$0xff]
      %v1776 = vld [vmem:[%s1760 + $0x78] sm:$0xff]
      %1777 = vmatprep.subr.mxu0 0.0
      %1778 = vmatpush1.msra.mxu0 %v1761
      %1779 = vmatprep.subr.mxu0 0.0
      %1780 = vmatpush1.msra.mxu0 %v1762
      %1781 = vmatprep.subr.mxu0 0.0
      %1782 = vmatpush1.msra.mxu0 %v1763
      %1783 = vmatprep.subr.mxu0 0.0
      %1784 = vmatpush1.msra.mxu0 %v1764
      %1785 = vmatprep.subr.mxu0 0.0
      %1786 = vmatpush1.msra.mxu0 %v1765
      %1787 = vmatprep.subr.mxu0 0.0
      %1788 = vmatpush1.msra.mxu0 %v1766
      %1789 = vmatprep.subr.mxu0 0.0
      %1790 = vmatpush1.msra.mxu0 %v1767
      %1791 = vmatprep.subr.mxu0 0.0
      %1792 = vmatpush1.msra.mxu0 %v1768
      %1793 = vmatprep.subr.mxu0 0.0
      %1794 = vmatpush1.msra.mxu0 %v1769
      %1795 = vmatprep.subr.mxu0 0.0
      %1796 = vmatpush1.msra.mxu0 %v1770
      %1797 = vmatprep.subr.mxu0 0.0
      %1798 = vmatpush1.msra.mxu0 %v1771
      %1799 = vmatprep.subr.mxu0 0.0
      %1800 = vmatpush1.msra.mxu0 %v1772
      %1801 = vmatprep.subr.mxu0 0.0
      %1802 = vmatpush1.msra.mxu0 %v1773
      %1803 = vmatprep.subr.mxu0 0.0
      %1804 = vmatpush1.msra.mxu0 %v1774
      %1805 = vmatprep.subr.mxu0 0.0
      %1806 = vmatpush1.msra.mxu0 %v1775
      %1807 = vmatprep.subr.mxu0 0.0
      %1808 = vmatpush1.msra.mxu0 %v1776
      %1809 = vmatprep.subr.mxu0 0.0
      %1810 = vmatpush1.msra.mxu0 0.0
      %1811 = vmatprep.subr.mxu0 0.0
      %1812 = vmatpush1.msra.mxu0 0.0
      %1813 = vmatprep.subr.mxu0 0.0
      %1814 = vmatpush1.msra.mxu0 0.0
      %1815 = vmatprep.subr.mxu0 0.0
      %1816 = vmatpush1.msra.mxu0 0.0
      %1817 = vmatprep.subr.mxu0 0.0
      %1818 = vmatpush1.msra.mxu0 0.0
      %1819 = vmatprep.subr.mxu0 0.0
      %1820 = vmatpush1.msra.mxu0 0.0
      %1821 = vmatprep.subr.mxu0 0.0
      %1822 = vmatpush1.msra.mxu0 0.0
      %1823 = vmatprep.subr.mxu0 0.0
      %1824 = vmatpush1.msra.mxu0 0.0
      %1825 = vmatprep.subr.mxu0 0.0
      %1826 = vmatpush1.msra.mxu0 0.0
      %1827 = vmatprep.subr.mxu0 0.0
      %1828 = vmatpush1.msra.mxu0 0.0
      %1829 = vmatprep.subr.mxu0 0.0
      %1830 = vmatpush1.msra.mxu0 0.0
      %1831 = vmatprep.subr.mxu0 0.0
      %1832 = vmatpush1.msra.mxu0 0.0
      %1833 = vmatprep.subr.mxu0 0.0
      %1834 = vmatpush1.msra.mxu0 0.0
      %1835 = vmatprep.subr.mxu0 0.0
      %1836 = vmatpush1.msra.mxu0 0.0
      %1837 = vmatprep.subr.mxu0 0.0
      %1838 = vmatpush1.msra.mxu0 0.0
      %1839 = vmatprep.subr.mxu0 0.0
      %1840 = vmatpush1.msra.mxu0 0.0
      %1841 = vmatprep.mubr.f32.mxu0 0.0
      %1842 = vmatmul.mubr.f32.gmra.mrb[0].mxu0 %v1759
      %v1843 = vpop.f32.mrb[0].mxu0
      %v1844 = vadd.f32 0.0, %v1843
      %v1845 = vpop.f32.mrb[0].mxu0
      %1846 = vdwg.mxu0
      %1847 = vmatprep.subr.mxu0 0.0
      %1848 = vmatpush1.msra.mxu0 %v1742
      %1849 = vmatprep.subr.mxu0 0.0
      %1850 = vmatpush1.msra.mxu0 %v1743
      %1851 = vmatprep.subr.mxu0 0.0
      %1852 = vmatpush1.msra.mxu0 %v1744
      %1853 = vmatprep.subr.mxu0 0.0
      %1854 = vmatpush1.msra.mxu0 %v1745
      %1855 = vmatprep.subr.mxu0 0.0
      %1856 = vmatpush1.msra.mxu0 %v1746
      %1857 = vmatprep.subr.mxu0 0.0
      %1858 = vmatpush1.msra.mxu0 %v1747
      %1859 = vmatprep.subr.mxu0 0.0
      %1860 = vmatpush1.msra.mxu0 %v1748
      %1861 = vmatprep.subr.mxu0 0.0
      %1862 = vmatpush1.msra.mxu0 %v1749
      %1863 = vmatprep.subr.mxu0 0.0
      %1864 = vmatpush1.msra.mxu0 %v1750
      %1865 = vmatprep.subr.mxu0 0.0
      %1866 = vmatpush1.msra.mxu0 %v1751
      %1867 = vmatprep.subr.mxu0 0.0
      %1868 = vmatpush1.msra.mxu0 %v1752
      %1869 = vmatprep.subr.mxu0 0.0
      %1870 = vmatpush1.msra.mxu0 %v1753
      %1871 = vmatprep.subr.mxu0 0.0
      %1872 = vmatpush1.msra.mxu0 %v1754
      %1873 = vmatprep.subr.mxu0 0.0
      %1874 = vmatpush1.msra.mxu0 %v1755
      %1875 = vmatprep.subr.mxu0 0.0
      %1876 = vmatpush1.msra.mxu0 %v1756
      %1877 = vmatprep.subr.mxu0 0.0
      %1878 = vmatpush1.msra.mxu0 %v1757
      %1879 = vmatprep.subr.mxu0 0.0
      %1880 = vmatpush1.msra.mxu0 0.0
      %1881 = vmatprep.subr.mxu0 0.0
      %1882 = vmatpush1.msra.mxu0 0.0
      %1883 = vmatprep.subr.mxu0 0.0
      %1884 = vmatpush1.msra.mxu0 0.0
      %1885 = vmatprep.subr.mxu0 0.0
      %1886 = vmatpush1.msra.mxu0 0.0
      %1887 = vmatprep.subr.mxu0 0.0
      %1888 = vmatpush1.msra.mxu0 0.0
      %1889 = vmatprep.subr.mxu0 0.0
      %1890 = vmatpush1.msra.mxu0 0.0
      %1891 = vmatprep.subr.mxu0 0.0
      %1892 = vmatpush1.msra.mxu0 0.0
      %1893 = vmatprep.subr.mxu0 0.0
      %1894 = vmatpush1.msra.mxu0 0.0
      %1895 = vmatprep.subr.mxu0 0.0
      %1896 = vmatpush1.msra.mxu0 0.0
      %1897 = vmatprep.subr.mxu0 0.0
      %1898 = vmatpush1.msra.mxu0 0.0
      %1899 = vmatprep.subr.mxu0 0.0
      %1900 = vmatpush1.msra.mxu0 0.0
      %1901 = vmatprep.subr.mxu0 0.0
      %1902 = vmatpush1.msra.mxu0 0.0
      %1903 = vmatprep.subr.mxu0 0.0
      %1904 = vmatpush1.msra.mxu0 0.0
      %1905 = vmatprep.subr.mxu0 0.0
      %1906 = vmatpush1.msra.mxu0 0.0
      %1907 = vmatprep.subr.mxu0 0.0
      %1908 = vmatpush1.msra.mxu0 0.0
      %1909 = vmatprep.subr.mxu0 0.0
      %1910 = vmatpush1.msra.mxu0 0.0
      %1911 = vmatprep.mubr.f32.mxu0 0.0
      %1912 = vmatmul.mubr.f32.gmra.mrb[0].mxu0 %v1741
      %v1913 = vpop.f32.mrb[0].mxu0
      %v1914 = vadd.f32 %v1844, %v1913
      %v1915 = vpop.f32.mrb[0].mxu0
      %1916 = vdwg.mxu0
      %v1918 = vlaneseq
      %v1919 = vshrl.u32 %v1918, 7
      %v1920 = vsub.s32 0, %v1919
      %v1921 = vrot.slane %v1665, %v1920
      %v1923 = vadd.f32 %v1921, %v1914
      %s1924 = scalar_lea.vmem %s8, 8
      %v1925 = vld [vmem:[%s1924] sm:$0xff]
      %v1927 = vsel %vm1667, %v1925, 0
      %1929 = vmatprep.subr.mxu0 0.0
      %1930 = vmatpush1.msra.mxu0 %v1041
      %1931 = vmatprep.subr.mxu0 0.0
      %1932 = vmatpush1.msra.mxu0 %v1042
      %1933 = vmatprep.subr.mxu0 0.0
      %1934 = vmatpush1.msra.mxu0 0.0
      %1935 = vmatprep.subr.mxu0 0.0
      %1936 = vmatpush1.msra.mxu0 0.0
      %1937 = vmatprep.subr.mxu0 0.0
      %1938 = vmatpush1.msra.mxu0 0.0
      %1939 = vmatprep.subr.mxu0 0.0
      %1940 = vmatpush1.msra.mxu0 0.0
      %1941 = vmatprep.subr.mxu0 0.0
      %1942 = vmatpush1.msra.mxu0 0.0
      %1943 = vmatprep.subr.mxu0 0.0
      %1944 = vmatpush1.msra.mxu0 0.0
      %1945 = vmatprep.subr.mxu0 0.0
      %1946 = vmatpush1.msra.mxu0 0.0
      %1947 = vmatprep.subr.mxu0 0.0
      %1948 = vmatpush1.msra.mxu0 0.0
      %1949 = vmatprep.subr.mxu0 0.0
      %1950 = vmatpush1.msra.mxu0 0.0
      %1951 = vmatprep.subr.mxu0 0.0
      %1952 = vmatpush1.msra.mxu0 0.0
      %1953 = vmatprep.subr.mxu0 0.0
      %1954 = vmatpush1.msra.mxu0 0.0
      %1955 = vmatprep.subr.mxu0 0.0
      %1956 = vmatpush1.msra.mxu0 0.0
      %1957 = vmatprep.subr.mxu0 0.0
      %1958 = vmatpush1.msra.mxu0 0.0
      %1959 = vmatprep.subr.mxu0 0.0
      %1960 = vmatpush1.msra.mxu0 0.0
      %1961 = vmatprep.subr.mxu0 0.0
      %1962 = vmatpush1.msra.mxu0 0.0
      %1963 = vmatprep.subr.mxu0 0.0
      %1964 = vmatpush1.msra.mxu0 0.0
      %1965 = vmatprep.subr.mxu0 0.0
      %1966 = vmatpush1.msra.mxu0 0.0
      %1967 = vmatprep.subr.mxu0 0.0
      %1968 = vmatpush1.msra.mxu0 0.0
      %1969 = vmatprep.subr.mxu0 0.0
      %1970 = vmatpush1.msra.mxu0 0.0
      %1971 = vmatprep.subr.mxu0 0.0
      %1972 = vmatpush1.msra.mxu0 0.0
      %1973 = vmatprep.subr.mxu0 0.0
      %1974 = vmatpush1.msra.mxu0 0.0
      %1975 = vmatprep.subr.mxu0 0.0
      %1976 = vmatpush1.msra.mxu0 0.0
      %1977 = vmatprep.subr.mxu0 0.0
      %1978 = vmatpush1.msra.mxu0 0.0
      %1979 = vmatprep.subr.mxu0 0.0
      %1980 = vmatpush1.msra.mxu0 0.0
      %1981 = vmatprep.subr.mxu0 0.0
      %1982 = vmatpush1.msra.mxu0 0.0
      %1983 = vmatprep.subr.mxu0 0.0
      %1984 = vmatpush1.msra.mxu0 0.0
      %1985 = vmatprep.subr.mxu0 0.0
      %1986 = vmatpush1.msra.mxu0 0.0
      %1987 = vmatprep.subr.mxu0 0.0
      %1988 = vmatpush1.msra.mxu0 0.0
      %1989 = vmatprep.subr.mxu0 0.0
      %1990 = vmatpush1.msra.mxu0 0.0
      %1991 = vmatprep.subr.mxu0 0.0
      %1992 = vmatpush1.msra.mxu0 0.0
      %1993 = vmatprep.mubr.f32.mxu0 0.0
      %1994 = vmatmul.mubr.f32.gmra.mrb[0].mxu0 %v1927
      %v1995 = vpop.f32.mrb[0].mxu0
      %v1996 = vadd.f32 0.0, %v1995
      %v1997 = vpop.f32.mrb[0].mxu0
      %1998 = vdwg.mxu0
      %v1999 = vmax.f32 %v1996, 0.0
      %s2000 = scalar_lea.vmem %s7, 256
      %v2001 = vld [vmem:[%s2000] sm:$0xff]
      %v2002 = vld [vmem:[%s2000 + $0x8] sm:$0xff]
      %v2003 = vld [vmem:[%s2000 + $0x10] sm:$0xff]
      %v2004 = vld [vmem:[%s2000 + $0x18] sm:$0xff]
      %v2005 = vld [vmem:[%s2000 + $0x20] sm:$0xff]
      %v2006 = vld [vmem:[%s2000 + $0x28] sm:$0xff]
      %v2007 = vld [vmem:[%s2000 + $0x30] sm:$0xff]
      %v2008 = vld [vmem:[%s2000 + $0x38] sm:$0xff]
      %v2009 = vld [vmem:[%s2000 + $0x40] sm:$0xff]
      %v2010 = vld [vmem:[%s2000 + $0x48] sm:$0xff]
      %v2011 = vld [vmem:[%s2000 + $0x50] sm:$0xff]
      %v2012 = vld [vmem:[%s2000 + $0x58] sm:$0xff]
      %v2013 = vld [vmem:[%s2000 + $0x60] sm:$0xff]
      %v2014 = vld [vmem:[%s2000 + $0x68] sm:$0xff]
      %v2015 = vld [vmem:[%s2000 + $0x70] sm:$0xff]
      %v2016 = vld [vmem:[%s2000 + $0x78] sm:$0xff]
      %v2017 = vsub.f32 0.0, %v1996
      %v2018 = vmax.f32 %v2017, 0.0
      %s2019 = scalar_lea.vmem %s7, 384
      %v2020 = vld [vmem:[%s2019] sm:$0xff]
      %v2021 = vld [vmem:[%s2019 + $0x8] sm:$0xff]
      %v2022 = vld [vmem:[%s2019 + $0x10] sm:$0xff]
      %v2023 = vld [vmem:[%s2019 + $0x18] sm:$0xff]
      %v2024 = vld [vmem:[%s2019 + $0x20] sm:$0xff]
      %v2025 = vld [vmem:[%s2019 + $0x28] sm:$0xff]
      %v2026 = vld [vmem:[%s2019 + $0x30] sm:$0xff]
      %v2027 = vld [vmem:[%s2019 + $0x38] sm:$0xff]
      %v2028 = vld [vmem:[%s2019 + $0x40] sm:$0xff]
      %v2029 = vld [vmem:[%s2019 + $0x48] sm:$0xff]
      %v2030 = vld [vmem:[%s2019 + $0x50] sm:$0xff]
      %v2031 = vld [vmem:[%s2019 + $0x58] sm:$0xff]
      %v2032 = vld [vmem:[%s2019 + $0x60] sm:$0xff]
      %v2033 = vld [vmem:[%s2019 + $0x68] sm:$0xff]
      %v2034 = vld [vmem:[%s2019 + $0x70] sm:$0xff]
      %v2035 = vld [vmem:[%s2019 + $0x78] sm:$0xff]
      %2036 = vmatprep.subr.mxu0 0.0
      %2037 = vmatpush1.msra.mxu0 %v2020
      %2038 = vmatprep.subr.mxu0 0.0
      %2039 = vmatpush1.msra.mxu0 %v2021
      %2040 = vmatprep.subr.mxu0 0.0
      %2041 = vmatpush1.msra.mxu0 %v2022
      %2042 = vmatprep.subr.mxu0 0.0
      %2043 = vmatpush1.msra.mxu0 %v2023
      %2044 = vmatprep.subr.mxu0 0.0
      %2045 = vmatpush1.msra.mxu0 %v2024
      %2046 = vmatprep.subr.mxu0 0.0
      %2047 = vmatpush1.msra.mxu0 %v2025
      %2048 = vmatprep.subr.mxu0 0.0
      %2049 = vmatpush1.msra.mxu0 %v2026
      %2050 = vmatprep.subr.mxu0 0.0
      %2051 = vmatpush1.msra.mxu0 %v2027
      %2052 = vmatprep.subr.mxu0 0.0
      %2053 = vmatpush1.msra.mxu0 %v2028
      %2054 = vmatprep.subr.mxu0 0.0
      %2055 = vmatpush1.msra.mxu0 %v2029
      %2056 = vmatprep.subr.mxu0 0.0
      %2057 = vmatpush1.msra.mxu0 %v2030
      %2058 = vmatprep.subr.mxu0 0.0
      %2059 = vmatpush1.msra.mxu0 %v2031
      %2060 = vmatprep.subr.mxu0 0.0
      %2061 = vmatpush1.msra.mxu0 %v2032
      %2062 = vmatprep.subr.mxu0 0.0
      %2063 = vmatpush1.msra.mxu0 %v2033
      %2064 = vmatprep.subr.mxu0 0.0
      %2065 = vmatpush1.msra.mxu0 %v2034
      %2066 = vmatprep.subr.mxu0 0.0
      %2067 = vmatpush1.msra.mxu0 %v2035
      %2068 = vmatprep.subr.mxu0 0.0
      %2069 = vmatpush1.msra.mxu0 0.0
      %2070 = vmatprep.subr.mxu0 0.0
      %2071 = vmatpush1.msra.mxu0 0.0
      %2072 = vmatprep.subr.mxu0 0.0
      %2073 = vmatpush1.msra.mxu0 0.0
      %2074 = vmatprep.subr.mxu0 0.0
      %2075 = vmatpush1.msra.mxu0 0.0
      %2076 = vmatprep.subr.mxu0 0.0
      %2077 = vmatpush1.msra.mxu0 0.0
      %2078 = vmatprep.subr.mxu0 0.0
      %2079 = vmatpush1.msra.mxu0 0.0
      %2080 = vmatprep.subr.mxu0 0.0
      %2081 = vmatpush1.msra.mxu0 0.0
      %2082 = vmatprep.subr.mxu0 0.0
      %2083 = vmatpush1.msra.mxu0 0.0
      %2084 = vmatprep.subr.mxu0 0.0
      %2085 = vmatpush1.msra.mxu0 0.0
      %2086 = vmatprep.subr.mxu0 0.0
      %2087 = vmatpush1.msra.mxu0 0.0
      %2088 = vmatprep.subr.mxu0 0.0
      %2089 = vmatpush1.msra.mxu0 0.0
      %2090 = vmatprep.subr.mxu0 0.0
      %2091 = vmatpush1.msra.mxu0 0.0
      %2092 = vmatprep.subr.mxu0 0.0
      %2093 = vmatpush1.msra.mxu0 0.0
      %2094 = vmatprep.subr.mxu0 0.0
      %2095 = vmatpush1.msra.mxu0 0.0
      %2096 = vmatprep.subr.mxu0 0.0
      %2097 = vmatpush1.msra.mxu0 0.0
      %2098 = vmatprep.subr.mxu0 0.0
      %2099 = vmatpush1.msra.mxu0 0.0
      %2100 = vmatprep.mubr.f32.mxu0 0.0
      %2101 = vmatmul.mubr.f32.gmra.mrb[0].mxu0 %v2018
      %v2102 = vpop.f32.mrb[0].mxu0
      %v2103 = vadd.f32 0.0, %v2102
      %v2104 = vpop.f32.mrb[0].mxu0
      %2105 = vdwg.mxu0
      %2106 = vmatprep.subr.mxu0 0.0
      %2107 = vmatpush1.msra.mxu0 %v2001
      %2108 = vmatprep.subr.mxu0 0.0
      %2109 = vmatpush1.msra.mxu0 %v2002
      %2110 = vmatprep.subr.mxu0 0.0
      %2111 = vmatpush1.msra.mxu0 %v2003
      %2112 = vmatprep.subr.mxu0 0.0
      %2113 = vmatpush1.msra.mxu0 %v2004
      %2114 = vmatprep.subr.mxu0 0.0
      %2115 = vmatpush1.msra.mxu0 %v2005
      %2116 = vmatprep.subr.mxu0 0.0
      %2117 = vmatpush1.msra.mxu0 %v2006
      %2118 = vmatprep.subr.mxu0 0.0
      %2119 = vmatpush1.msra.mxu0 %v2007
      %2120 = vmatprep.subr.mxu0 0.0
      %2121 = vmatpush1.msra.mxu0 %v2008
      %2122 = vmatprep.subr.mxu0 0.0
      %2123 = vmatpush1.msra.mxu0 %v2009
      %2124 = vmatprep.subr.mxu0 0.0
      %2125 = vmatpush1.msra.mxu0 %v2010
      %2126 = vmatprep.subr.mxu0 0.0
      %2127 = vmatpush1.msra.mxu0 %v2011
      %2128 = vmatprep.subr.mxu0 0.0
      %2129 = vmatpush1.msra.mxu0 %v2012
      %2130 = vmatprep.subr.mxu0 0.0
      %2131 = vmatpush1.msra.mxu0 %v2013
      %2132 = vmatprep.subr.mxu0 0.0
      %2133 = vmatpush1.msra.mxu0 %v2014
      %2134 = vmatprep.subr.mxu0 0.0
      %2135 = vmatpush1.msra.mxu0 %v2015
      %2136 = vmatprep.subr.mxu0 0.0
      %2137 = vmatpush1.msra.mxu0 %v2016
      %2138 = vmatprep.subr.mxu0 0.0
      %2139 = vmatpush1.msra.mxu0 0.0
      %2140 = vmatprep.subr.mxu0 0.0
      %2141 = vmatpush1.msra.mxu0 0.0
      %2142 = vmatprep.subr.mxu0 0.0
      %2143 = vmatpush1.msra.mxu0 0.0
      %2144 = vmatprep.subr.mxu0 0.0
      %2145 = vmatpush1.msra.mxu0 0.0
      %2146 = vmatprep.subr.mxu0 0.0
      %2147 = vmatpush1.msra.mxu0 0.0
      %2148 = vmatprep.subr.mxu0 0.0
      %2149 = vmatpush1.msra.mxu0 0.0
      %2150 = vmatprep.subr.mxu0 0.0
      %2151 = vmatpush1.msra.mxu0 0.0
      %2152 = vmatprep.subr.mxu0 0.0
      %2153 = vmatpush1.msra.mxu0 0.0
      %2154 = vmatprep.subr.mxu0 0.0
      %2155 = vmatpush1.msra.mxu0 0.0
      %2156 = vmatprep.subr.mxu0 0.0
      %2157 = vmatpush1.msra.mxu0 0.0
      %2158 = vmatprep.subr.mxu0 0.0
      %2159 = vmatpush1.msra.mxu0 0.0
      %2160 = vmatprep.subr.mxu0 0.0
      %2161 = vmatpush1.msra.mxu0 0.0
      %2162 = vmatprep.subr.mxu0 0.0
      %2163 = vmatpush1.msra.mxu0 0.0
      %2164 = vmatprep.subr.mxu0 0.0
      %2165 = vmatpush1.msra.mxu0 0.0
      %2166 = vmatprep.subr.mxu0 0.0
      %2167 = vmatpush1.msra.mxu0 0.0
      %2168 = vmatprep.subr.mxu0 0.0
      %2169 = vmatpush1.msra.mxu0 0.0
      %2170 = vmatprep.mubr.f32.mxu0 0.0
      %2171 = vmatmul.mubr.f32.gmra.mrb[0].mxu0 %v1999
      %v2172 = vpop.f32.mrb[0].mxu0
      %v2173 = vadd.f32 %v2103, %v2172
      %v2174 = vpop.f32.mrb[0].mxu0
      %2175 = vdwg.mxu0
      %v2176 = vadd.f32 %v1923, %v2173
      %s2177 = scalar_lea.vmem %s8, 16
      %v2178 = vld [vmem:[%s2177] sm:$0xff]
      %v2180 = vsel %vm1667, %v2178, 0
      %2182 = vmatprep.subr.mxu0 0.0
      %2183 = vmatpush1.msra.mxu0 %v1663
      %2184 = vmatprep.subr.mxu0 0.0
      %2185 = vmatpush1.msra.mxu0 %v1664
      %2186 = vmatprep.subr.mxu0 0.0
      %2187 = vmatpush1.msra.mxu0 0.0
      %2188 = vmatprep.subr.mxu0 0.0
      %2189 = vmatpush1.msra.mxu0 0.0
      %2190 = vmatprep.subr.mxu0 0.0
      %2191 = vmatpush1.msra.mxu0 0.0
      %2192 = vmatprep.subr.mxu0 0.0
      %2193 = vmatpush1.msra.mxu0 0.0
      %2194 = vmatprep.subr.mxu0 0.0
      %2195 = vmatpush1.msra.mxu0 0.0
      %2196 = vmatprep.subr.mxu0 0.0
      %2197 = vmatpush1.msra.mxu0 0.0
      %2198 = vmatprep.subr.mxu0 0.0
      %2199 = vmatpush1.msra.mxu0 0.0
      %2200 = vmatprep.subr.mxu0 0.0
      %2201 = vmatpush1.msra.mxu0 0.0
      %2202 = vmatprep.subr.mxu0 0.0
      %2203 = vmatpush1.msra.mxu0 0.0
      %2204 = vmatprep.subr.mxu0 0.0
      %2205 = vmatpush1.msra.mxu0 0.0
      %2206 = vmatprep.subr.mxu0 0.0
      %2207 = vmatpush1.msra.mxu0 0.0
      %2208 = vmatprep.subr.mxu0 0.0
      %2209 = vmatpush1.msra.mxu0 0.0
      %2210 = vmatprep.subr.mxu0 0.0
      %2211 = vmatpush1.msra.mxu0 0.0
      %2212 = vmatprep.subr.mxu0 0.0
      %2213 = vmatpush1.msra.mxu0 0.0
      %2214 = vmatprep.subr.mxu0 0.0
      %2215 = vmatpush1.msra.mxu0 0.0
      %2216 = vmatprep.subr.mxu0 0.0
      %2217 = vmatpush1.msra.mxu0 0.0
      %2218 = vmatprep.subr.mxu0 0.0
      %2219 = vmatpush1.msra.mxu0 0.0
      %2220 = vmatprep.subr.mxu0 0.0
      %2221 = vmatpush1.msra.mxu0 0.0
      %2222 = vmatprep.subr.mxu0 0.0
      %2223 = vmatpush1.msra.mxu0 0.0
      %2224 = vmatprep.subr.mxu0 0.0
      %2225 = vmatpush1.msra.mxu0 0.0
      %2226 = vmatprep.subr.mxu0 0.0
      %2227 = vmatpush1.msra.mxu0 0.0
      %2228 = vmatprep.subr.mxu0 0.0
      %2229 = vmatpush1.msra.mxu0 0.0
      %2230 = vmatprep.subr.mxu0 0.0
      %2231 = vmatpush1.msra.mxu0 0.0
      %2232 = vmatprep.subr.mxu0 0.0
      %2233 = vmatpush1.msra.mxu0 0.0
      %2234 = vmatprep.subr.mxu0 0.0
      %2235 = vmatpush1.msra.mxu0 0.0
      %2236 = vmatprep.subr.mxu0 0.0
      %2237 = vmatpush1.msra.mxu0 0.0
      %2238 = vmatprep.subr.mxu0 0.0
      %2239 = vmatpush1.msra.mxu0 0.0
      %2240 = vmatprep.subr.mxu0 0.0
      %2241 = vmatpush1.msra.mxu0 0.0
      %2242 = vmatprep.subr.mxu0 0.0
      %2243 = vmatpush1.msra.mxu0 0.0
      %2244 = vmatprep.subr.mxu0 0.0
      %2245 = vmatpush1.msra.mxu0 0.0
      %2246 = vmatprep.mubr.f32.mxu0 0.0
      %2247 = vmatmul.mubr.f32.gmra.mrb[0].mxu0 %v2180
      %v2248 = vpop.f32.mrb[0].mxu0
      %v2249 = vadd.f32 0.0, %v2248
      %v2250 = vpop.f32.mrb[0].mxu0
      %2251 = vdwg.mxu0
      %v2252 = vmax.f32 %v2249, 0.0
      %s2253 = scalar_lea.vmem %s7, 512
      %v2254 = vld [vmem:[%s2253] sm:$0xff]
      %v2255 = vld [vmem:[%s2253 + $0x8] sm:$0xff]
      %v2256 = vld [vmem:[%s2253 + $0x10] sm:$0xff]
      %v2257 = vld [vmem:[%s2253 + $0x18] sm:$0xff]
      %v2258 = vld [vmem:[%s2253 + $0x20] sm:$0xff]
      %v2259 = vld [vmem:[%s2253 + $0x28] sm:$0xff]
      %v2260 = vld [vmem:[%s2253 + $0x30] sm:$0xff]
      %v2261 = vld [vmem:[%s2253 + $0x38] sm:$0xff]
      %v2262 = vld [vmem:[%s2253 + $0x40] sm:$0xff]
      %v2263 = vld [vmem:[%s2253 + $0x48] sm:$0xff]
      %v2264 = vld [vmem:[%s2253 + $0x50] sm:$0xff]
      %v2265 = vld [vmem:[%s2253 + $0x58] sm:$0xff]
      %v2266 = vld [vmem:[%s2253 + $0x60] sm:$0xff]
      %v2267 = vld [vmem:[%s2253 + $0x68] sm:$0xff]
      %v2268 = vld [vmem:[%s2253 + $0x70] sm:$0xff]
      %v2269 = vld [vmem:[%s2253 + $0x78] sm:$0xff]
      %v2270 = vsub.f32 0.0, %v2249
      %v2271 = vmax.f32 %v2270, 0.0
      %s2272 = scalar_lea.vmem %s7, 640
      %v2273 = vld [vmem:[%s2272] sm:$0xff]
      %v2274 = vld [vmem:[%s2272 + $0x8] sm:$0xff]
      %v2275 = vld [vmem:[%s2272 + $0x10] sm:$0xff]
      %v2276 = vld [vmem:[%s2272 + $0x18] sm:$0xff]
      %v2277 = vld [vmem:[%s2272 + $0x20] sm:$0xff]
      %v2278 = vld [vmem:[%s2272 + $0x28] sm:$0xff]
      %v2279 = vld [vmem:[%s2272 + $0x30] sm:$0xff]
      %v2280 = vld [vmem:[%s2272 + $0x38] sm:$0xff]
      %v2281 = vld [vmem:[%s2272 + $0x40] sm:$0xff]
      %v2282 = vld [vmem:[%s2272 + $0x48] sm:$0xff]
      %v2283 = vld [vmem:[%s2272 + $0x50] sm:$0xff]
      %v2284 = vld [vmem:[%s2272 + $0x58] sm:$0xff]
      %v2285 = vld [vmem:[%s2272 + $0x60] sm:$0xff]
      %v2286 = vld [vmem:[%s2272 + $0x68] sm:$0xff]
      %v2287 = vld [vmem:[%s2272 + $0x70] sm:$0xff]
      %v2288 = vld [vmem:[%s2272 + $0x78] sm:$0xff]
      %2289 = vmatprep.subr.mxu0 0.0
      %2290 = vmatpush1.msra.mxu0 %v2273
      %2291 = vmatprep.subr.mxu0 0.0
      %2292 = vmatpush1.msra.mxu0 %v2274
      %2293 = vmatprep.subr.mxu0 0.0
      %2294 = vmatpush1.msra.mxu0 %v2275
      %2295 = vmatprep.subr.mxu0 0.0
      %2296 = vmatpush1.msra.mxu0 %v2276
      %2297 = vmatprep.subr.mxu0 0.0
      %2298 = vmatpush1.msra.mxu0 %v2277
      %2299 = vmatprep.subr.mxu0 0.0
      %2300 = vmatpush1.msra.mxu0 %v2278
      %2301 = vmatprep.subr.mxu0 0.0
      %2302 = vmatpush1.msra.mxu0 %v2279
      %2303 = vmatprep.subr.mxu0 0.0
      %2304 = vmatpush1.msra.mxu0 %v2280
      %2305 = vmatprep.subr.mxu0 0.0
      %2306 = vmatpush1.msra.mxu0 %v2281
      %2307 = vmatprep.subr.mxu0 0.0
      %2308 = vmatpush1.msra.mxu0 %v2282
      %2309 = vmatprep.subr.mxu0 0.0
      %2310 = vmatpush1.msra.mxu0 %v2283
      %2311 = vmatprep.subr.mxu0 0.0
      %2312 = vmatpush1.msra.mxu0 %v2284
      %2313 = vmatprep.subr.mxu0 0.0
      %2314 = vmatpush1.msra.mxu0 %v2285
      %2315 = vmatprep.subr.mxu0 0.0
      %2316 = vmatpush1.msra.mxu0 %v2286
      %2317 = vmatprep.subr.mxu0 0.0
      %2318 = vmatpush1.msra.mxu0 %v2287
      %2319 = vmatprep.subr.mxu0 0.0
      %2320 = vmatpush1.msra.mxu0 %v2288
      %2321 = vmatprep.subr.mxu0 0.0
      %2322 = vmatpush1.msra.mxu0 0.0
      %2323 = vmatprep.subr.mxu0 0.0
      %2324 = vmatpush1.msra.mxu0 0.0
      %2325 = vmatprep.subr.mxu0 0.0
      %2326 = vmatpush1.msra.mxu0 0.0
      %2327 = vmatprep.subr.mxu0 0.0
      %2328 = vmatpush1.msra.mxu0 0.0
      %2329 = vmatprep.subr.mxu0 0.0
      %2330 = vmatpush1.msra.mxu0 0.0
      %2331 = vmatprep.subr.mxu0 0.0
      %2332 = vmatpush1.msra.mxu0 0.0
      %2333 = vmatprep.subr.mxu0 0.0
      %2334 = vmatpush1.msra.mxu0 0.0
      %2335 = vmatprep.subr.mxu0 0.0
      %2336 = vmatpush1.msra.mxu0 0.0
      %2337 = vmatprep.subr.mxu0 0.0
      %2338 = vmatpush1.msra.mxu0 0.0
      %2339 = vmatprep.subr.mxu0 0.0
      %2340 = vmatpush1.msra.mxu0 0.0
      %2341 = vmatprep.subr.mxu0 0.0
      %2342 = vmatpush1.msra.mxu0 0.0
      %2343 = vmatprep.subr.mxu0 0.0
      %2344 = vmatpush1.msra.mxu0 0.0
      %2345 = vmatprep.subr.mxu0 0.0
      %2346 = vmatpush1.msra.mxu0 0.0
      %2347 = vmatprep.subr.mxu0 0.0
      %2348 = vmatpush1.msra.mxu0 0.0
      %2349 = vmatprep.subr.mxu0 0.0
      %2350 = vmatpush1.msra.mxu0 0.0
      %2351 = vmatprep.subr.mxu0 0.0
      %2352 = vmatpush1.msra.mxu0 0.0
      %2353 = vmatprep.mubr.f32.mxu0 0.0
      %2354 = vmatmul.mubr.f32.gmra.mrb[0].mxu0 %v2271
      %v2355 = vpop.f32.mrb[0].mxu0
      %v2356 = vadd.f32 0.0, %v2355
      %v2357 = vpop.f32.mrb[0].mxu0
      %2358 = vdwg.mxu0
      %2359 = vmatprep.subr.mxu0 0.0
      %2360 = vmatpush1.msra.mxu0 %v2254
      %2361 = vmatprep.subr.mxu0 0.0
      %2362 = vmatpush1.msra.mxu0 %v2255
      %2363 = vmatprep.subr.mxu0 0.0
      %2364 = vmatpush1.msra.mxu0 %v2256
      %2365 = vmatprep.subr.mxu0 0.0
      %2366 = vmatpush1.msra.mxu0 %v2257
      %2367 = vmatprep.subr.mxu0 0.0
      %2368 = vmatpush1.msra.mxu0 %v2258
      %2369 = vmatprep.subr.mxu0 0.0
      %2370 = vmatpush1.msra.mxu0 %v2259
      %2371 = vmatprep.subr.mxu0 0.0
      %2372 = vmatpush1.msra.mxu0 %v2260
      %2373 = vmatprep.subr.mxu0 0.0
      %2374 = vmatpush1.msra.mxu0 %v2261
      %2375 = vmatprep.subr.mxu0 0.0
      %2376 = vmatpush1.msra.mxu0 %v2262
      %2377 = vmatprep.subr.mxu0 0.0
      %2378 = vmatpush1.msra.mxu0 %v2263
      %2379 = vmatprep.subr.mxu0 0.0
      %2380 = vmatpush1.msra.mxu0 %v2264
      %2381 = vmatprep.subr.mxu0 0.0
      %2382 = vmatpush1.msra.mxu0 %v2265
      %2383 = vmatprep.subr.mxu0 0.0
      %2384 = vmatpush1.msra.mxu0 %v2266
      %2385 = vmatprep.subr.mxu0 0.0
      %2386 = vmatpush1.msra.mxu0 %v2267
      %2387 = vmatprep.subr.mxu0 0.0
      %2388 = vmatpush1.msra.mxu0 %v2268
      %2389 = vmatprep.subr.mxu0 0.0
      %2390 = vmatpush1.msra.mxu0 %v2269
      %2391 = vmatprep.subr.mxu0 0.0
      %2392 = vmatpush1.msra.mxu0 0.0
      %2393 = vmatprep.subr.mxu0 0.0
      %2394 = vmatpush1.msra.mxu0 0.0
      %2395 = vmatprep.subr.mxu0 0.0
      %2396 = vmatpush1.msra.mxu0 0.0
      %2397 = vmatprep.subr.mxu0 0.0
      %2398 = vmatpush1.msra.mxu0 0.0
      %2399 = vmatprep.subr.mxu0 0.0
      %2400 = vmatpush1.msra.mxu0 0.0
      %2401 = vmatprep.subr.mxu0 0.0
      %2402 = vmatpush1.msra.mxu0 0.0
      %2403 = vmatprep.subr.mxu0 0.0
      %2404 = vmatpush1.msra.mxu0 0.0
      %2405 = vmatprep.subr.mxu0 0.0
      %2406 = vmatpush1.msra.mxu0 0.0
      %2407 = vmatprep.subr.mxu0 0.0
      %2408 = vmatpush1.msra.mxu0 0.0
      %2409 = vmatprep.subr.mxu0 0.0
      %2410 = vmatpush1.msra.mxu0 0.0
      %2411 = vmatprep.subr.mxu0 0.0
      %2412 = vmatpush1.msra.mxu0 0.0
      %2413 = vmatprep.subr.mxu0 0.0
      %2414 = vmatpush1.msra.mxu0 0.0
      %2415 = vmatprep.subr.mxu0 0.0
      %2416 = vmatpush1.msra.mxu0 0.0
      %2417 = vmatprep.subr.mxu0 0.0
      %2418 = vmatpush1.msra.mxu0 0.0
      %2419 = vmatprep.subr.mxu0 0.0
      %2420 = vmatpush1.msra.mxu0 0.0
      %2421 = vmatprep.subr.mxu0 0.0
      %2422 = vmatpush1.msra.mxu0 0.0
      %2423 = vmatprep.mubr.f32.mxu0 0.0
      %2424 = vmatmul.mubr.f32.gmra.mrb[0].mxu0 %v2252
      %v2425 = vpop.f32.mrb[0].mxu0
      %v2426 = vadd.f32 %v2356, %v2425
      %v2427 = vpop.f32.mrb[0].mxu0
      %2428 = vdwg.mxu0
      %v2429 = vadd.f32 %v2176, %v2426
      %s2430 = scalar_lea.vmem %s8, 24
      %v2431 = vld [vmem:[%s2430] sm:$0xff]
      %v2433 = vsel %vm1667, %v2431, 0
      %2435 = vmatprep.subr.mxu0 0.0
      %2436 = vmatpush1.msra.mxu0 %v1663
      %2437 = vmatprep.subr.mxu0 0.0
      %2438 = vmatpush1.msra.mxu0 %v1664
      %2439 = vmatprep.subr.mxu0 0.0
      %2440 = vmatpush1.msra.mxu0 0.0
      %2441 = vmatprep.subr.mxu0 0.0
      %2442 = vmatpush1.msra.mxu0 0.0
      %2443 = vmatprep.subr.mxu0 0.0
      %2444 = vmatpush1.msra.mxu0 0.0
      %2445 = vmatprep.subr.mxu0 0.0
      %2446 = vmatpush1.msra.mxu0 0.0
      %2447 = vmatprep.subr.mxu0 0.0
      %2448 = vmatpush1.msra.mxu0 0.0
      %2449 = vmatprep.subr.mxu0 0.0
      %2450 = vmatpush1.msra.mxu0 0.0
      %2451 = vmatprep.subr.mxu0 0.0
      %2452 = vmatpush1.msra.mxu0 0.0
      %2453 = vmatprep.subr.mxu0 0.0
      %2454 = vmatpush1.msra.mxu0 0.0
      %2455 = vmatprep.subr.mxu0 0.0
      %2456 = vmatpush1.msra.mxu0 0.0
      %2457 = vmatprep.subr.mxu0 0.0
      %2458 = vmatpush1.msra.mxu0 0.0
      %2459 = vmatprep.subr.mxu0 0.0
      %2460 = vmatpush1.msra.mxu0 0.0
      %2461 = vmatprep.subr.mxu0 0.0
      %2462 = vmatpush1.msra.mxu0 0.0
      %2463 = vmatprep.subr.mxu0 0.0
      %2464 = vmatpush1.msra.mxu0 0.0
      %2465 = vmatprep.subr.mxu0 0.0
      %2466 = vmatpush1.msra.mxu0 0.0
      %2467 = vmatprep.subr.mxu0 0.0
      %2468 = vmatpush1.msra.mxu0 0.0
      %2469 = vmatprep.subr.mxu0 0.0
      %2470 = vmatpush1.msra.mxu0 0.0
      %2471 = vmatprep.subr.mxu0 0.0
      %2472 = vmatpush1.msra.mxu0 0.0
      %2473 = vmatprep.subr.mxu0 0.0
      %2474 = vmatpush1.msra.mxu0 0.0
      %2475 = vmatprep.subr.mxu0 0.0
      %2476 = vmatpush1.msra.mxu0 0.0
      %2477 = vmatprep.subr.mxu0 0.0
      %2478 = vmatpush1.msra.mxu0 0.0
      %2479 = vmatprep.subr.mxu0 0.0
      %2480 = vmatpush1.msra.mxu0 0.0
      %2481 = vmatprep.subr.mxu0 0.0
      %2482 = vmatpush1.msra.mxu0 0.0
      %2483 = vmatprep.subr.mxu0 0.0
      %2484 = vmatpush1.msra.mxu0 0.0
      %2485 = vmatprep.subr.mxu0 0.0
      %2486 = vmatpush1.msra.mxu0 0.0
      %2487 = vmatprep.subr.mxu0 0.0
      %2488 = vmatpush1.msra.mxu0 0.0
      %2489 = vmatprep.subr.mxu0 0.0
      %2490 = vmatpush1.msra.mxu0 0.0
      %2491 = vmatprep.subr.mxu0 0.0
      %2492 = vmatpush1.msra.mxu0 0.0
      %2493 = vmatprep.subr.mxu0 0.0
      %2494 = vmatpush1.msra.mxu0 0.0
      %2495 = vmatprep.subr.mxu0 0.0
      %2496 = vmatpush1.msra.mxu0 0.0
      %2497 = vmatprep.subr.mxu0 0.0
      %2498 = vmatpush1.msra.mxu0 0.0
      %2499 = vmatprep.mubr.f32.mxu0 0.0
      %2500 = vmatmul.mubr.f32.gmra.mrb[0].mxu0 %v2433
      %v2501 = vpop.f32.mrb[0].mxu0
      %v2502 = vadd.f32 0.0, %v2501
      %v2503 = vpop.f32.mrb[0].mxu0
      %2504 = vdwg.mxu0
      %v2505 = vmax.f32 %v2502, 0.0
      %s2506 = scalar_lea.vmem %s7, 768
      %v2507 = vld [vmem:[%s2506] sm:$0xff]
      %v2508 = vld [vmem:[%s2506 + $0x8] sm:$0xff]
      %v2509 = vld [vmem:[%s2506 + $0x10] sm:$0xff]
      %v2510 = vld [vmem:[%s2506 + $0x18] sm:$0xff]
      %v2511 = vld [vmem:[%s2506 + $0x20] sm:$0xff]
      %v2512 = vld [vmem:[%s2506 + $0x28] sm:$0xff]
      %v2513 = vld [vmem:[%s2506 + $0x30] sm:$0xff]
      %v2514 = vld [vmem:[%s2506 + $0x38] sm:$0xff]
      %v2515 = vld [vmem:[%s2506 + $0x40] sm:$0xff]
      %v2516 = vld [vmem:[%s2506 + $0x48] sm:$0xff]
      %v2517 = vld [vmem:[%s2506 + $0x50] sm:$0xff]
      %v2518 = vld [vmem:[%s2506 + $0x58] sm:$0xff]
      %v2519 = vld [vmem:[%s2506 + $0x60] sm:$0xff]
      %v2520 = vld [vmem:[%s2506 + $0x68] sm:$0xff]
      %v2521 = vld [vmem:[%s2506 + $0x70] sm:$0xff]
      %v2522 = vld [vmem:[%s2506 + $0x78] sm:$0xff]
      %v2523 = vsub.f32 0.0, %v2502
      %v2524 = vmax.f32 %v2523, 0.0
      %s2525 = scalar_lea.vmem %s7, 896
      %v2526 = vld [vmem:[%s2525] sm:$0xff]
      %v2527 = vld [vmem:[%s2525 + $0x8] sm:$0xff]
      %v2528 = vld [vmem:[%s2525 + $0x10] sm:$0xff]
      %v2529 = vld [vmem:[%s2525 + $0x18] sm:$0xff]
      %v2530 = vld [vmem:[%s2525 + $0x20] sm:$0xff]
      %v2531 = vld [vmem:[%s2525 + $0x28] sm:$0xff]
      %v2532 = vld [vmem:[%s2525 + $0x30] sm:$0xff]
      %v2533 = vld [vmem:[%s2525 + $0x38] sm:$0xff]
      %v2534 = vld [vmem:[%s2525 + $0x40] sm:$0xff]
      %v2535 = vld [vmem:[%s2525 + $0x48] sm:$0xff]
      %v2536 = vld [vmem:[%s2525 + $0x50] sm:$0xff]
      %v2537 = vld [vmem:[%s2525 + $0x58] sm:$0xff]
      %v2538 = vld [vmem:[%s2525 + $0x60] sm:$0xff]
      %v2539 = vld [vmem:[%s2525 + $0x68] sm:$0xff]
      %v2540 = vld [vmem:[%s2525 + $0x70] sm:$0xff]
      %v2541 = vld [vmem:[%s2525 + $0x78] sm:$0xff]
      %2542 = vmatprep.subr.mxu0 0.0
      %2543 = vmatpush1.msra.mxu0 %v2526
      %2544 = vmatprep.subr.mxu0 0.0
      %2545 = vmatpush1.msra.mxu0 %v2527
      %2546 = vmatprep.subr.mxu0 0.0
      %2547 = vmatpush1.msra.mxu0 %v2528
      %2548 = vmatprep.subr.mxu0 0.0
      %2549 = vmatpush1.msra.mxu0 %v2529
      %2550 = vmatprep.subr.mxu0 0.0
      %2551 = vmatpush1.msra.mxu0 %v2530
      %2552 = vmatprep.subr.mxu0 0.0
      %2553 = vmatpush1.msra.mxu0 %v2531
      %2554 = vmatprep.subr.mxu0 0.0
      %2555 = vmatpush1.msra.mxu0 %v2532
      %2556 = vmatprep.subr.mxu0 0.0
      %2557 = vmatpush1.msra.mxu0 %v2533
      %2558 = vmatprep.subr.mxu0 0.0
      %2559 = vmatpush1.msra.mxu0 %v2534
      %2560 = vmatprep.subr.mxu0 0.0
      %2561 = vmatpush1.msra.mxu0 %v2535
      %2562 = vmatprep.subr.mxu0 0.0
      %2563 = vmatpush1.msra.mxu0 %v2536
      %2564 = vmatprep.subr.mxu0 0.0
      %2565 = vmatpush1.msra.mxu0 %v2537
      %2566 = vmatprep.subr.mxu0 0.0
      %2567 = vmatpush1.msra.mxu0 %v2538
      %2568 = vmatprep.subr.mxu0 0.0
      %2569 = vmatpush1.msra.mxu0 %v2539
      %2570 = vmatprep.subr.mxu0 0.0
      %2571 = vmatpush1.msra.mxu0 %v2540
      %2572 = vmatprep.subr.mxu0 0.0
      %2573 = vmatpush1.msra.mxu0 %v2541
      %2574 = vmatprep.subr.mxu0 0.0
      %2575 = vmatpush1.msra.mxu0 0.0
      %2576 = vmatprep.subr.mxu0 0.0
      %2577 = vmatpush1.msra.mxu0 0.0
      %2578 = vmatprep.subr.mxu0 0.0
      %2579 = vmatpush1.msra.mxu0 0.0
      %2580 = vmatprep.subr.mxu0 0.0
      %2581 = vmatpush1.msra.mxu0 0.0
      %2582 = vmatprep.subr.mxu0 0.0
      %2583 = vmatpush1.msra.mxu0 0.0
      %2584 = vmatprep.subr.mxu0 0.0
      %2585 = vmatpush1.msra.mxu0 0.0
      %2586 = vmatprep.subr.mxu0 0.0
      %2587 = vmatpush1.msra.mxu0 0.0
      %2588 = vmatprep.subr.mxu0 0.0
      %2589 = vmatpush1.msra.mxu0 0.0
      %2590 = vmatprep.subr.mxu0 0.0
      %2591 = vmatpush1.msra.mxu0 0.0
      %2592 = vmatprep.subr.mxu0 0.0
      %2593 = vmatpush1.msra.mxu0 0.0
      %2594 = vmatprep.subr.mxu0 0.0
      %2595 = vmatpush1.msra.mxu0 0.0
      %2596 = vmatprep.subr.mxu0 0.0
      %2597 = vmatpush1.msra.mxu0 0.0
      %2598 = vmatprep.subr.mxu0 0.0
      %2599 = vmatpush1.msra.mxu0 0.0
      %2600 = vmatprep.subr.mxu0 0.0
      %2601 = vmatpush1.msra.mxu0 0.0
      %2602 = vmatprep.subr.mxu0 0.0
      %2603 = vmatpush1.msra.mxu0 0.0
      %2604 = vmatprep.subr.mxu0 0.0
      %2605 = vmatpush1.msra.mxu0 0.0
      %2606 = vmatprep.mubr.f32.mxu0 0.0
      %2607 = vmatmul.mubr.f32.gmra.mrb[0].mxu0 %v2524
      %v2608 = vpop.f32.mrb[0].mxu0
      %v2609 = vadd.f32 0.0, %v2608
      %v2610 = vpop.f32.mrb[0].mxu0
      %2611 = vdwg.mxu0
      %2612 = vmatprep.subr.mxu0 0.0
      %2613 = vmatpush1.msra.mxu0 %v2507
      %2614 = vmatprep.subr.mxu0 0.0
      %2615 = vmatpush1.msra.mxu0 %v2508
      %2616 = vmatprep.subr.mxu0 0.0
      %2617 = vmatpush1.msra.mxu0 %v2509
      %2618 = vmatprep.subr.mxu0 0.0
      %2619 = vmatpush1.msra.mxu0 %v2510
      %2620 = vmatprep.subr.mxu0 0.0
      %2621 = vmatpush1.msra.mxu0 %v2511
      %2622 = vmatprep.subr.mxu0 0.0
      %2623 = vmatpush1.msra.mxu0 %v2512
      %2624 = vmatprep.subr.mxu0 0.0
      %2625 = vmatpush1.msra.mxu0 %v2513
      %2626 = vmatprep.subr.mxu0 0.0
      %2627 = vmatpush1.msra.mxu0 %v2514
      %2628 = vmatprep.subr.mxu0 0.0
      %2629 = vmatpush1.msra.mxu0 %v2515
      %2630 = vmatprep.subr.mxu0 0.0
      %2631 = vmatpush1.msra.mxu0 %v2516
      %2632 = vmatprep.subr.mxu0 0.0
      %2633 = vmatpush1.msra.mxu0 %v2517
      %2634 = vmatprep.subr.mxu0 0.0
      %2635 = vmatpush1.msra.mxu0 %v2518
      %2636 = vmatprep.subr.mxu0 0.0
      %2637 = vmatpush1.msra.mxu0 %v2519
      %2638 = vmatprep.subr.mxu0 0.0
      %2639 = vmatpush1.msra.mxu0 %v2520
      %2640 = vmatprep.subr.mxu0 0.0
      %2641 = vmatpush1.msra.mxu0 %v2521
      %2642 = vmatprep.subr.mxu0 0.0
      %2643 = vmatpush1.msra.mxu0 %v2522
      %2644 = vmatprep.subr.mxu0 0.0
      %2645 = vmatpush1.msra.mxu0 0.0
      %2646 = vmatprep.subr.mxu0 0.0
      %2647 = vmatpush1.msra.mxu0 0.0
      %2648 = vmatprep.subr.mxu0 0.0
      %2649 = vmatpush1.msra.mxu0 0.0
      %2650 = vmatprep.subr.mxu0 0.0
      %2651 = vmatpush1.msra.mxu0 0.0
      %2652 = vmatprep.subr.mxu0 0.0
      %2653 = vmatpush1.msra.mxu0 0.0
      %2654 = vmatprep.subr.mxu0 0.0
      %2655 = vmatpush1.msra.mxu0 0.0
      %2656 = vmatprep.subr.mxu0 0.0
      %2657 = vmatpush1.msra.mxu0 0.0
      %2658 = vmatprep.subr.mxu0 0.0
      %2659 = vmatpush1.msra.mxu0 0.0
      %2660 = vmatprep.subr.mxu0 0.0
      %2661 = vmatpush1.msra.mxu0 0.0
      %2662 = vmatprep.subr.mxu0 0.0
      %2663 = vmatpush1.msra.mxu0 0.0
      %2664 = vmatprep.subr.mxu0 0.0
      %2665 = vmatpush1.msra.mxu0 0.0
      %2666 = vmatprep.subr.mxu0 0.0
      %2667 = vmatpush1.msra.mxu0 0.0
      %2668 = vmatprep.subr.mxu0 0.0
      %2669 = vmatpush1.msra.mxu0 0.0
      %2670 = vmatprep.subr.mxu0 0.0
      %2671 = vmatpush1.msra.mxu0 0.0
      %2672 = vmatprep.subr.mxu0 0.0
      %2673 = vmatpush1.msra.mxu0 0.0
      %2674 = vmatprep.subr.mxu0 0.0
      %2675 = vmatpush1.msra.mxu0 0.0
      %2676 = vmatprep.mubr.f32.mxu0 0.0
      %2677 = vmatmul.mubr.f32.gmra.mrb[0].mxu0 %v2505
      %v2678 = vpop.f32.mrb[0].mxu0
      %v2679 = vadd.f32 %v2609, %v2678
      %v2680 = vpop.f32.mrb[0].mxu0
      %2681 = vdwg.mxu0
      %v2682 = vadd.f32 %v2429, %v2679
      %2683 = vst [vmem:[%s417] sm:$0xff] %v2682
      %v2684 = vmax.f32 %v2682, 0.0
      %2685 = vst [vmem:[%s413] sm:$0xff] %v2684
      %v2686 = vsub.f32 0.0, %v2682
      %v2687 = vmax.f32 %v2686, 0.0
      %2688 = vst [vmem:[%s413 + $0x8] sm:$0xff] %v2687
      %p2689 = scmp.lt.s32.totalorder %s23, 1
      %s2690 = scalar_select %p2689, %s23, 1
      %s2691 = smul.addr %s2690, 2
      %s2692 = smul.addr %s2691, 8
      %s2693 = scalar_lea.vmem %s10, %s2692
      %p2694 = scmp.lt.s32.totalorder %s23, 1
      %s2695 = scalar_select %p2694, %s23, 1
      %s2696 = smul.addr %s2695, 8
      %s2697 = scalar_lea.vmem %s11, %s2696
      // Predicated region
      $region61: #{encoder_6k_forward.1} parent=59 // pred_check
        %p2698 = pneg %p261
      $region62: #{encoder_6k_forward.1} parent=59 // pred_check_branch
        %2700 = sbr.rel (%p2698) target = $region64
      $region63: #{encoder_6k_forward.1} parent=59 // pred_region
        _
      $region64: #{encoder_6k_forward.1} parent=59 // pred_fallthru
        _
      // Predicated region
      $region65: #{encoder_6k_forward.1} parent=59 // pred_check
        %p2701 = pneg %p287
      $region66: #{encoder_6k_forward.1} parent=59 // pred_check_branch
        %2703 = sbr.rel (%p2701) target = $region68
      $region67: #{encoder_6k_forward.1} parent=59 // pred_region
        _
      $region68: #{encoder_6k_forward.1} parent=59 // pred_fallthru
        _
    $region60: #{encoder_6k_forward.1} parent=5 // pred_fallthru
      _
    %p2704 = scmp.le.s32.totalorder 2, %s18
    // Predicated region
    $region69: #{encoder_6k_forward.1} parent=5 // pred_check
      %p2705 = pneg %p2704
    $region70: #{encoder_6k_forward.1} parent=5 // pred_check_branch
      %2707 = sbr.rel (%p2705) target = $region72
    $region71: #{encoder_6k_forward.1} parent=5 // pred_region
      %s2708 = ssub.s32 %s18, 2
      // Predicated region
      $region73: #{encoder_6k_forward.1} parent=71 // pred_check
        %p2709 = pneg %p267
      $region74: #{encoder_6k_forward.1} parent=71 // pred_check_branch
        %2711 = sbr.rel (%p2709) target = $region76
      $region75: #{encoder_6k_forward.1} parent=71 // pred_region
        %p2712 = scmp.lt.s32.totalorder %s24, 1
        %s2713 = scalar_select %p2712, %s24, 1
        %s2714 = smul.addr %s2713, 2
        %s2715 = smul.addr %s2714, 8
        %s2716 = scalar_lea.vmem %s10, %s2715
      $region76: #{encoder_6k_forward.1} parent=71 // pred_fallthru
        _
      // Predicated region
      $region77: #{encoder_6k_forward.1} parent=71 // pred_check
        %p2717 = pneg %p293
      $region78: #{encoder_6k_forward.1} parent=71 // pred_check_branch
        %2719 = sbr.rel (%p2717) target = $region80
      $region79: #{encoder_6k_forward.1} parent=71 // pred_region
        %p2720 = scmp.lt.s32.totalorder %s24, 1
        %s2721 = scalar_select %p2720, %s24, 1
        %s2722 = smul.addr %s2721, 8
        %s2723 = scalar_lea.vmem %s11, %s2722
      $region80: #{encoder_6k_forward.1} parent=71 // pred_fallthru
        _
    $region72: #{encoder_6k_forward.1} parent=5 // pred_fallthru
      _
  $region6: #{encoder_6k_forward.1} parent=0 // loop_footer
    %s22 = sadd.s32 1, %s18
  $region7: #{encoder_6k_forward.1} parent=0 // loop_footer_branch
    %17 = sbr.rel target = $region3
  $region8: #{encoder_6k_forward.1} parent=0 // loop_exit
    _

</llo_original>
